<compile_context>
chip_gen: v6e
topology: v6e:2x2x1
jax: 0.10.0
libtpu: 0.0.40
codegen_flags: <defaults>
</compile_context>

<pallas_src>
import math
import functools

import jax
import jax.numpy as jnp
from jax.experimental import pallas as pl
from jax.experimental.pallas import tpu as pltpu

# ---------------- small synthetic config (PhiMambaConfig-like) ----------------
D_MODEL = 32          # config.d_model
D_XB = 16             # config.d_xb   (GQA-style shared x / B width)
D_INNER = 32          # config.d_inner
HEADDIM = 8
D_STATE = 8
NHEADS = D_INNER // HEADDIM          # 4
REPEAT = D_INNER // D_XB             # 2  (repeat_kv factor)
D_CONV = 4
INTERMEDIATE = 64     # config.intermediate_size
LN_EPS = 1e-5
RMS_EPS = 1e-5
BATCH = 2
SEQ = 8

D_IN_PROJ = 2 * D_INNER + 2 * D_XB + NHEADS   # 100 = [z, x, B, C, dt]
CONV_DIM = 2 * D_XB + D_INNER                 # 64  = conv over concat(x, B, C)

# fused [in_proj | fc1] output column layout (segments never straddle a 128-lane tile)
Z_OFF = 0                                      # z gate        width D_INNER (32)
XBC_OFF = D_INNER                              # conv input    width CONV_DIM (64)
DT_OFF = D_INNER + CONV_DIM                    # dt            width NHEADS (4)
FF_OFF = 128                                   # fc1 pre-act   width INTERMEDIATE (64)
N_FUSED = FF_OFF + INTERMEDIATE                # 192 (columns [100:128) are zero pad)

# TODO(synk): exact Mamba2 (hybrid, d_xb) in_proj split order / repeat_kv_before_conv
# flag and RMSNormGated norm_before_gate setting are not in the given source; this
# keeps the previously-implemented [z, x, B, C, dt] split, conv over concat(x,B,C)
# before the GQA repeat, and norm-after-gate semantics.


# ------------------------------- fused kernel ---------------------------------

def _phi_mamba_layer_kernel(
    x_ref, ln_w_ref, ln_b_ref, wfused_ref, bfused_ref,
    conv_w_ref, conv_b_ref, A_ref, D_ref, dtb_ref,
    norm_w_ref, out_w_ref, fc2_w_ref, fc2_b_ref,
    o_ref,
    zxf_ref, xbc_ref, g_ref,
    *, batch, seq):
    f32 = jnp.float32

    x = x_ref[...]                                              # (M, d_model)

    # ---------- input LayerNorm (all rows at once) ----------
    mean = jnp.mean(x, axis=-1, keepdims=True)
    xm = x - mean
    var = jnp.mean(xm * xm, axis=-1, keepdims=True)
    h = xm * jax.lax.rsqrt(var + LN_EPS) * ln_w_ref[...] + ln_b_ref[...]

    # ---------- fused [in_proj | fc1] matmul (shared LHS, one MXU pass) ----------
    zxf_ref[...] = (jnp.dot(h, wfused_ref[...], preferred_element_type=f32)
                    + bfused_ref[...])

    # ---------- Phi MLP branch: gelu_new -> fc2 (all rows) ----------
    ff = zxf_ref[:, FF_OFF:FF_OFF + INTERMEDIATE]               # (M, intermediate)
    c_gelu = math.sqrt(2.0 / math.pi)
    act = 0.5 * ff * (1.0 + jnp.tanh(c_gelu * (ff + 0.044715 * ff * ff * ff)))
    mlp_out = (jnp.dot(act, fc2_w_ref[...], preferred_element_type=f32)
               + fc2_b_ref[...])                                # (M, d_model)

    # ---------- constants shared by conv + SSD scan ----------
    t_idx = jax.lax.broadcasted_iota(jnp.int32, (seq, seq), 0)  # output time t
    s_idx = jax.lax.broadcasted_iota(jnp.int32, (seq, seq), 1)  # source time s
    causal = s_idx <= t_idx                                     # bool (L, L)
    lt_ones = causal.astype(f32)                                # lower-tri (incl diag)
    eye = (s_idx == t_idx).astype(f32)

    for b in range(batch):                                      # static unroll (B small)
        r0 = b * seq

        # ---- causal depthwise conv (width K) + SiLU, in-register via shift matmuls
        xBC_b = zxf_ref[r0:r0 + seq, XBC_OFF:XBC_OFF + CONV_DIM]          # (L, conv_dim)
        acc = xBC_b * conv_w_ref[D_CONV - 1:D_CONV, :]                    # k = K-1, shift 0
        for k in range(D_CONV - 1):
            shift = D_CONV - 1 - k
            sh = ((t_idx - s_idx) == shift).astype(f32)                   # row t <- row t-shift
            acc = acc + (jnp.dot(sh, xBC_b, preferred_element_type=f32)
                         * conv_w_ref[k:k + 1, :])
        acc = acc + conv_b_ref[...]
        xbc_ref[r0:r0 + seq, :] = acc * jax.nn.sigmoid(acc)               # SiLU

        # ---- selective SSM, closed-form SSD (one chunk == whole toy sequence):
        #   y_t = sum_{s<=t} (C_t.B_s) * exp(A*(cum_t - cum_s)) * dt_s * x_s + D*x_t
        for hd in range(NHEADS):
            grp = hd // REPEAT                                            # GQA x/B sharing
            X_h = xbc_ref[r0:r0 + seq, grp * HEADDIM:(grp + 1) * HEADDIM]             # (L, P)
            B_h = xbc_ref[r0:r0 + seq, D_XB + grp * D_STATE:D_XB + (grp + 1) * D_STATE]
            C_h = xbc_ref[r0:r0 + seq,
                          2 * D_XB + hd * D_STATE:2 * D_XB + (hd + 1) * D_STATE]      # (L, N)

            dt_h = jax.nn.softplus(zxf_ref[r0:r0 + seq, DT_OFF + hd:DT_OFF + hd + 1]
                                   + dtb_ref[:, hd:hd + 1])                           # (L, 1)
            A_h = A_ref[:, hd:hd + 1]                                                 # (1, 1)
            D_h = D_ref[:, hd:hd + 1]                                                 # (1, 1)

            # cumulative dt as column/row vectors (built with reductions, no transpose)
            dt_row = jnp.sum(eye * dt_h, axis=0, keepdims=True)                       # (1, L)
            cum_col = jnp.sum(lt_ones * dt_row, axis=1, keepdims=True)                # (L, 1)
            cum_row = jnp.sum(eye * cum_col, axis=0, keepdims=True)                   # (1, L)
            dmat = jnp.where(causal, jnp.exp(A_h * (cum_col - cum_row)), 0.0)         # (L, L)

            G = jax.lax.dot_general(C_h, B_h, (((1,), (1,)), ((), ())),
                                    preferred_element_type=f32)                       # C B^T
            Y_h = (jnp.dot(G * dmat * dt_row, X_h, preferred_element_type=f32)
                   + D_h * X_h)                                                       # (L, P)

            # gate with silu(z) (RMSNormGated, norm applied after gating)
            z_h = zxf_ref[r0:r0 + seq, Z_OFF + hd * HEADDIM:Z_OFF + (hd + 1) * HEADDIM]
            g_ref[r0:r0 + seq, hd * HEADDIM:(hd + 1) * HEADDIM] = (
                Y_h * (z_h * jax.nn.sigmoid(z_h)))

        # ---- gated RMSNorm + out_proj + MLP + residual epilogue (single store) ----
        g_all = g_ref[r0:r0 + seq, :]                                     # (L, d_inner)
        var_g = jnp.mean(g_all * g_all, axis=-1, keepdims=True)
        y_n = g_all * jax.lax.rsqrt(var_g + RMS_EPS) * norm_w_ref[...]
        attn_b = jnp.dot(y_n, out_w_ref[...], preferred_element_type=f32)  # (L, d_model)

        o_ref[r0:r0 + seq, :] = attn_b + mlp_out[r0:r0 + seq, :] + x[r0:r0 + seq, :]


# ------------------------------ layer forward ---------------------------------

@jax.jit
def phi_mamba_decoder_layer(hidden_states, p):
    B, L, D = hidden_states.shape
    M = B * L
    x2d = hidden_states.reshape(M, D)            # contiguous => free reshape

    kernel = functools.partial(_phi_mamba_layer_kernel, batch=B, seq=L)
    out = pl.pallas_call(
        kernel,
        out_shape=jax.ShapeDtypeStruct((M, D), jnp.float32),
        grid=(1,),
        in_specs=[
            pl.BlockSpec((M, D), lambda i: (0, 0)),                     # x
            pl.BlockSpec((1, D), lambda i: (0, 0)),                     # ln_w
            pl.BlockSpec((1, D), lambda i: (0, 0)),                     # ln_b
            pl.BlockSpec((D, N_FUSED), lambda i: (0, 0)),               # fused [in_proj|fc1] W
            pl.BlockSpec((1, N_FUSED), lambda i: (0, 0)),               # fused bias
            pl.BlockSpec((D_CONV, CONV_DIM), lambda i: (0, 0)),         # conv_w
            pl.BlockSpec((1, CONV_DIM), lambda i: (0, 0)),              # conv_b
            pl.BlockSpec((1, NHEADS), lambda i: (0, 0)),                # A (negative)
            pl.BlockSpec((1, NHEADS), lambda i: (0, 0)),                # D skip
            pl.BlockSpec((1, NHEADS), lambda i: (0, 0)),                # dt_bias
            pl.BlockSpec((1, D_INNER), lambda i: (0, 0)),               # gated-RMSNorm w
            pl.BlockSpec((D_INNER, D), lambda i: (0, 0)),               # out_proj_w
            pl.BlockSpec((INTERMEDIATE, D), lambda i: (0, 0)),          # fc2_w
            pl.BlockSpec((1, D), lambda i: (0, 0)),                     # fc2_b
        ],
        out_specs=pl.BlockSpec((M, D), lambda i: (0, 0)),
        scratch_shapes=[
            pltpu.VMEM((M, N_FUSED), jnp.float32),    # fused matmul output
            pltpu.VMEM((M, CONV_DIM), jnp.float32),   # conv(x,B,C) + SiLU
            pltpu.VMEM((M, D_INNER), jnp.float32),    # gated y (pre RMSNorm)
        ],
        compiler_params=pltpu.CompilerParams(
            dimension_semantics=("arbitrary",)),
    )(x2d, p["ln_w"], p["ln_b"], p["w_fused"], p["b_fused"],
      p["conv_w"], p["conv_b"], p["A"], p["Dskip"], p["dt_bias"],
      p["norm_w"], p["out_proj_w"], p["fc2_w"], p["fc2_b"])
    return out.reshape(B, L, D)


# --------------------------- deterministic params ------------------------------

def init_params(key):
    ks = jax.random.split(key, 10)
    scale = 0.05
    A_vals = jnp.linspace(1.0, 16.0, NHEADS)                     # A_init_range
    A_neg = -A_vals                                              # A = -exp(A_log)
    dt_vals = jnp.exp(jnp.linspace(math.log(1e-3), math.log(1e-1), NHEADS))
    dt_bias = dt_vals + jnp.log(-jnp.expm1(-dt_vals))            # inverse softplus

    in_proj_w = scale * jax.random.normal(ks[0], (D_MODEL, D_IN_PROJ), jnp.float32)
    fc1_w = scale * jax.random.normal(ks[1], (D_MODEL, INTERMEDIATE), jnp.float32)
    fc1_b = 0.02 * jax.random.normal(ks[2], (INTERMEDIATE,), jnp.float32)

    # fused [in_proj | fc1] weight (done once at init, not per-forward)
    w_fused = jnp.zeros((D_MODEL, N_FUSED), jnp.float32)
    w_fused = w_fused.at[:, Z_OFF:Z_OFF + D_INNER].set(in_proj_w[:, :D_INNER])
    w_fused = w_fused.at[:, XBC_OFF:XBC_OFF + CONV_DIM].set(
        in_proj_w[:, D_INNER:D_INNER + CONV_DIM])
    w_fused = w_fused.at[:, DT_OFF:DT_OFF + NHEADS].set(
        in_proj_w[:, D_INNER + CONV_DIM:])
    w_fused = w_fused.at[:, FF_OFF:FF_OFF + INTERMEDIATE].set(fc1_w)
    b_fused = jnp.zeros((1, N_FUSED), jnp.float32)
    b_fused = b_fused.at[0, FF_OFF:FF_OFF + INTERMEDIATE].set(fc1_b)   # in_proj has no bias

    return dict(
        ln_w=(1.0 + 0.1 * jax.random.normal(ks[3], (1, D_MODEL), jnp.float32)),
        ln_b=0.02 * jax.random.normal(ks[4], (1, D_MODEL), jnp.float32),
        w_fused=w_fused,
        b_fused=b_fused,
        conv_w=scale * jax.random.normal(ks[5], (D_CONV, CONV_DIM), jnp.float32),
        conv_b=0.02 * jax.random.normal(ks[6], (1, CONV_DIM), jnp.float32),
        A=A_neg.reshape(1, NHEADS).astype(jnp.float32),
        Dskip=jnp.ones((1, NHEADS), jnp.float32),
        dt_bias=dt_bias.reshape(1, NHEADS).astype(jnp.float32),
        norm_w=(1.0 + 0.1 * jax.random.normal(ks[7], (1, D_INNER), jnp.float32)),
        out_proj_w=scale * jax.random.normal(ks[8], (D_INNER, D_MODEL), jnp.float32),
        fc2_w=scale * jax.random.normal(ks[9], (INTERMEDIATE, D_MODEL), jnp.float32),
        fc2_b=jnp.zeros((1, D_MODEL), jnp.float32),
    )


# -------------------- pure-JAX reference (sequential recurrence) ---------------

def reference_forward(x, p):
    B, L, D = x.shape
    x2 = x.reshape(B * L, D)
    mean = jnp.mean(x2, axis=-1, keepdims=True)
    var = jnp.mean((x2 - mean) ** 2, axis=-1, keepdims=True)
    h = (x2 - mean) / jnp.sqrt(var + LN_EPS) * p["ln_w"] + p["ln_b"]

    zxf = h @ p["w_fused"] + p["b_fused"]
    z = zxf[:, Z_OFF:Z_OFF + D_INNER]
    xBC = zxf[:, XBC_OFF:XBC_OFF + CONV_DIM].reshape(B, L, CONV_DIM)
    dt_raw = zxf[:, DT_OFF:DT_OFF + NHEADS].reshape(B, L, NHEADS)
    ff = zxf[:, FF_OFF:FF_OFF + INTERMEDIATE]

    c = math.sqrt(2.0 / math.pi)
    act = 0.5 * ff * (1.0 + jnp.tanh(c * (ff + 0.044715 * ff ** 3)))
    mlp_out = act @ p["fc2_w"] + p["fc2_b"]

    xp = jnp.pad(xBC, ((0, 0), (D_CONV - 1, 0), (0, 0)))
    conv = sum(xp[:, k:k + L, :] * p["conv_w"][k] for k in range(D_CONV)) + p["conv_b"]
    xBC_c = conv * jax.nn.sigmoid(conv)
    xc, Bc, Cc = (xBC_c[..., :D_XB], xBC_c[..., D_XB:2 * D_XB], xBC_c[..., 2 * D_XB:])
    dt_sp = jax.nn.softplus(dt_raw + p["dt_bias"][0])

    A = p["A"][0]
    Dsk = p["Dskip"][0]
    rows = []
    for b in range(B):
        heads = []
        for hd in range(NHEADS):
            g = hd // REPEAT
            Xh = xc[b, :, g * HEADDIM:(g + 1) * HEADDIM]
            Bh = Bc[b, :, g * D_STATE:(g + 1) * D_STATE]
            Ch = Cc[b, :, hd * D_STATE:(hd + 1) * D_STATE]
            S = jnp.zeros((HEADDIM, D_STATE), jnp.float32)
            ys = []
            for t in range(L):
                dt_t = dt_sp[b, t, hd]
                S = jnp.exp(A[hd] * dt_t) * S + dt_t * jnp.outer(Xh[t], Bh[t])
                ys.append(S @ Ch[t] + Dsk[hd] * Xh[t])
            heads.append(jnp.stack(ys))
        rows.append(jnp.concatenate(heads, axis=-1))
    y = jnp.concatenate(rows, axis=0)

    g_all = y * (z * jax.nn.sigmoid(z))
    var_g = jnp.mean(g_all * g_all, axis=-1, keepdims=True)
    y_n = g_all / jnp.sqrt(var_g + RMS_EPS) * p["norm_w"]
    attn = y_n @ p["out_proj_w"]
    return (attn + mlp_out + x2).reshape(B, L, D)


if __name__ == "__main__":
    key = jax.random.PRNGKey(0)
    kx, kp = jax.random.split(key)
    params = init_params(kp)
    x = jax.random.normal(kx, (BATCH, SEQ, D_MODEL), jnp.float32)

    out = phi_mamba_decoder_layer(x, params)
    out = jax.block_until_ready(out)

    assert out.shape == (BATCH, SEQ, D_MODEL)
    assert bool(jnp.all(jnp.isfinite(out)))

    ref = reference_forward(x, params)
    err = float(jnp.max(jnp.abs(out - ref)))
    assert err < 1e-3, f"mismatch vs reference: {err}"
    print("KERNEL_OK")
</pallas_src>

<mosaic_0001>
module attributes {stable_mosaic.version = 11 : i64} {
  func.func @_phi_mamba_layer_kernel(%arg0: i32, %arg1: memref<16x32xf32, #tpu.memory_space<vmem>>, %arg2: memref<1x32xf32, #tpu.memory_space<vmem>>, %arg3: memref<1x32xf32, #tpu.memory_space<vmem>>, %arg4: memref<32x192xf32, #tpu.memory_space<vmem>>, %arg5: memref<1x192xf32, #tpu.memory_space<vmem>>, %arg6: memref<4x64xf32, #tpu.memory_space<vmem>>, %arg7: memref<1x64xf32, #tpu.memory_space<vmem>>, %arg8: memref<1x4xf32, #tpu.memory_space<vmem>>, %arg9: memref<1x4xf32, #tpu.memory_space<vmem>>, %arg10: memref<1x4xf32, #tpu.memory_space<vmem>>, %arg11: memref<1x32xf32, #tpu.memory_space<vmem>>, %arg12: memref<32x32xf32, #tpu.memory_space<vmem>>, %arg13: memref<64x32xf32, #tpu.memory_space<vmem>>, %arg14: memref<1x32xf32, #tpu.memory_space<vmem>>, %arg15: memref<16x32xf32, #tpu.memory_space<vmem>>, %arg16: memref<16x192xf32, #tpu.memory_space<vmem>>, %arg17: memref<16x64xf32, #tpu.memory_space<vmem>>, %arg18: memref<16x32xf32, #tpu.memory_space<vmem>>) attributes {dimension_semantics = [#tpu.dimension_semantics<arbitrary>], iteration_bounds = array<i64: 1>, scalar_prefetch = 0 : i64, scratch_operands = 3 : i64, tpu.core_type = #tpu.core_type<tc>, window_params = [{pipeline_mode = #tpu.pipeline_mode<synchronous>, transform_indices = @transform_0, window_bounds = array<i64: 16, 32>}, {pipeline_mode = #tpu.pipeline_mode<synchronous>, transform_indices = @transform_1, window_bounds = array<i64: 1, 32>}, {pipeline_mode = #tpu.pipeline_mode<synchronous>, transform_indices = @transform_2, window_bounds = array<i64: 1, 32>}, {pipeline_mode = #tpu.pipeline_mode<synchronous>, transform_indices = @transform_3, window_bounds = array<i64: 32, 192>}, {pipeline_mode = #tpu.pipeline_mode<synchronous>, transform_indices = @transform_4, window_bounds = array<i64: 1, 192>}, {pipeline_mode = #tpu.pipeline_mode<synchronous>, transform_indices = @transform_5, window_bounds = array<i64: 4, 64>}, {pipeline_mode = #tpu.pipeline_mode<synchronous>, transform_indices = @transform_6, window_bounds = array<i64: 1, 64>}, {pipeline_mode = #tpu.pipeline_mode<synchronous>, transform_indices = @transform_7, window_bounds = array<i64: 1, 4>}, {pipeline_mode = #tpu.pipeline_mode<synchronous>, transform_indices = @transform_8, window_bounds = array<i64: 1, 4>}, {pipeline_mode = #tpu.pipeline_mode<synchronous>, transform_indices = @transform_9, window_bounds = array<i64: 1, 4>}, {pipeline_mode = #tpu.pipeline_mode<synchronous>, transform_indices = @transform_10, window_bounds = array<i64: 1, 32>}, {pipeline_mode = #tpu.pipeline_mode<synchronous>, transform_indices = @transform_11, window_bounds = array<i64: 32, 32>}, {pipeline_mode = #tpu.pipeline_mode<synchronous>, transform_indices = @transform_12, window_bounds = array<i64: 64, 32>}, {pipeline_mode = #tpu.pipeline_mode<synchronous>, transform_indices = @transform_13, window_bounds = array<i64: 1, 32>}, {pipeline_mode = #tpu.pipeline_mode<synchronous>, transform_indices = @transform_14, window_bounds = array<i64: 16, 32>}]} {
    %c0 = arith.constant 0 : index
    %c0_0 = arith.constant 0 : index
    %0 = vector.load %arg1[%c0, %c0_0] : memref<16x32xf32, #tpu.memory_space<vmem>>, vector<16x32xf32>
    %cst = arith.constant dense<0.000000e+00> : vector<16xf32>
    %1 = vector.multi_reduction <add>, %0, %cst [1] : vector<16x32xf32> to vector<16xf32>
    %2 = vector.shape_cast %1 : vector<16xf32> to vector<16x1xf32>
    %cst_1 = arith.constant 3.200000e+01 : f32
    %3 = vector.broadcast %cst_1 : f32 to vector<16x1xf32>
    %4 = arith.divf %2, %3 : vector<16x1xf32>
    %5 = vector.broadcast %4 : vector<16x1xf32> to vector<16x32xf32>
    %6 = arith.subf %0, %5 : vector<16x32xf32>
    %7 = arith.mulf %6, %6 : vector<16x32xf32>
    %cst_2 = arith.constant dense<0.000000e+00> : vector<16xf32>
    %8 = vector.multi_reduction <add>, %7, %cst_2 [1] : vector<16x32xf32> to vector<16xf32>
    %9 = vector.shape_cast %8 : vector<16xf32> to vector<16x1xf32>
    %cst_3 = arith.constant 3.200000e+01 : f32
    %10 = vector.broadcast %cst_3 : f32 to vector<16x1xf32>
    %11 = arith.divf %9, %10 : vector<16x1xf32>
    %cst_4 = arith.constant 9.99999974E-6 : f32
    %12 = vector.broadcast %cst_4 : f32 to vector<16x1xf32>
    %13 = arith.addf %11, %12 : vector<16x1xf32>
    %14 = math.rsqrt %13 : vector<16x1xf32>
    %15 = vector.broadcast %14 : vector<16x1xf32> to vector<16x32xf32>
    %16 = arith.mulf %6, %15 : vector<16x32xf32>
    %c0_5 = arith.constant 0 : index
    %c0_6 = arith.constant 0 : index
    %17 = vector.load %arg2[%c0_5, %c0_6] : memref<1x32xf32, #tpu.memory_space<vmem>>, vector<1x32xf32>
    %18 = vector.broadcast %17 : vector<1x32xf32> to vector<16x32xf32>
    %19 = arith.mulf %16, %18 : vector<16x32xf32>
    %c0_7 = arith.constant 0 : index
    %c0_8 = arith.constant 0 : index
    %20 = vector.load %arg3[%c0_7, %c0_8] : memref<1x32xf32, #tpu.memory_space<vmem>>, vector<1x32xf32>
    %21 = vector.broadcast %20 : vector<1x32xf32> to vector<16x32xf32>
    %22 = arith.addf %19, %21 : vector<16x32xf32>
    %c0_9 = arith.constant 0 : index
    %c0_10 = arith.constant 0 : index
    %23 = vector.load %arg4[%c0_9, %c0_10] : memref<32x192xf32, #tpu.memory_space<vmem>>, vector<32x192xf32>
    %cst_11 = arith.constant dense<0.000000e+00> : vector<16x192xf32>
    %24 = tpu.matmul %22, %23, %cst_11 {dimension_numbers = #tpu.dot_dimension_numbers<[1], [0], [0], [1], [0, 0, 1, 1], [], []>} : vector<16x32xf32>, vector<32x192xf32>, vector<16x192xf32> -> vector<16x192xf32>
    %c0_12 = arith.constant 0 : index
    %c0_13 = arith.constant 0 : index
    %25 = vector.load %arg5[%c0_12, %c0_13] : memref<1x192xf32, #tpu.memory_space<vmem>>, vector<1x192xf32>
    %26 = vector.broadcast %25 : vector<1x192xf32> to vector<16x192xf32>
    %27 = arith.addf %24, %26 : vector<16x192xf32>
    %c0_14 = arith.constant 0 : index
    %c0_15 = arith.constant 0 : index
    %28 = vector.load %arg16[%c0_14, %c0_15] : memref<16x192xf32, #tpu.memory_space<vmem>>, vector<16x192xf32>
    tpu.vector_store %arg16[%c0_14, %c0_15], %27 {strides = array<i32>} : memref<16x192xf32, #tpu.memory_space<vmem>>, vector<16x192xf32>,
    %c0_16 = arith.constant 0 : index
    %c128 = arith.constant 128 : index
    %29 = vector.load %arg16[%c0_16, %c128] : memref<16x192xf32, #tpu.memory_space<vmem>>, vector<16x64xf32>
    %cst_17 = arith.constant 5.000000e-01 : f32
    %30 = vector.broadcast %cst_17 : f32 to vector<16x64xf32>
    %31 = arith.mulf %30, %29 : vector<16x64xf32>
    %cst_18 = arith.constant 4.471500e-02 : f32
    %32 = vector.broadcast %cst_18 : f32 to vector<16x64xf32>
    %33 = arith.mulf %32, %29 : vector<16x64xf32>
    %34 = arith.mulf %33, %29 : vector<16x64xf32>
    %35 = arith.mulf %34, %29 : vector<16x64xf32>
    %36 = arith.addf %29, %35 : vector<16x64xf32>
    %cst_19 = arith.constant 0.797884583 : f32
    %37 = vector.broadcast %cst_19 : f32 to vector<16x64xf32>
    %38 = arith.mulf %37, %36 : vector<16x64xf32>
    %39 = math.tanh %38 : vector<16x64xf32>
    %cst_20 = arith.constant 1.000000e+00 : f32
    %40 = vector.broadcast %cst_20 : f32 to vector<16x64xf32>
    %41 = arith.addf %40, %39 : vector<16x64xf32>
    %42 = arith.mulf %31, %41 : vector<16x64xf32>
    %c0_21 = arith.constant 0 : index
    %c0_22 = arith.constant 0 : index
    %43 = vector.load %arg13[%c0_21, %c0_22] : memref<64x32xf32, #tpu.memory_space<vmem>>, vector<64x32xf32>
    %cst_23 = arith.constant dense<0.000000e+00> : vector<16x32xf32>
    %44 = tpu.matmul %42, %43, %cst_23 {dimension_numbers = #tpu.dot_dimension_numbers<[1], [0], [0], [1], [0, 0, 1, 1], [], []>} : vector<16x64xf32>, vector<64x32xf32>, vector<16x32xf32> -> vector<16x32xf32>
    %c0_24 = arith.constant 0 : index
    %c0_25 = arith.constant 0 : index
    %45 = vector.load %arg14[%c0_24, %c0_25] : memref<1x32xf32, #tpu.memory_space<vmem>>, vector<1x32xf32>
    %46 = vector.broadcast %45 : vector<1x32xf32> to vector<16x32xf32>
    %47 = arith.addf %44, %46 : vector<16x32xf32>
    %48 = tpu.iota {dimensions = array<i32: 0>} : vector<8x8xi32>
    %49 = tpu.iota {dimensions = array<i32: 1>} : vector<8x8xi32>
    %50 = arith.cmpi sle, %49, %48 : vector<8x8xi32>
    %51 = arith.extui %50 : vector<8x8xi1> to vector<8x8xi32>
    %52 = arith.sitofp %51 : vector<8x8xi32> to vector<8x8xf32>
    %53 = arith.cmpi eq, %49, %48 : vector<8x8xi32>
    %54 = arith.extui %53 : vector<8x8xi1> to vector<8x8xi32>
    %55 = arith.sitofp %54 : vector<8x8xi32> to vector<8x8xf32>
    %c0_26 = arith.constant 0 : index
    %c32 = arith.constant 32 : index
    %56 = vector.load %arg16[%c0_26, %c32] : memref<16x192xf32, #tpu.memory_space<vmem>>, vector<8x64xf32>
    %c3 = arith.constant 3 : index
    %c0_27 = arith.constant 0 : index
    %57 = vector.load %arg6[%c3, %c0_27] : memref<4x64xf32, #tpu.memory_space<vmem>>, vector<1x64xf32>
    %58 = vector.broadcast %57 : vector<1x64xf32> to vector<8x64xf32>
    %59 = arith.mulf %56, %58 : vector<8x64xf32>
    %60 = arith.subi %48, %49 : vector<8x8xi32>
    %c3_i32 = arith.constant 3 : i32
    %61 = vector.broadcast %c3_i32 : i32 to vector<8x8xi32>
    %62 = arith.cmpi eq, %60, %61 : vector<8x8xi32>
    %63 = arith.extui %62 : vector<8x8xi1> to vector<8x8xi32>
    %64 = arith.sitofp %63 : vector<8x8xi32> to vector<8x8xf32>
    %cst_28 = arith.constant dense<0.000000e+00> : vector<8x64xf32>
    %65 = tpu.matmul %64, %56, %cst_28 {dimension_numbers = #tpu.dot_dimension_numbers<[1], [0], [0], [1], [0, 0, 1, 1], [], []>} : vector<8x8xf32>, vector<8x64xf32>, vector<8x64xf32> -> vector<8x64xf32>
    %c0_29 = arith.constant 0 : index
    %c0_30 = arith.constant 0 : index
    %66 = vector.load %arg6[%c0_29, %c0_30] : memref<4x64xf32, #tpu.memory_space<vmem>>, vector<1x64xf32>
    %67 = vector.broadcast %66 : vector<1x64xf32> to vector<8x64xf32>
    %68 = arith.mulf %65, %67 : vector<8x64xf32>
    %69 = arith.addf %59, %68 : vector<8x64xf32>
    %70 = arith.subi %48, %49 : vector<8x8xi32>
    %c2_i32 = arith.constant 2 : i32
    %71 = vector.broadcast %c2_i32 : i32 to vector<8x8xi32>
    %72 = arith.cmpi eq, %70, %71 : vector<8x8xi32>
    %73 = arith.extui %72 : vector<8x8xi1> to vector<8x8xi32>
    %74 = arith.sitofp %73 : vector<8x8xi32> to vector<8x8xf32>
    %cst_31 = arith.constant dense<0.000000e+00> : vector<8x64xf32>
    %75 = tpu.matmul %74, %56, %cst_31 {dimension_numbers = #tpu.dot_dimension_numbers<[1], [0], [0], [1], [0, 0, 1, 1], [], []>} : vector<8x8xf32>, vector<8x64xf32>, vector<8x64xf32> -> vector<8x64xf32>
    %c1 = arith.constant 1 : index
    %c0_32 = arith.constant 0 : index
    %76 = vector.load %arg6[%c1, %c0_32] : memref<4x64xf32, #tpu.memory_space<vmem>>, vector<1x64xf32>
    %77 = vector.broadcast %76 : vector<1x64xf32> to vector<8x64xf32>
    %78 = arith.mulf %75, %77 : vector<8x64xf32>
    %79 = arith.addf %69, %78 : vector<8x64xf32>
    %80 = arith.subi %48, %49 : vector<8x8xi32>
    %c1_i32 = arith.constant 1 : i32
    %81 = vector.broadcast %c1_i32 : i32 to vector<8x8xi32>
    %82 = arith.cmpi eq, %80, %81 : vector<8x8xi32>
    %83 = arith.extui %82 : vector<8x8xi1> to vector<8x8xi32>
    %84 = arith.sitofp %83 : vector<8x8xi32> to vector<8x8xf32>
    %cst_33 = arith.constant dense<0.000000e+00> : vector<8x64xf32>
    %85 = tpu.matmul %84, %56, %cst_33 {dimension_numbers = #tpu.dot_dimension_numbers<[1], [0], [0], [1], [0, 0, 1, 1], [], []>} : vector<8x8xf32>, vector<8x64xf32>, vector<8x64xf32> -> vector<8x64xf32>
    %c2 = arith.constant 2 : index
    %c0_34 = arith.constant 0 : index
    %86 = vector.load %arg6[%c2, %c0_34] : memref<4x64xf32, #tpu.memory_space<vmem>>, vector<1x64xf32>
    %87 = vector.broadcast %86 : vector<1x64xf32> to vector<8x64xf32>
    %88 = arith.mulf %85, %87 : vector<8x64xf32>
    %89 = arith.addf %79, %88 : vector<8x64xf32>
    %c0_35 = arith.constant 0 : index
    %c0_36 = arith.constant 0 : index
    %90 = vector.load %arg7[%c0_35, %c0_36] : memref<1x64xf32, #tpu.memory_space<vmem>>, vector<1x64xf32>
    %91 = vector.broadcast %90 : vector<1x64xf32> to vector<8x64xf32>
    %92 = arith.addf %89, %91 : vector<8x64xf32>
    %93 = arith.negf %92 : vector<8x64xf32>
    %94 = math.exp %93 : vector<8x64xf32>
    %cst_37 = arith.constant 1.000000e+00 : f32
    %95 = vector.broadcast %cst_37 : f32 to vector<8x64xf32>
    %96 = arith.addf %95, %94 : vector<8x64xf32>
    %97 = arith.divf %95, %96 : vector<8x64xf32>
    %98 = arith.mulf %92, %97 : vector<8x64xf32>
    %c0_38 = arith.constant 0 : index
    %c0_39 = arith.constant 0 : index
    %99 = vector.load %arg17[%c0_38, %c0_39] : memref<16x64xf32, #tpu.memory_space<vmem>>, vector<8x64xf32>
    tpu.vector_store %arg17[%c0_38, %c0_39], %98 {strides = array<i32>} : memref<16x64xf32, #tpu.memory_space<vmem>>, vector<8x64xf32>,
    %c0_40 = arith.constant 0 : index
    %c0_41 = arith.constant 0 : index
    %100 = vector.load %arg17[%c0_40, %c0_41] : memref<16x64xf32, #tpu.memory_space<vmem>>, vector<8x8xf32>
    %c0_42 = arith.constant 0 : index
    %c16 = arith.constant 16 : index
    %101 = vector.load %arg17[%c0_42, %c16] : memref<16x64xf32, #tpu.memory_space<vmem>>, vector<8x8xf32>
    %c0_43 = arith.constant 0 : index
    %c32_44 = arith.constant 32 : index
    %102 = vector.load %arg17[%c0_43, %c32_44] : memref<16x64xf32, #tpu.memory_space<vmem>>, vector<8x8xf32>
    %c0_45 = arith.constant 0 : index
    %c96 = arith.constant 96 : index
    %103 = vector.load %arg16[%c0_45, %c96] : memref<16x192xf32, #tpu.memory_space<vmem>>, vector<8x1xf32>
    %c0_46 = arith.constant 0 : index
    %c0_47 = arith.constant 0 : index
    %104 = vector.load %arg10[%c0_46, %c0_47] : memref<1x4xf32, #tpu.memory_space<vmem>>, vector<1x1xf32>
    %105 = vector.broadcast %104 : vector<1x1xf32> to vector<8x1xf32>
    %106 = arith.addf %103, %105 : vector<8x1xf32>
    %cst_48 = arith.constant 0.000000e+00 : f32
    %107 = vector.broadcast %cst_48 : f32 to vector<8x1xf32>
    %108 = arith.maximumf %106, %107 : vector<8x1xf32>
    %109 = vector.broadcast %cst_48 : f32 to vector<8x1xf32>
    %110 = arith.subf %106, %109 : vector<8x1xf32>
    %111 = arith.cmpf one, %110, %110 : vector<8x1xf32>
    %112 = vector.broadcast %cst_48 : f32 to vector<8x1xf32>
    %113 = arith.addf %106, %112 : vector<8x1xf32>
    %114 = math.absf %110 : vector<8x1xf32>
    %cst_49 = arith.constant 0.000000e+00 : f32
    %115 = vector.broadcast %cst_49 : f32 to vector<8x1xf32>
    %116 = arith.subf %115, %114 : vector<8x1xf32>
    %117 = math.exp %116 : vector<8x1xf32>
    %118 = math.log1p %117 : vector<8x1xf32>
    %119 = arith.addf %108, %118 : vector<8x1xf32>
    %120 = arith.select %111, %113, %119 : vector<8x1xi1>, vector<8x1xf32>
    %c0_50 = arith.constant 0 : index
    %c0_51 = arith.constant 0 : index
    %121 = vector.load %arg8[%c0_50, %c0_51] : memref<1x4xf32, #tpu.memory_space<vmem>>, vector<1x1xf32>
    %c0_52 = arith.constant 0 : index
    %c0_53 = arith.constant 0 : index
    %122 = vector.load %arg9[%c0_52, %c0_53] : memref<1x4xf32, #tpu.memory_space<vmem>>, vector<1x1xf32>
    %123 = vector.broadcast %120 : vector<8x1xf32> to vector<8x8xf32>
    %124 = arith.mulf %55, %123 : vector<8x8xf32>
    %cst_54 = arith.constant dense<0.000000e+00> : vector<8xf32>
    %125 = vector.multi_reduction <add>, %124, %cst_54 [0] : vector<8x8xf32> to vector<8xf32>
    %126 = vector.shape_cast %125 : vector<8xf32> to vector<1x8xf32>
    %127 = vector.broadcast %126 : vector<1x8xf32> to vector<8x8xf32>
    %128 = arith.mulf %52, %127 : vector<8x8xf32>
    %cst_55 = arith.constant dense<0.000000e+00> : vector<8xf32>
    %129 = vector.multi_reduction <add>, %128, %cst_55 [1] : vector<8x8xf32> to vector<8xf32>
    %130 = vector.shape_cast %129 : vector<8xf32> to vector<8x1xf32>
    %131 = vector.broadcast %130 : vector<8x1xf32> to vector<8x8xf32>
    %132 = arith.mulf %55, %131 : vector<8x8xf32>
    %cst_56 = arith.constant dense<0.000000e+00> : vector<8xf32>
    %133 = vector.multi_reduction <add>, %132, %cst_56 [0] : vector<8x8xf32> to vector<8xf32>
    %134 = vector.shape_cast %133 : vector<8xf32> to vector<1x8xf32>
    %135 = vector.broadcast %130 : vector<8x1xf32> to vector<8x8xf32>
    %136 = vector.broadcast %134 : vector<1x8xf32> to vector<8x8xf32>
    %137 = arith.subf %135, %136 : vector<8x8xf32>
    %138 = vector.broadcast %121 : vector<1x1xf32> to vector<8x8xf32>
    %139 = arith.mulf %138, %137 : vector<8x8xf32>
    %140 = math.exp %139 : vector<8x8xf32>
    %cst_57 = arith.constant 0.000000e+00 : f32
    %141 = vector.broadcast %cst_57 : f32 to vector<8x8xf32>
    %142 = arith.select %50, %140, %141 : vector<8x8xi1>, vector<8x8xf32>
    %cst_58 = arith.constant dense<0.000000e+00> : vector<8x8xf32>
    %143 = tpu.matmul %102, %101, %cst_58 {dimension_numbers = #tpu.dot_dimension_numbers<[1], [1], [0], [0], [0, 0, 1, 0], [], []>} : vector<8x8xf32>, vector<8x8xf32>, vector<8x8xf32> -> vector<8x8xf32>
    %144 = arith.mulf %143, %142 : vector<8x8xf32>
    %145 = vector.broadcast %126 : vector<1x8xf32> to vector<8x8xf32>
    %146 = arith.mulf %144, %145 : vector<8x8xf32>
    %cst_59 = arith.constant dense<0.000000e+00> : vector<8x8xf32>
    %147 = tpu.matmul %146, %100, %cst_59 {dimension_numbers = #tpu.dot_dimension_numbers<[1], [0], [0], [1], [0, 0, 1, 1], [], []>} : vector<8x8xf32>, vector<8x8xf32>, vector<8x8xf32> -> vector<8x8xf32>
    %148 = vector.broadcast %122 : vector<1x1xf32> to vector<8x8xf32>
    %149 = arith.mulf %148, %100 : vector<8x8xf32>
    %150 = arith.addf %147, %149 : vector<8x8xf32>
    %c0_60 = arith.constant 0 : index
    %c0_61 = arith.constant 0 : index
    %151 = vector.load %arg16[%c0_60, %c0_61] : memref<16x192xf32, #tpu.memory_space<vmem>>, vector<8x8xf32>
    %152 = arith.negf %151 : vector<8x8xf32>
    %153 = math.exp %152 : vector<8x8xf32>
    %cst_62 = arith.constant 1.000000e+00 : f32
    %154 = vector.broadcast %cst_62 : f32 to vector<8x8xf32>
    %155 = arith.addf %154, %153 : vector<8x8xf32>
    %156 = arith.divf %154, %155 : vector<8x8xf32>
    %157 = arith.mulf %151, %156 : vector<8x8xf32>
    %158 = arith.mulf %150, %157 : vector<8x8xf32>
    %c0_63 = arith.constant 0 : index
    %c0_64 = arith.constant 0 : index
    %159 = vector.load %arg18[%c0_63, %c0_64] : memref<16x32xf32, #tpu.memory_space<vmem>>, vector<8x8xf32>
    tpu.vector_store %arg18[%c0_63, %c0_64], %158 {strides = array<i32>} : memref<16x32xf32, #tpu.memory_space<vmem>>, vector<8x8xf32>,
    %c0_65 = arith.constant 0 : index
    %c0_66 = arith.constant 0 : index
    %160 = vector.load %arg17[%c0_65, %c0_66] : memref<16x64xf32, #tpu.memory_space<vmem>>, vector<8x8xf32>
    %c0_67 = arith.constant 0 : index
    %c16_68 = arith.constant 16 : index
    %161 = vector.load %arg17[%c0_67, %c16_68] : memref<16x64xf32, #tpu.memory_space<vmem>>, vector<8x8xf32>
    %c0_69 = arith.constant 0 : index
    %c40 = arith.constant 40 : index
    %162 = vector.load %arg17[%c0_69, %c40] : memref<16x64xf32, #tpu.memory_space<vmem>>, vector<8x8xf32>
    %c0_70 = arith.constant 0 : index
    %c97 = arith.constant 97 : index
    %163 = vector.load %arg16[%c0_70, %c97] : memref<16x192xf32, #tpu.memory_space<vmem>>, vector<8x1xf32>
    %c0_71 = arith.constant 0 : index
    %c1_72 = arith.constant 1 : index
    %164 = vector.load %arg10[%c0_71, %c1_72] : memref<1x4xf32, #tpu.memory_space<vmem>>, vector<1x1xf32>
    %165 = vector.broadcast %164 : vector<1x1xf32> to vector<8x1xf32>
    %166 = arith.addf %163, %165 : vector<8x1xf32>
    %cst_73 = arith.constant 0.000000e+00 : f32
    %167 = vector.broadcast %cst_73 : f32 to vector<8x1xf32>
    %168 = arith.maximumf %166, %167 : vector<8x1xf32>
    %169 = vector.broadcast %cst_73 : f32 to vector<8x1xf32>
    %170 = arith.subf %166, %169 : vector<8x1xf32>
    %171 = arith.cmpf one, %170, %170 : vector<8x1xf32>
    %172 = vector.broadcast %cst_73 : f32 to vector<8x1xf32>
    %173 = arith.addf %166, %172 : vector<8x1xf32>
    %174 = math.absf %170 : vector<8x1xf32>
    %cst_74 = arith.constant 0.000000e+00 : f32
    %175 = vector.broadcast %cst_74 : f32 to vector<8x1xf32>
    %176 = arith.subf %175, %174 : vector<8x1xf32>
    %177 = math.exp %176 : vector<8x1xf32>
    %178 = math.log1p %177 : vector<8x1xf32>
    %179 = arith.addf %168, %178 : vector<8x1xf32>
    %180 = arith.select %171, %173, %179 : vector<8x1xi1>, vector<8x1xf32>
    %c0_75 = arith.constant 0 : index
    %c1_76 = arith.constant 1 : index
    %181 = vector.load %arg8[%c0_75, %c1_76] : memref<1x4xf32, #tpu.memory_space<vmem>>, vector<1x1xf32>
    %c0_77 = arith.constant 0 : index
    %c1_78 = arith.constant 1 : index
    %182 = vector.load %arg9[%c0_77, %c1_78] : memref<1x4xf32, #tpu.memory_space<vmem>>, vector<1x1xf32>
    %183 = vector.broadcast %180 : vector<8x1xf32> to vector<8x8xf32>
    %184 = arith.mulf %55, %183 : vector<8x8xf32>
    %cst_79 = arith.constant dense<0.000000e+00> : vector<8xf32>
    %185 = vector.multi_reduction <add>, %184, %cst_79 [0] : vector<8x8xf32> to vector<8xf32>
    %186 = vector.shape_cast %185 : vector<8xf32> to vector<1x8xf32>
    %187 = vector.broadcast %186 : vector<1x8xf32> to vector<8x8xf32>
    %188 = arith.mulf %52, %187 : vector<8x8xf32>
    %cst_80 = arith.constant dense<0.000000e+00> : vector<8xf32>
    %189 = vector.multi_reduction <add>, %188, %cst_80 [1] : vector<8x8xf32> to vector<8xf32>
    %190 = vector.shape_cast %189 : vector<8xf32> to vector<8x1xf32>
    %191 = vector.broadcast %190 : vector<8x1xf32> to vector<8x8xf32>
    %192 = arith.mulf %55, %191 : vector<8x8xf32>
    %cst_81 = arith.constant dense<0.000000e+00> : vector<8xf32>
    %193 = vector.multi_reduction <add>, %192, %cst_81 [0] : vector<8x8xf32> to vector<8xf32>
    %194 = vector.shape_cast %193 : vector<8xf32> to vector<1x8xf32>
    %195 = vector.broadcast %190 : vector<8x1xf32> to vector<8x8xf32>
    %196 = vector.broadcast %194 : vector<1x8xf32> to vector<8x8xf32>
    %197 = arith.subf %195, %196 : vector<8x8xf32>
    %198 = vector.broadcast %181 : vector<1x1xf32> to vector<8x8xf32>
    %199 = arith.mulf %198, %197 : vector<8x8xf32>
    %200 = math.exp %199 : vector<8x8xf32>
    %cst_82 = arith.constant 0.000000e+00 : f32
    %201 = vector.broadcast %cst_82 : f32 to vector<8x8xf32>
    %202 = arith.select %50, %200, %201 : vector<8x8xi1>, vector<8x8xf32>
    %cst_83 = arith.constant dense<0.000000e+00> : vector<8x8xf32>
    %203 = tpu.matmul %162, %161, %cst_83 {dimension_numbers = #tpu.dot_dimension_numbers<[1], [1], [0], [0], [0, 0, 1, 0], [], []>} : vector<8x8xf32>, vector<8x8xf32>, vector<8x8xf32> -> vector<8x8xf32>
    %204 = arith.mulf %203, %202 : vector<8x8xf32>
    %205 = vector.broadcast %186 : vector<1x8xf32> to vector<8x8xf32>
    %206 = arith.mulf %204, %205 : vector<8x8xf32>
    %cst_84 = arith.constant dense<0.000000e+00> : vector<8x8xf32>
    %207 = tpu.matmul %206, %160, %cst_84 {dimension_numbers = #tpu.dot_dimension_numbers<[1], [0], [0], [1], [0, 0, 1, 1], [], []>} : vector<8x8xf32>, vector<8x8xf32>, vector<8x8xf32> -> vector<8x8xf32>
    %208 = vector.broadcast %182 : vector<1x1xf32> to vector<8x8xf32>
    %209 = arith.mulf %208, %160 : vector<8x8xf32>
    %210 = arith.addf %207, %209 : vector<8x8xf32>
    %c0_85 = arith.constant 0 : index
    %c8 = arith.constant 8 : index
    %211 = vector.load %arg16[%c0_85, %c8] : memref<16x192xf32, #tpu.memory_space<vmem>>, vector<8x8xf32>
    %212 = arith.negf %211 : vector<8x8xf32>
    %213 = math.exp %212 : vector<8x8xf32>
    %cst_86 = arith.constant 1.000000e+00 : f32
    %214 = vector.broadcast %cst_86 : f32 to vector<8x8xf32>
    %215 = arith.addf %214, %213 : vector<8x8xf32>
    %216 = arith.divf %214, %215 : vector<8x8xf32>
    %217 = arith.mulf %211, %216 : vector<8x8xf32>
    %218 = arith.mulf %210, %217 : vector<8x8xf32>
    %c0_87 = arith.constant 0 : index
    %c8_88 = arith.constant 8 : index
    %219 = vector.load %arg18[%c0_87, %c8_88] : memref<16x32xf32, #tpu.memory_space<vmem>>, vector<8x8xf32>
    tpu.vector_store %arg18[%c0_87, %c8_88], %218 {strides = array<i32>} : memref<16x32xf32, #tpu.memory_space<vmem>>, vector<8x8xf32>,
    %c0_89 = arith.constant 0 : index
    %c8_90 = arith.constant 8 : index
    %220 = vector.load %arg17[%c0_89, %c8_90] : memref<16x64xf32, #tpu.memory_space<vmem>>, vector<8x8xf32>
    %c0_91 = arith.constant 0 : index
    %c24 = arith.constant 24 : index
    %221 = vector.load %arg17[%c0_91, %c24] : memref<16x64xf32, #tpu.memory_space<vmem>>, vector<8x8xf32>
    %c0_92 = arith.constant 0 : index
    %c48 = arith.constant 48 : index
    %222 = vector.load %arg17[%c0_92, %c48] : memref<16x64xf32, #tpu.memory_space<vmem>>, vector<8x8xf32>
    %c0_93 = arith.constant 0 : index
    %c98 = arith.constant 98 : index
    %223 = vector.load %arg16[%c0_93, %c98] : memref<16x192xf32, #tpu.memory_space<vmem>>, vector<8x1xf32>
    %c0_94 = arith.constant 0 : index
    %c2_95 = arith.constant 2 : index
    %224 = vector.load %arg10[%c0_94, %c2_95] : memref<1x4xf32, #tpu.memory_space<vmem>>, vector<1x1xf32>
    %225 = vector.broadcast %224 : vector<1x1xf32> to vector<8x1xf32>
    %226 = arith.addf %223, %225 : vector<8x1xf32>
    %cst_96 = arith.constant 0.000000e+00 : f32
    %227 = vector.broadcast %cst_96 : f32 to vector<8x1xf32>
    %228 = arith.maximumf %226, %227 : vector<8x1xf32>
    %229 = vector.broadcast %cst_96 : f32 to vector<8x1xf32>
    %230 = arith.subf %226, %229 : vector<8x1xf32>
    %231 = arith.cmpf one, %230, %230 : vector<8x1xf32>
    %232 = vector.broadcast %cst_96 : f32 to vector<8x1xf32>
    %233 = arith.addf %226, %232 : vector<8x1xf32>
    %234 = math.absf %230 : vector<8x1xf32>
    %cst_97 = arith.constant 0.000000e+00 : f32
    %235 = vector.broadcast %cst_97 : f32 to vector<8x1xf32>
    %236 = arith.subf %235, %234 : vector<8x1xf32>
    %237 = math.exp %236 : vector<8x1xf32>
    %238 = math.log1p %237 : vector<8x1xf32>
    %239 = arith.addf %228, %238 : vector<8x1xf32>
    %240 = arith.select %231, %233, %239 : vector<8x1xi1>, vector<8x1xf32>
    %c0_98 = arith.constant 0 : index
    %c2_99 = arith.constant 2 : index
    %241 = vector.load %arg8[%c0_98, %c2_99] : memref<1x4xf32, #tpu.memory_space<vmem>>, vector<1x1xf32>
    %c0_100 = arith.constant 0 : index
    %c2_101 = arith.constant 2 : index
    %242 = vector.load %arg9[%c0_100, %c2_101] : memref<1x4xf32, #tpu.memory_space<vmem>>, vector<1x1xf32>
    %243 = vector.broadcast %240 : vector<8x1xf32> to vector<8x8xf32>
    %244 = arith.mulf %55, %243 : vector<8x8xf32>
    %cst_102 = arith.constant dense<0.000000e+00> : vector<8xf32>
    %245 = vector.multi_reduction <add>, %244, %cst_102 [0] : vector<8x8xf32> to vector<8xf32>
    %246 = vector.shape_cast %245 : vector<8xf32> to vector<1x8xf32>
    %247 = vector.broadcast %246 : vector<1x8xf32> to vector<8x8xf32>
    %248 = arith.mulf %52, %247 : vector<8x8xf32>
    %cst_103 = arith.constant dense<0.000000e+00> : vector<8xf32>
    %249 = vector.multi_reduction <add>, %248, %cst_103 [1] : vector<8x8xf32> to vector<8xf32>
    %250 = vector.shape_cast %249 : vector<8xf32> to vector<8x1xf32>
    %251 = vector.broadcast %250 : vector<8x1xf32> to vector<8x8xf32>
    %252 = arith.mulf %55, %251 : vector<8x8xf32>
    %cst_104 = arith.constant dense<0.000000e+00> : vector<8xf32>
    %253 = vector.multi_reduction <add>, %252, %cst_104 [0] : vector<8x8xf32> to vector<8xf32>
    %254 = vector.shape_cast %253 : vector<8xf32> to vector<1x8xf32>
    %255 = vector.broadcast %250 : vector<8x1xf32> to vector<8x8xf32>
    %256 = vector.broadcast %254 : vector<1x8xf32> to vector<8x8xf32>
    %257 = arith.subf %255, %256 : vector<8x8xf32>
    %258 = vector.broadcast %241 : vector<1x1xf32> to vector<8x8xf32>
    %259 = arith.mulf %258, %257 : vector<8x8xf32>
    %260 = math.exp %259 : vector<8x8xf32>
    %cst_105 = arith.constant 0.000000e+00 : f32
    %261 = vector.broadcast %cst_105 : f32 to vector<8x8xf32>
    %262 = arith.select %50, %260, %261 : vector<8x8xi1>, vector<8x8xf32>
    %cst_106 = arith.constant dense<0.000000e+00> : vector<8x8xf32>
    %263 = tpu.matmul %222, %221, %cst_106 {dimension_numbers = #tpu.dot_dimension_numbers<[1], [1], [0], [0], [0, 0, 1, 0], [], []>} : vector<8x8xf32>, vector<8x8xf32>, vector<8x8xf32> -> vector<8x8xf32>
    %264 = arith.mulf %263, %262 : vector<8x8xf32>
    %265 = vector.broadcast %246 : vector<1x8xf32> to vector<8x8xf32>
    %266 = arith.mulf %264, %265 : vector<8x8xf32>
    %cst_107 = arith.constant dense<0.000000e+00> : vector<8x8xf32>
    %267 = tpu.matmul %266, %220, %cst_107 {dimension_numbers = #tpu.dot_dimension_numbers<[1], [0], [0], [1], [0, 0, 1, 1], [], []>} : vector<8x8xf32>, vector<8x8xf32>, vector<8x8xf32> -> vector<8x8xf32>
    %268 = vector.broadcast %242 : vector<1x1xf32> to vector<8x8xf32>
    %269 = arith.mulf %268, %220 : vector<8x8xf32>
    %270 = arith.addf %267, %269 : vector<8x8xf32>
    %c0_108 = arith.constant 0 : index
    %c16_109 = arith.constant 16 : index
    %271 = vector.load %arg16[%c0_108, %c16_109] : memref<16x192xf32, #tpu.memory_space<vmem>>, vector<8x8xf32>
    %272 = arith.negf %271 : vector<8x8xf32>
    %273 = math.exp %272 : vector<8x8xf32>
    %cst_110 = arith.constant 1.000000e+00 : f32
    %274 = vector.broadcast %cst_110 : f32 to vector<8x8xf32>
    %275 = arith.addf %274, %273 : vector<8x8xf32>
    %276 = arith.divf %274, %275 : vector<8x8xf32>
    %277 = arith.mulf %271, %276 : vector<8x8xf32>
    %278 = arith.mulf %270, %277 : vector<8x8xf32>
    %c0_111 = arith.constant 0 : index
    %c16_112 = arith.constant 16 : index
    %279 = vector.load %arg18[%c0_111, %c16_112] : memref<16x32xf32, #tpu.memory_space<vmem>>, vector<8x8xf32>
    tpu.vector_store %arg18[%c0_111, %c16_112], %278 {strides = array<i32>} : memref<16x32xf32, #tpu.memory_space<vmem>>, vector<8x8xf32>,
    %c0_113 = arith.constant 0 : index
    %c8_114 = arith.constant 8 : index
    %280 = vector.load %arg17[%c0_113, %c8_114] : memref<16x64xf32, #tpu.memory_space<vmem>>, vector<8x8xf32>
    %c0_115 = arith.constant 0 : index
    %c24_116 = arith.constant 24 : index
    %281 = vector.load %arg17[%c0_115, %c24_116] : memref<16x64xf32, #tpu.memory_space<vmem>>, vector<8x8xf32>
    %c0_117 = arith.constant 0 : index
    %c56 = arith.constant 56 : index
    %282 = vector.load %arg17[%c0_117, %c56] : memref<16x64xf32, #tpu.memory_space<vmem>>, vector<8x8xf32>
    %c0_118 = arith.constant 0 : index
    %c99 = arith.constant 99 : index
    %283 = vector.load %arg16[%c0_118, %c99] : memref<16x192xf32, #tpu.memory_space<vmem>>, vector<8x1xf32>
    %c0_119 = arith.constant 0 : index
    %c3_120 = arith.constant 3 : index
    %284 = vector.load %arg10[%c0_119, %c3_120] : memref<1x4xf32, #tpu.memory_space<vmem>>, vector<1x1xf32>
    %285 = vector.broadcast %284 : vector<1x1xf32> to vector<8x1xf32>
    %286 = arith.addf %283, %285 : vector<8x1xf32>
    %cst_121 = arith.constant 0.000000e+00 : f32
    %287 = vector.broadcast %cst_121 : f32 to vector<8x1xf32>
    %288 = arith.maximumf %286, %287 : vector<8x1xf32>
    %289 = vector.broadcast %cst_121 : f32 to vector<8x1xf32>
    %290 = arith.subf %286, %289 : vector<8x1xf32>
    %291 = arith.cmpf one, %290, %290 : vector<8x1xf32>
    %292 = vector.broadcast %cst_121 : f32 to vector<8x1xf32>
    %293 = arith.addf %286, %292 : vector<8x1xf32>
    %294 = math.absf %290 : vector<8x1xf32>
    %cst_122 = arith.constant 0.000000e+00 : f32
    %295 = vector.broadcast %cst_122 : f32 to vector<8x1xf32>
    %296 = arith.subf %295, %294 : vector<8x1xf32>
    %297 = math.exp %296 : vector<8x1xf32>
    %298 = math.log1p %297 : vector<8x1xf32>
    %299 = arith.addf %288, %298 : vector<8x1xf32>
    %300 = arith.select %291, %293, %299 : vector<8x1xi1>, vector<8x1xf32>
    %c0_123 = arith.constant 0 : index
    %c3_124 = arith.constant 3 : index
    %301 = vector.load %arg8[%c0_123, %c3_124] : memref<1x4xf32, #tpu.memory_space<vmem>>, vector<1x1xf32>
    %c0_125 = arith.constant 0 : index
    %c3_126 = arith.constant 3 : index
    %302 = vector.load %arg9[%c0_125, %c3_126] : memref<1x4xf32, #tpu.memory_space<vmem>>, vector<1x1xf32>
    %303 = vector.broadcast %300 : vector<8x1xf32> to vector<8x8xf32>
    %304 = arith.mulf %55, %303 : vector<8x8xf32>
    %cst_127 = arith.constant dense<0.000000e+00> : vector<8xf32>
    %305 = vector.multi_reduction <add>, %304, %cst_127 [0] : vector<8x8xf32> to vector<8xf32>
    %306 = vector.shape_cast %305 : vector<8xf32> to vector<1x8xf32>
    %307 = vector.broadcast %306 : vector<1x8xf32> to vector<8x8xf32>
    %308 = arith.mulf %52, %307 : vector<8x8xf32>
    %cst_128 = arith.constant dense<0.000000e+00> : vector<8xf32>
    %309 = vector.multi_reduction <add>, %308, %cst_128 [1] : vector<8x8xf32> to vector<8xf32>
    %310 = vector.shape_cast %309 : vector<8xf32> to vector<8x1xf32>
    %311 = vector.broadcast %310 : vector<8x1xf32> to vector<8x8xf32>
    %312 = arith.mulf %55, %311 : vector<8x8xf32>
    %cst_129 = arith.constant dense<0.000000e+00> : vector<8xf32>
    %313 = vector.multi_reduction <add>, %312, %cst_129 [0] : vector<8x8xf32> to vector<8xf32>
    %314 = vector.shape_cast %313 : vector<8xf32> to vector<1x8xf32>
    %315 = vector.broadcast %310 : vector<8x1xf32> to vector<8x8xf32>
    %316 = vector.broadcast %314 : vector<1x8xf32> to vector<8x8xf32>
    %317 = arith.subf %315, %316 : vector<8x8xf32>
    %318 = vector.broadcast %301 : vector<1x1xf32> to vector<8x8xf32>
    %319 = arith.mulf %318, %317 : vector<8x8xf32>
    %320 = math.exp %319 : vector<8x8xf32>
    %cst_130 = arith.constant 0.000000e+00 : f32
    %321 = vector.broadcast %cst_130 : f32 to vector<8x8xf32>
    %322 = arith.select %50, %320, %321 : vector<8x8xi1>, vector<8x8xf32>
    %cst_131 = arith.constant dense<0.000000e+00> : vector<8x8xf32>
    %323 = tpu.matmul %282, %281, %cst_131 {dimension_numbers = #tpu.dot_dimension_numbers<[1], [1], [0], [0], [0, 0, 1, 0], [], []>} : vector<8x8xf32>, vector<8x8xf32>, vector<8x8xf32> -> vector<8x8xf32>
    %324 = arith.mulf %323, %322 : vector<8x8xf32>
    %325 = vector.broadcast %306 : vector<1x8xf32> to vector<8x8xf32>
    %326 = arith.mulf %324, %325 : vector<8x8xf32>
    %cst_132 = arith.constant dense<0.000000e+00> : vector<8x8xf32>
    %327 = tpu.matmul %326, %280, %cst_132 {dimension_numbers = #tpu.dot_dimension_numbers<[1], [0], [0], [1], [0, 0, 1, 1], [], []>} : vector<8x8xf32>, vector<8x8xf32>, vector<8x8xf32> -> vector<8x8xf32>
    %328 = vector.broadcast %302 : vector<1x1xf32> to vector<8x8xf32>
    %329 = arith.mulf %328, %280 : vector<8x8xf32>
    %330 = arith.addf %327, %329 : vector<8x8xf32>
    %c0_133 = arith.constant 0 : index
    %c24_134 = arith.constant 24 : index
    %331 = vector.load %arg16[%c0_133, %c24_134] : memref<16x192xf32, #tpu.memory_space<vmem>>, vector<8x8xf32>
    %332 = arith.negf %331 : vector<8x8xf32>
    %333 = math.exp %332 : vector<8x8xf32>
    %cst_135 = arith.constant 1.000000e+00 : f32
    %334 = vector.broadcast %cst_135 : f32 to vector<8x8xf32>
    %335 = arith.addf %334, %333 : vector<8x8xf32>
    %336 = arith.divf %334, %335 : vector<8x8xf32>
    %337 = arith.mulf %331, %336 : vector<8x8xf32>
    %338 = arith.mulf %330, %337 : vector<8x8xf32>
    %c0_136 = arith.constant 0 : index
    %c24_137 = arith.constant 24 : index
    %339 = vector.load %arg18[%c0_136, %c24_137] : memref<16x32xf32, #tpu.memory_space<vmem>>, vector<8x8xf32>
    tpu.vector_store %arg18[%c0_136, %c24_137], %338 {strides = array<i32>} : memref<16x32xf32, #tpu.memory_space<vmem>>, vector<8x8xf32>,
    %c0_138 = arith.constant 0 : index
    %c0_139 = arith.constant 0 : index
    %340 = vector.load %arg18[%c0_138, %c0_139] : memref<16x32xf32, #tpu.memory_space<vmem>>, vector<8x32xf32>
    %341 = arith.mulf %340, %340 : vector<8x32xf32>
    %cst_140 = arith.constant dense<0.000000e+00> : vector<8xf32>
    %342 = vector.multi_reduction <add>, %341, %cst_140 [1] : vector<8x32xf32> to vector<8xf32>
    %343 = vector.shape_cast %342 : vector<8xf32> to vector<8x1xf32>
    %cst_141 = arith.constant 3.200000e+01 : f32
    %344 = vector.broadcast %cst_141 : f32 to vector<8x1xf32>
    %345 = arith.divf %343, %344 : vector<8x1xf32>
    %cst_142 = arith.constant 9.99999974E-6 : f32
    %346 = vector.broadcast %cst_142 : f32 to vector<8x1xf32>
    %347 = arith.addf %345, %346 : vector<8x1xf32>
    %348 = math.rsqrt %347 : vector<8x1xf32>
    %349 = vector.broadcast %348 : vector<8x1xf32> to vector<8x32xf32>
    %350 = arith.mulf %340, %349 : vector<8x32xf32>
    %c0_143 = arith.constant 0 : index
    %c0_144 = arith.constant 0 : index
    %351 = vector.load %arg11[%c0_143, %c0_144] : memref<1x32xf32, #tpu.memory_space<vmem>>, vector<1x32xf32>
    %352 = vector.broadcast %351 : vector<1x32xf32> to vector<8x32xf32>
    %353 = arith.mulf %350, %352 : vector<8x32xf32>
    %c0_145 = arith.constant 0 : index
    %c0_146 = arith.constant 0 : index
    %354 = vector.load %arg12[%c0_145, %c0_146] : memref<32x32xf32, #tpu.memory_space<vmem>>, vector<32x32xf32>
    %cst_147 = arith.constant dense<0.000000e+00> : vector<8x32xf32>
    %355 = tpu.matmul %353, %354, %cst_147 {dimension_numbers = #tpu.dot_dimension_numbers<[1], [0], [0], [1], [0, 0, 1, 1], [], []>} : vector<8x32xf32>, vector<32x32xf32>, vector<8x32xf32> -> vector<8x32xf32>
    %356 = vector.extract_strided_slice %47 {offsets = [0, 0], sizes = [8, 32], strides = [1, 1]} : vector<16x32xf32> to vector<8x32xf32>
    %357 = arith.addf %355, %356 : vector<8x32xf32>
    %358 = vector.extract_strided_slice %0 {offsets = [0, 0], sizes = [8, 32], strides = [1, 1]} : vector<16x32xf32> to vector<8x32xf32>
    %359 = arith.addf %357, %358 : vector<8x32xf32>
    %c0_148 = arith.constant 0 : index
    %c0_149 = arith.constant 0 : index
    %360 = vector.load %arg15[%c0_148, %c0_149] : memref<16x32xf32, #tpu.memory_space<vmem>>, vector<8x32xf32>
    tpu.vector_store %arg15[%c0_148, %c0_149], %359 {strides = array<i32>} : memref<16x32xf32, #tpu.memory_space<vmem>>, vector<8x32xf32>,
    %c8_150 = arith.constant 8 : index
    %c32_151 = arith.constant 32 : index
    %361 = vector.load %arg16[%c8_150, %c32_151] : memref<16x192xf32, #tpu.memory_space<vmem>>, vector<8x64xf32>
    %c3_152 = arith.constant 3 : index
    %c0_153 = arith.constant 0 : index
    %362 = vector.load %arg6[%c3_152, %c0_153] : memref<4x64xf32, #tpu.memory_space<vmem>>, vector<1x64xf32>
    %363 = vector.broadcast %362 : vector<1x64xf32> to vector<8x64xf32>
    %364 = arith.mulf %361, %363 : vector<8x64xf32>
    %365 = arith.subi %48, %49 : vector<8x8xi32>
    %c3_i32_154 = arith.constant 3 : i32
    %366 = vector.broadcast %c3_i32_154 : i32 to vector<8x8xi32>
    %367 = arith.cmpi eq, %365, %366 : vector<8x8xi32>
    %368 = arith.extui %367 : vector<8x8xi1> to vector<8x8xi32>
    %369 = arith.sitofp %368 : vector<8x8xi32> to vector<8x8xf32>
    %cst_155 = arith.constant dense<0.000000e+00> : vector<8x64xf32>
    %370 = tpu.matmul %369, %361, %cst_155 {dimension_numbers = #tpu.dot_dimension_numbers<[1], [0], [0], [1], [0, 0, 1, 1], [], []>} : vector<8x8xf32>, vector<8x64xf32>, vector<8x64xf32> -> vector<8x64xf32>
    %c0_156 = arith.constant 0 : index
    %c0_157 = arith.constant 0 : index
    %371 = vector.load %arg6[%c0_156, %c0_157] : memref<4x64xf32, #tpu.memory_space<vmem>>, vector<1x64xf32>
    %372 = vector.broadcast %371 : vector<1x64xf32> to vector<8x64xf32>
    %373 = arith.mulf %370, %372 : vector<8x64xf32>
    %374 = arith.addf %364, %373 : vector<8x64xf32>
    %375 = arith.subi %48, %49 : vector<8x8xi32>
    %c2_i32_158 = arith.constant 2 : i32
    %376 = vector.broadcast %c2_i32_158 : i32 to vector<8x8xi32>
    %377 = arith.cmpi eq, %375, %376 : vector<8x8xi32>
    %378 = arith.extui %377 : vector<8x8xi1> to vector<8x8xi32>
    %379 = arith.sitofp %378 : vector<8x8xi32> to vector<8x8xf32>
    %cst_159 = arith.constant dense<0.000000e+00> : vector<8x64xf32>
    %380 = tpu.matmul %379, %361, %cst_159 {dimension_numbers = #tpu.dot_dimension_numbers<[1], [0], [0], [1], [0, 0, 1, 1], [], []>} : vector<8x8xf32>, vector<8x64xf32>, vector<8x64xf32> -> vector<8x64xf32>
    %c1_160 = arith.constant 1 : index
    %c0_161 = arith.constant 0 : index
    %381 = vector.load %arg6[%c1_160, %c0_161] : memref<4x64xf32, #tpu.memory_space<vmem>>, vector<1x64xf32>
    %382 = vector.broadcast %381 : vector<1x64xf32> to vector<8x64xf32>
    %383 = arith.mulf %380, %382 : vector<8x64xf32>
    %384 = arith.addf %374, %383 : vector<8x64xf32>
    %385 = arith.subi %48, %49 : vector<8x8xi32>
    %c1_i32_162 = arith.constant 1 : i32
    %386 = vector.broadcast %c1_i32_162 : i32 to vector<8x8xi32>
    %387 = arith.cmpi eq, %385, %386 : vector<8x8xi32>
    %388 = arith.extui %387 : vector<8x8xi1> to vector<8x8xi32>
    %389 = arith.sitofp %388 : vector<8x8xi32> to vector<8x8xf32>
    %cst_163 = arith.constant dense<0.000000e+00> : vector<8x64xf32>
    %390 = tpu.matmul %389, %361, %cst_163 {dimension_numbers = #tpu.dot_dimension_numbers<[1], [0], [0], [1], [0, 0, 1, 1], [], []>} : vector<8x8xf32>, vector<8x64xf32>, vector<8x64xf32> -> vector<8x64xf32>
    %c2_164 = arith.constant 2 : index
    %c0_165 = arith.constant 0 : index
    %391 = vector.load %arg6[%c2_164, %c0_165] : memref<4x64xf32, #tpu.memory_space<vmem>>, vector<1x64xf32>
    %392 = vector.broadcast %391 : vector<1x64xf32> to vector<8x64xf32>
    %393 = arith.mulf %390, %392 : vector<8x64xf32>
    %394 = arith.addf %384, %393 : vector<8x64xf32>
    %c0_166 = arith.constant 0 : index
    %c0_167 = arith.constant 0 : index
    %395 = vector.load %arg7[%c0_166, %c0_167] : memref<1x64xf32, #tpu.memory_space<vmem>>, vector<1x64xf32>
    %396 = vector.broadcast %395 : vector<1x64xf32> to vector<8x64xf32>
    %397 = arith.addf %394, %396 : vector<8x64xf32>
    %398 = arith.negf %397 : vector<8x64xf32>
    %399 = math.exp %398 : vector<8x64xf32>
    %cst_168 = arith.constant 1.000000e+00 : f32
    %400 = vector.broadcast %cst_168 : f32 to vector<8x64xf32>
    %401 = arith.addf %400, %399 : vector<8x64xf32>
    %402 = arith.divf %400, %401 : vector<8x64xf32>
    %403 = arith.mulf %397, %402 : vector<8x64xf32>
    %c8_169 = arith.constant 8 : index
    %c0_170 = arith.constant 0 : index
    %404 = vector.load %arg17[%c8_169, %c0_170] : memref<16x64xf32, #tpu.memory_space<vmem>>, vector<8x64xf32>
    tpu.vector_store %arg17[%c8_169, %c0_170], %403 {strides = array<i32>} : memref<16x64xf32, #tpu.memory_space<vmem>>, vector<8x64xf32>,
    %c8_171 = arith.constant 8 : index
    %c0_172 = arith.constant 0 : index
    %405 = vector.load %arg17[%c8_171, %c0_172] : memref<16x64xf32, #tpu.memory_space<vmem>>, vector<8x8xf32>
    %c8_173 = arith.constant 8 : index
    %c16_174 = arith.constant 16 : index
    %406 = vector.load %arg17[%c8_173, %c16_174] : memref<16x64xf32, #tpu.memory_space<vmem>>, vector<8x8xf32>
    %c8_175 = arith.constant 8 : index
    %c32_176 = arith.constant 32 : index
    %407 = vector.load %arg17[%c8_175, %c32_176] : memref<16x64xf32, #tpu.memory_space<vmem>>, vector<8x8xf32>
    %c8_177 = arith.constant 8 : index
    %c96_178 = arith.constant 96 : index
    %408 = vector.load %arg16[%c8_177, %c96_178] : memref<16x192xf32, #tpu.memory_space<vmem>>, vector<8x1xf32>
    %c0_179 = arith.constant 0 : index
    %c0_180 = arith.constant 0 : index
    %409 = vector.load %arg10[%c0_179, %c0_180] : memref<1x4xf32, #tpu.memory_space<vmem>>, vector<1x1xf32>
    %410 = vector.broadcast %409 : vector<1x1xf32> to vector<8x1xf32>
    %411 = arith.addf %408, %410 : vector<8x1xf32>
    %cst_181 = arith.constant 0.000000e+00 : f32
    %412 = vector.broadcast %cst_181 : f32 to vector<8x1xf32>
    %413 = arith.maximumf %411, %412 : vector<8x1xf32>
    %414 = vector.broadcast %cst_181 : f32 to vector<8x1xf32>
    %415 = arith.subf %411, %414 : vector<8x1xf32>
    %416 = arith.cmpf one, %415, %415 : vector<8x1xf32>
    %417 = vector.broadcast %cst_181 : f32 to vector<8x1xf32>
    %418 = arith.addf %411, %417 : vector<8x1xf32>
    %419 = math.absf %415 : vector<8x1xf32>
    %cst_182 = arith.constant 0.000000e+00 : f32
    %420 = vector.broadcast %cst_182 : f32 to vector<8x1xf32>
    %421 = arith.subf %420, %419 : vector<8x1xf32>
    %422 = math.exp %421 : vector<8x1xf32>
    %423 = math.log1p %422 : vector<8x1xf32>
    %424 = arith.addf %413, %423 : vector<8x1xf32>
    %425 = arith.select %416, %418, %424 : vector<8x1xi1>, vector<8x1xf32>
    %c0_183 = arith.constant 0 : index
    %c0_184 = arith.constant 0 : index
    %426 = vector.load %arg8[%c0_183, %c0_184] : memref<1x4xf32, #tpu.memory_space<vmem>>, vector<1x1xf32>
    %c0_185 = arith.constant 0 : index
    %c0_186 = arith.constant 0 : index
    %427 = vector.load %arg9[%c0_185, %c0_186] : memref<1x4xf32, #tpu.memory_space<vmem>>, vector<1x1xf32>
    %428 = vector.broadcast %425 : vector<8x1xf32> to vector<8x8xf32>
    %429 = arith.mulf %55, %428 : vector<8x8xf32>
    %cst_187 = arith.constant dense<0.000000e+00> : vector<8xf32>
    %430 = vector.multi_reduction <add>, %429, %cst_187 [0] : vector<8x8xf32> to vector<8xf32>
    %431 = vector.shape_cast %430 : vector<8xf32> to vector<1x8xf32>
    %432 = vector.broadcast %431 : vector<1x8xf32> to vector<8x8xf32>
    %433 = arith.mulf %52, %432 : vector<8x8xf32>
    %cst_188 = arith.constant dense<0.000000e+00> : vector<8xf32>
    %434 = vector.multi_reduction <add>, %433, %cst_188 [1] : vector<8x8xf32> to vector<8xf32>
    %435 = vector.shape_cast %434 : vector<8xf32> to vector<8x1xf32>
    %436 = vector.broadcast %435 : vector<8x1xf32> to vector<8x8xf32>
    %437 = arith.mulf %55, %436 : vector<8x8xf32>
    %cst_189 = arith.constant dense<0.000000e+00> : vector<8xf32>
    %438 = vector.multi_reduction <add>, %437, %cst_189 [0] : vector<8x8xf32> to vector<8xf32>
    %439 = vector.shape_cast %438 : vector<8xf32> to vector<1x8xf32>
    %440 = vector.broadcast %435 : vector<8x1xf32> to vector<8x8xf32>
    %441 = vector.broadcast %439 : vector<1x8xf32> to vector<8x8xf32>
    %442 = arith.subf %440, %441 : vector<8x8xf32>
    %443 = vector.broadcast %426 : vector<1x1xf32> to vector<8x8xf32>
    %444 = arith.mulf %443, %442 : vector<8x8xf32>
    %445 = math.exp %444 : vector<8x8xf32>
    %cst_190 = arith.constant 0.000000e+00 : f32
    %446 = vector.broadcast %cst_190 : f32 to vector<8x8xf32>
    %447 = arith.select %50, %445, %446 : vector<8x8xi1>, vector<8x8xf32>
    %cst_191 = arith.constant dense<0.000000e+00> : vector<8x8xf32>
    %448 = tpu.matmul %407, %406, %cst_191 {dimension_numbers = #tpu.dot_dimension_numbers<[1], [1], [0], [0], [0, 0, 1, 0], [], []>} : vector<8x8xf32>, vector<8x8xf32>, vector<8x8xf32> -> vector<8x8xf32>
    %449 = arith.mulf %448, %447 : vector<8x8xf32>
    %450 = vector.broadcast %431 : vector<1x8xf32> to vector<8x8xf32>
    %451 = arith.mulf %449, %450 : vector<8x8xf32>
    %cst_192 = arith.constant dense<0.000000e+00> : vector<8x8xf32>
    %452 = tpu.matmul %451, %405, %cst_192 {dimension_numbers = #tpu.dot_dimension_numbers<[1], [0], [0], [1], [0, 0, 1, 1], [], []>} : vector<8x8xf32>, vector<8x8xf32>, vector<8x8xf32> -> vector<8x8xf32>
    %453 = vector.broadcast %427 : vector<1x1xf32> to vector<8x8xf32>
    %454 = arith.mulf %453, %405 : vector<8x8xf32>
    %455 = arith.addf %452, %454 : vector<8x8xf32>
    %c8_193 = arith.constant 8 : index
    %c0_194 = arith.constant 0 : index
    %456 = vector.load %arg16[%c8_193, %c0_194] : memref<16x192xf32, #tpu.memory_space<vmem>>, vector<8x8xf32>
    %457 = arith.negf %456 : vector<8x8xf32>
    %458 = math.exp %457 : vector<8x8xf32>
    %cst_195 = arith.constant 1.000000e+00 : f32
    %459 = vector.broadcast %cst_195 : f32 to vector<8x8xf32>
    %460 = arith.addf %459, %458 : vector<8x8xf32>
    %461 = arith.divf %459, %460 : vector<8x8xf32>
    %462 = arith.mulf %456, %461 : vector<8x8xf32>
    %463 = arith.mulf %455, %462 : vector<8x8xf32>
    %c8_196 = arith.constant 8 : index
    %c0_197 = arith.constant 0 : index
    %464 = vector.load %arg18[%c8_196, %c0_197] : memref<16x32xf32, #tpu.memory_space<vmem>>, vector<8x8xf32>
    tpu.vector_store %arg18[%c8_196, %c0_197], %463 {strides = array<i32>} : memref<16x32xf32, #tpu.memory_space<vmem>>, vector<8x8xf32>,
    %c8_198 = arith.constant 8 : index
    %c0_199 = arith.constant 0 : index
    %465 = vector.load %arg17[%c8_198, %c0_199] : memref<16x64xf32, #tpu.memory_space<vmem>>, vector<8x8xf32>
    %c8_200 = arith.constant 8 : index
    %c16_201 = arith.constant 16 : index
    %466 = vector.load %arg17[%c8_200, %c16_201] : memref<16x64xf32, #tpu.memory_space<vmem>>, vector<8x8xf32>
    %c8_202 = arith.constant 8 : index
    %c40_203 = arith.constant 40 : index
    %467 = vector.load %arg17[%c8_202, %c40_203] : memref<16x64xf32, #tpu.memory_space<vmem>>, vector<8x8xf32>
    %c8_204 = arith.constant 8 : index
    %c97_205 = arith.constant 97 : index
    %468 = vector.load %arg16[%c8_204, %c97_205] : memref<16x192xf32, #tpu.memory_space<vmem>>, vector<8x1xf32>
    %c0_206 = arith.constant 0 : index
    %c1_207 = arith.constant 1 : index
    %469 = vector.load %arg10[%c0_206, %c1_207] : memref<1x4xf32, #tpu.memory_space<vmem>>, vector<1x1xf32>
    %470 = vector.broadcast %469 : vector<1x1xf32> to vector<8x1xf32>
    %471 = arith.addf %468, %470 : vector<8x1xf32>
    %cst_208 = arith.constant 0.000000e+00 : f32
    %472 = vector.broadcast %cst_208 : f32 to vector<8x1xf32>
    %473 = arith.maximumf %471, %472 : vector<8x1xf32>
    %474 = vector.broadcast %cst_208 : f32 to vector<8x1xf32>
    %475 = arith.subf %471, %474 : vector<8x1xf32>
    %476 = arith.cmpf one, %475, %475 : vector<8x1xf32>
    %477 = vector.broadcast %cst_208 : f32 to vector<8x1xf32>
    %478 = arith.addf %471, %477 : vector<8x1xf32>
    %479 = math.absf %475 : vector<8x1xf32>
    %cst_209 = arith.constant 0.000000e+00 : f32
    %480 = vector.broadcast %cst_209 : f32 to vector<8x1xf32>
    %481 = arith.subf %480, %479 : vector<8x1xf32>
    %482 = math.exp %481 : vector<8x1xf32>
    %483 = math.log1p %482 : vector<8x1xf32>
    %484 = arith.addf %473, %483 : vector<8x1xf32>
    %485 = arith.select %476, %478, %484 : vector<8x1xi1>, vector<8x1xf32>
    %c0_210 = arith.constant 0 : index
    %c1_211 = arith.constant 1 : index
    %486 = vector.load %arg8[%c0_210, %c1_211] : memref<1x4xf32, #tpu.memory_space<vmem>>, vector<1x1xf32>
    %c0_212 = arith.constant 0 : index
    %c1_213 = arith.constant 1 : index
    %487 = vector.load %arg9[%c0_212, %c1_213] : memref<1x4xf32, #tpu.memory_space<vmem>>, vector<1x1xf32>
    %488 = vector.broadcast %485 : vector<8x1xf32> to vector<8x8xf32>
    %489 = arith.mulf %55, %488 : vector<8x8xf32>
    %cst_214 = arith.constant dense<0.000000e+00> : vector<8xf32>
    %490 = vector.multi_reduction <add>, %489, %cst_214 [0] : vector<8x8xf32> to vector<8xf32>
    %491 = vector.shape_cast %490 : vector<8xf32> to vector<1x8xf32>
    %492 = vector.broadcast %491 : vector<1x8xf32> to vector<8x8xf32>
    %493 = arith.mulf %52, %492 : vector<8x8xf32>
    %cst_215 = arith.constant dense<0.000000e+00> : vector<8xf32>
    %494 = vector.multi_reduction <add>, %493, %cst_215 [1] : vector<8x8xf32> to vector<8xf32>
    %495 = vector.shape_cast %494 : vector<8xf32> to vector<8x1xf32>
    %496 = vector.broadcast %495 : vector<8x1xf32> to vector<8x8xf32>
    %497 = arith.mulf %55, %496 : vector<8x8xf32>
    %cst_216 = arith.constant dense<0.000000e+00> : vector<8xf32>
    %498 = vector.multi_reduction <add>, %497, %cst_216 [0] : vector<8x8xf32> to vector<8xf32>
    %499 = vector.shape_cast %498 : vector<8xf32> to vector<1x8xf32>
    %500 = vector.broadcast %495 : vector<8x1xf32> to vector<8x8xf32>
    %501 = vector.broadcast %499 : vector<1x8xf32> to vector<8x8xf32>
    %502 = arith.subf %500, %501 : vector<8x8xf32>
    %503 = vector.broadcast %486 : vector<1x1xf32> to vector<8x8xf32>
    %504 = arith.mulf %503, %502 : vector<8x8xf32>
    %505 = math.exp %504 : vector<8x8xf32>
    %cst_217 = arith.constant 0.000000e+00 : f32
    %506 = vector.broadcast %cst_217 : f32 to vector<8x8xf32>
    %507 = arith.select %50, %505, %506 : vector<8x8xi1>, vector<8x8xf32>
    %cst_218 = arith.constant dense<0.000000e+00> : vector<8x8xf32>
    %508 = tpu.matmul %467, %466, %cst_218 {dimension_numbers = #tpu.dot_dimension_numbers<[1], [1], [0], [0], [0, 0, 1, 0], [], []>} : vector<8x8xf32>, vector<8x8xf32>, vector<8x8xf32> -> vector<8x8xf32>
    %509 = arith.mulf %508, %507 : vector<8x8xf32>
    %510 = vector.broadcast %491 : vector<1x8xf32> to vector<8x8xf32>
    %511 = arith.mulf %509, %510 : vector<8x8xf32>
    %cst_219 = arith.constant dense<0.000000e+00> : vector<8x8xf32>
    %512 = tpu.matmul %511, %465, %cst_219 {dimension_numbers = #tpu.dot_dimension_numbers<[1], [0], [0], [1], [0, 0, 1, 1], [], []>} : vector<8x8xf32>, vector<8x8xf32>, vector<8x8xf32> -> vector<8x8xf32>
    %513 = vector.broadcast %487 : vector<1x1xf32> to vector<8x8xf32>
    %514 = arith.mulf %513, %465 : vector<8x8xf32>
    %515 = arith.addf %512, %514 : vector<8x8xf32>
    %c8_220 = arith.constant 8 : index
    %c8_221 = arith.constant 8 : index
    %516 = vector.load %arg16[%c8_220, %c8_221] : memref<16x192xf32, #tpu.memory_space<vmem>>, vector<8x8xf32>
    %517 = arith.negf %516 : vector<8x8xf32>
    %518 = math.exp %517 : vector<8x8xf32>
    %cst_222 = arith.constant 1.000000e+00 : f32
    %519 = vector.broadcast %cst_222 : f32 to vector<8x8xf32>
    %520 = arith.addf %519, %518 : vector<8x8xf32>
    %521 = arith.divf %519, %520 : vector<8x8xf32>
    %522 = arith.mulf %516, %521 : vector<8x8xf32>
    %523 = arith.mulf %515, %522 : vector<8x8xf32>
    %c8_223 = arith.constant 8 : index
    %c8_224 = arith.constant 8 : index
    %524 = vector.load %arg18[%c8_223, %c8_224] : memref<16x32xf32, #tpu.memory_space<vmem>>, vector<8x8xf32>
    tpu.vector_store %arg18[%c8_223, %c8_224], %523 {strides = array<i32>} : memref<16x32xf32, #tpu.memory_space<vmem>>, vector<8x8xf32>,
    %c8_225 = arith.constant 8 : index
    %c8_226 = arith.constant 8 : index
    %525 = vector.load %arg17[%c8_225, %c8_226] : memref<16x64xf32, #tpu.memory_space<vmem>>, vector<8x8xf32>
    %c8_227 = arith.constant 8 : index
    %c24_228 = arith.constant 24 : index
    %526 = vector.load %arg17[%c8_227, %c24_228] : memref<16x64xf32, #tpu.memory_space<vmem>>, vector<8x8xf32>
    %c8_229 = arith.constant 8 : index
    %c48_230 = arith.constant 48 : index
    %527 = vector.load %arg17[%c8_229, %c48_230] : memref<16x64xf32, #tpu.memory_space<vmem>>, vector<8x8xf32>
    %c8_231 = arith.constant 8 : index
    %c98_232 = arith.constant 98 : index
    %528 = vector.load %arg16[%c8_231, %c98_232] : memref<16x192xf32, #tpu.memory_space<vmem>>, vector<8x1xf32>
    %c0_233 = arith.constant 0 : index
    %c2_234 = arith.constant 2 : index
    %529 = vector.load %arg10[%c0_233, %c2_234] : memref<1x4xf32, #tpu.memory_space<vmem>>, vector<1x1xf32>
    %530 = vector.broadcast %529 : vector<1x1xf32> to vector<8x1xf32>
    %531 = arith.addf %528, %530 : vector<8x1xf32>
    %cst_235 = arith.constant 0.000000e+00 : f32
    %532 = vector.broadcast %cst_235 : f32 to vector<8x1xf32>
    %533 = arith.maximumf %531, %532 : vector<8x1xf32>
    %534 = vector.broadcast %cst_235 : f32 to vector<8x1xf32>
    %535 = arith.subf %531, %534 : vector<8x1xf32>
    %536 = arith.cmpf one, %535, %535 : vector<8x1xf32>
    %537 = vector.broadcast %cst_235 : f32 to vector<8x1xf32>
    %538 = arith.addf %531, %537 : vector<8x1xf32>
    %539 = math.absf %535 : vector<8x1xf32>
    %cst_236 = arith.constant 0.000000e+00 : f32
    %540 = vector.broadcast %cst_236 : f32 to vector<8x1xf32>
    %541 = arith.subf %540, %539 : vector<8x1xf32>
    %542 = math.exp %541 : vector<8x1xf32>
    %543 = math.log1p %542 : vector<8x1xf32>
    %544 = arith.addf %533, %543 : vector<8x1xf32>
    %545 = arith.select %536, %538, %544 : vector<8x1xi1>, vector<8x1xf32>
    %c0_237 = arith.constant 0 : index
    %c2_238 = arith.constant 2 : index
    %546 = vector.load %arg8[%c0_237, %c2_238] : memref<1x4xf32, #tpu.memory_space<vmem>>, vector<1x1xf32>
    %c0_239 = arith.constant 0 : index
    %c2_240 = arith.constant 2 : index
    %547 = vector.load %arg9[%c0_239, %c2_240] : memref<1x4xf32, #tpu.memory_space<vmem>>, vector<1x1xf32>
    %548 = vector.broadcast %545 : vector<8x1xf32> to vector<8x8xf32>
    %549 = arith.mulf %55, %548 : vector<8x8xf32>
    %cst_241 = arith.constant dense<0.000000e+00> : vector<8xf32>
    %550 = vector.multi_reduction <add>, %549, %cst_241 [0] : vector<8x8xf32> to vector<8xf32>
    %551 = vector.shape_cast %550 : vector<8xf32> to vector<1x8xf32>
    %552 = vector.broadcast %551 : vector<1x8xf32> to vector<8x8xf32>
    %553 = arith.mulf %52, %552 : vector<8x8xf32>
    %cst_242 = arith.constant dense<0.000000e+00> : vector<8xf32>
    %554 = vector.multi_reduction <add>, %553, %cst_242 [1] : vector<8x8xf32> to vector<8xf32>
    %555 = vector.shape_cast %554 : vector<8xf32> to vector<8x1xf32>
    %556 = vector.broadcast %555 : vector<8x1xf32> to vector<8x8xf32>
    %557 = arith.mulf %55, %556 : vector<8x8xf32>
    %cst_243 = arith.constant dense<0.000000e+00> : vector<8xf32>
    %558 = vector.multi_reduction <add>, %557, %cst_243 [0] : vector<8x8xf32> to vector<8xf32>
    %559 = vector.shape_cast %558 : vector<8xf32> to vector<1x8xf32>
    %560 = vector.broadcast %555 : vector<8x1xf32> to vector<8x8xf32>
    %561 = vector.broadcast %559 : vector<1x8xf32> to vector<8x8xf32>
    %562 = arith.subf %560, %561 : vector<8x8xf32>
    %563 = vector.broadcast %546 : vector<1x1xf32> to vector<8x8xf32>
    %564 = arith.mulf %563, %562 : vector<8x8xf32>
    %565 = math.exp %564 : vector<8x8xf32>
    %cst_244 = arith.constant 0.000000e+00 : f32
    %566 = vector.broadcast %cst_244 : f32 to vector<8x8xf32>
    %567 = arith.select %50, %565, %566 : vector<8x8xi1>, vector<8x8xf32>
    %cst_245 = arith.constant dense<0.000000e+00> : vector<8x8xf32>
    %568 = tpu.matmul %527, %526, %cst_245 {dimension_numbers = #tpu.dot_dimension_numbers<[1], [1], [0], [0], [0, 0, 1, 0], [], []>} : vector<8x8xf32>, vector<8x8xf32>, vector<8x8xf32> -> vector<8x8xf32>
    %569 = arith.mulf %568, %567 : vector<8x8xf32>
    %570 = vector.broadcast %551 : vector<1x8xf32> to vector<8x8xf32>
    %571 = arith.mulf %569, %570 : vector<8x8xf32>
    %cst_246 = arith.constant dense<0.000000e+00> : vector<8x8xf32>
    %572 = tpu.matmul %571, %525, %cst_246 {dimension_numbers = #tpu.dot_dimension_numbers<[1], [0], [0], [1], [0, 0, 1, 1], [], []>} : vector<8x8xf32>, vector<8x8xf32>, vector<8x8xf32> -> vector<8x8xf32>
    %573 = vector.broadcast %547 : vector<1x1xf32> to vector<8x8xf32>
    %574 = arith.mulf %573, %525 : vector<8x8xf32>
    %575 = arith.addf %572, %574 : vector<8x8xf32>
    %c8_247 = arith.constant 8 : index
    %c16_248 = arith.constant 16 : index
    %576 = vector.load %arg16[%c8_247, %c16_248] : memref<16x192xf32, #tpu.memory_space<vmem>>, vector<8x8xf32>
    %577 = arith.negf %576 : vector<8x8xf32>
    %578 = math.exp %577 : vector<8x8xf32>
    %cst_249 = arith.constant 1.000000e+00 : f32
    %579 = vector.broadcast %cst_249 : f32 to vector<8x8xf32>
    %580 = arith.addf %579, %578 : vector<8x8xf32>
    %581 = arith.divf %579, %580 : vector<8x8xf32>
    %582 = arith.mulf %576, %581 : vector<8x8xf32>
    %583 = arith.mulf %575, %582 : vector<8x8xf32>
    %c8_250 = arith.constant 8 : index
    %c16_251 = arith.constant 16 : index
    %584 = vector.load %arg18[%c8_250, %c16_251] : memref<16x32xf32, #tpu.memory_space<vmem>>, vector<8x8xf32>
    tpu.vector_store %arg18[%c8_250, %c16_251], %583 {strides = array<i32>} : memref<16x32xf32, #tpu.memory_space<vmem>>, vector<8x8xf32>,
    %c8_252 = arith.constant 8 : index
    %c8_253 = arith.constant 8 : index
    %585 = vector.load %arg17[%c8_252, %c8_253] : memref<16x64xf32, #tpu.memory_space<vmem>>, vector<8x8xf32>
    %c8_254 = arith.constant 8 : index
    %c24_255 = arith.constant 24 : index
    %586 = vector.load %arg17[%c8_254, %c24_255] : memref<16x64xf32, #tpu.memory_space<vmem>>, vector<8x8xf32>
    %c8_256 = arith.constant 8 : index
    %c56_257 = arith.constant 56 : index
    %587 = vector.load %arg17[%c8_256, %c56_257] : memref<16x64xf32, #tpu.memory_space<vmem>>, vector<8x8xf32>
    %c8_258 = arith.constant 8 : index
    %c99_259 = arith.constant 99 : index
    %588 = vector.load %arg16[%c8_258, %c99_259] : memref<16x192xf32, #tpu.memory_space<vmem>>, vector<8x1xf32>
    %c0_260 = arith.constant 0 : index
    %c3_261 = arith.constant 3 : index
    %589 = vector.load %arg10[%c0_260, %c3_261] : memref<1x4xf32, #tpu.memory_space<vmem>>, vector<1x1xf32>
    %590 = vector.broadcast %589 : vector<1x1xf32> to vector<8x1xf32>
    %591 = arith.addf %588, %590 : vector<8x1xf32>
    %cst_262 = arith.constant 0.000000e+00 : f32
    %592 = vector.broadcast %cst_262 : f32 to vector<8x1xf32>
    %593 = arith.maximumf %591, %592 : vector<8x1xf32>
    %594 = vector.broadcast %cst_262 : f32 to vector<8x1xf32>
    %595 = arith.subf %591, %594 : vector<8x1xf32>
    %596 = arith.cmpf one, %595, %595 : vector<8x1xf32>
    %597 = vector.broadcast %cst_262 : f32 to vector<8x1xf32>
    %598 = arith.addf %591, %597 : vector<8x1xf32>
    %599 = math.absf %595 : vector<8x1xf32>
    %cst_263 = arith.constant 0.000000e+00 : f32
    %600 = vector.broadcast %cst_263 : f32 to vector<8x1xf32>
    %601 = arith.subf %600, %599 : vector<8x1xf32>
    %602 = math.exp %601 : vector<8x1xf32>
    %603 = math.log1p %602 : vector<8x1xf32>
    %604 = arith.addf %593, %603 : vector<8x1xf32>
    %605 = arith.select %596, %598, %604 : vector<8x1xi1>, vector<8x1xf32>
    %c0_264 = arith.constant 0 : index
    %c3_265 = arith.constant 3 : index
    %606 = vector.load %arg8[%c0_264, %c3_265] : memref<1x4xf32, #tpu.memory_space<vmem>>, vector<1x1xf32>
    %c0_266 = arith.constant 0 : index
    %c3_267 = arith.constant 3 : index
    %607 = vector.load %arg9[%c0_266, %c3_267] : memref<1x4xf32, #tpu.memory_space<vmem>>, vector<1x1xf32>
    %608 = vector.broadcast %605 : vector<8x1xf32> to vector<8x8xf32>
    %609 = arith.mulf %55, %608 : vector<8x8xf32>
    %cst_268 = arith.constant dense<0.000000e+00> : vector<8xf32>
    %610 = vector.multi_reduction <add>, %609, %cst_268 [0] : vector<8x8xf32> to vector<8xf32>
    %611 = vector.shape_cast %610 : vector<8xf32> to vector<1x8xf32>
    %612 = vector.broadcast %611 : vector<1x8xf32> to vector<8x8xf32>
    %613 = arith.mulf %52, %612 : vector<8x8xf32>
    %cst_269 = arith.constant dense<0.000000e+00> : vector<8xf32>
    %614 = vector.multi_reduction <add>, %613, %cst_269 [1] : vector<8x8xf32> to vector<8xf32>
    %615 = vector.shape_cast %614 : vector<8xf32> to vector<8x1xf32>
    %616 = vector.broadcast %615 : vector<8x1xf32> to vector<8x8xf32>
    %617 = arith.mulf %55, %616 : vector<8x8xf32>
    %cst_270 = arith.constant dense<0.000000e+00> : vector<8xf32>
    %618 = vector.multi_reduction <add>, %617, %cst_270 [0] : vector<8x8xf32> to vector<8xf32>
    %619 = vector.shape_cast %618 : vector<8xf32> to vector<1x8xf32>
    %620 = vector.broadcast %615 : vector<8x1xf32> to vector<8x8xf32>
    %621 = vector.broadcast %619 : vector<1x8xf32> to vector<8x8xf32>
    %622 = arith.subf %620, %621 : vector<8x8xf32>
    %623 = vector.broadcast %606 : vector<1x1xf32> to vector<8x8xf32>
    %624 = arith.mulf %623, %622 : vector<8x8xf32>
    %625 = math.exp %624 : vector<8x8xf32>
    %cst_271 = arith.constant 0.000000e+00 : f32
    %626 = vector.broadcast %cst_271 : f32 to vector<8x8xf32>
    %627 = arith.select %50, %625, %626 : vector<8x8xi1>, vector<8x8xf32>
    %cst_272 = arith.constant dense<0.000000e+00> : vector<8x8xf32>
    %628 = tpu.matmul %587, %586, %cst_272 {dimension_numbers = #tpu.dot_dimension_numbers<[1], [1], [0], [0], [0, 0, 1, 0], [], []>} : vector<8x8xf32>, vector<8x8xf32>, vector<8x8xf32> -> vector<8x8xf32>
    %629 = arith.mulf %628, %627 : vector<8x8xf32>
    %630 = vector.broadcast %611 : vector<1x8xf32> to vector<8x8xf32>
    %631 = arith.mulf %629, %630 : vector<8x8xf32>
    %cst_273 = arith.constant dense<0.000000e+00> : vector<8x8xf32>
    %632 = tpu.matmul %631, %585, %cst_273 {dimension_numbers = #tpu.dot_dimension_numbers<[1], [0], [0], [1], [0, 0, 1, 1], [], []>} : vector<8x8xf32>, vector<8x8xf32>, vector<8x8xf32> -> vector<8x8xf32>
    %633 = vector.broadcast %607 : vector<1x1xf32> to vector<8x8xf32>
    %634 = arith.mulf %633, %585 : vector<8x8xf32>
    %635 = arith.addf %632, %634 : vector<8x8xf32>
    %c8_274 = arith.constant 8 : index
    %c24_275 = arith.constant 24 : index
    %636 = vector.load %arg16[%c8_274, %c24_275] : memref<16x192xf32, #tpu.memory_space<vmem>>, vector<8x8xf32>
    %637 = arith.negf %636 : vector<8x8xf32>
    %638 = math.exp %637 : vector<8x8xf32>
    %cst_276 = arith.constant 1.000000e+00 : f32
    %639 = vector.broadcast %cst_276 : f32 to vector<8x8xf32>
    %640 = arith.addf %639, %638 : vector<8x8xf32>
    %641 = arith.divf %639, %640 : vector<8x8xf32>
    %642 = arith.mulf %636, %641 : vector<8x8xf32>
    %643 = arith.mulf %635, %642 : vector<8x8xf32>
    %c8_277 = arith.constant 8 : index
    %c24_278 = arith.constant 24 : index
    %644 = vector.load %arg18[%c8_277, %c24_278] : memref<16x32xf32, #tpu.memory_space<vmem>>, vector<8x8xf32>
    tpu.vector_store %arg18[%c8_277, %c24_278], %643 {strides = array<i32>} : memref<16x32xf32, #tpu.memory_space<vmem>>, vector<8x8xf32>,
    %c8_279 = arith.constant 8 : index
    %c0_280 = arith.constant 0 : index
    %645 = vector.load %arg18[%c8_279, %c0_280] : memref<16x32xf32, #tpu.memory_space<vmem>>, vector<8x32xf32>
    %646 = arith.mulf %645, %645 : vector<8x32xf32>
    %cst_281 = arith.constant dense<0.000000e+00> : vector<8xf32>
    %647 = vector.multi_reduction <add>, %646, %cst_281 [1] : vector<8x32xf32> to vector<8xf32>
    %648 = vector.shape_cast %647 : vector<8xf32> to vector<8x1xf32>
    %cst_282 = arith.constant 3.200000e+01 : f32
    %649 = vector.broadcast %cst_282 : f32 to vector<8x1xf32>
    %650 = arith.divf %648, %649 : vector<8x1xf32>
    %cst_283 = arith.constant 9.99999974E-6 : f32
    %651 = vector.broadcast %cst_283 : f32 to vector<8x1xf32>
    %652 = arith.addf %650, %651 : vector<8x1xf32>
    %653 = math.rsqrt %652 : vector<8x1xf32>
    %654 = vector.broadcast %653 : vector<8x1xf32> to vector<8x32xf32>
    %655 = arith.mulf %645, %654 : vector<8x32xf32>
    %c0_284 = arith.constant 0 : index
    %c0_285 = arith.constant 0 : index
    %656 = vector.load %arg11[%c0_284, %c0_285] : memref<1x32xf32, #tpu.memory_space<vmem>>, vector<1x32xf32>
    %657 = vector.broadcast %656 : vector<1x32xf32> to vector<8x32xf32>
    %658 = arith.mulf %655, %657 : vector<8x32xf32>
    %c0_286 = arith.constant 0 : index
    %c0_287 = arith.constant 0 : index
    %659 = vector.load %arg12[%c0_286, %c0_287] : memref<32x32xf32, #tpu.memory_space<vmem>>, vector<32x32xf32>
    %cst_288 = arith.constant dense<0.000000e+00> : vector<8x32xf32>
    %660 = tpu.matmul %658, %659, %cst_288 {dimension_numbers = #tpu.dot_dimension_numbers<[1], [0], [0], [1], [0, 0, 1, 1], [], []>} : vector<8x32xf32>, vector<32x32xf32>, vector<8x32xf32> -> vector<8x32xf32>
    %661 = vector.extract_strided_slice %47 {offsets = [8, 0], sizes = [8, 32], strides = [1, 1]} : vector<16x32xf32> to vector<8x32xf32>
    %662 = arith.addf %660, %661 : vector<8x32xf32>
    %663 = vector.extract_strided_slice %0 {offsets = [8, 0], sizes = [8, 32], strides = [1, 1]} : vector<16x32xf32> to vector<8x32xf32>
    %664 = arith.addf %662, %663 : vector<8x32xf32>
    %c8_289 = arith.constant 8 : index
    %c0_290 = arith.constant 0 : index
    %665 = vector.load %arg15[%c8_289, %c0_290] : memref<16x32xf32, #tpu.memory_space<vmem>>, vector<8x32xf32>
    tpu.vector_store %arg15[%c8_289, %c0_290], %664 {strides = array<i32>} : memref<16x32xf32, #tpu.memory_space<vmem>>, vector<8x32xf32>,
    return
  }
  func.func @transform_0(%arg0: i32) -> (i32, i32) {
    %c0_i32 = arith.constant 0 : i32
    %c0_i32_0 = arith.constant 0 : i32
    %c0_i32_1 = arith.constant 0 : i32
    return %c0_i32, %c0_i32_0 : i32, i32
  }
  func.func @transform_1(%arg0: i32) -> (i32, i32) {
    %c0_i32 = arith.constant 0 : i32
    %c0_i32_0 = arith.constant 0 : i32
    %c0_i32_1 = arith.constant 0 : i32
    return %c0_i32, %c0_i32_0 : i32, i32
  }
  func.func @transform_2(%arg0: i32) -> (i32, i32) {
    %c0_i32 = arith.constant 0 : i32
    %c0_i32_0 = arith.constant 0 : i32
    %c0_i32_1 = arith.constant 0 : i32
    return %c0_i32, %c0_i32_0 : i32, i32
  }
  func.func @transform_3(%arg0: i32) -> (i32, i32) {
    %c0_i32 = arith.constant 0 : i32
    %c0_i32_0 = arith.constant 0 : i32
    %c0_i32_1 = arith.constant 0 : i32
    return %c0_i32, %c0_i32_0 : i32, i32
  }
  func.func @transform_4(%arg0: i32) -> (i32, i32) {
    %c0_i32 = arith.constant 0 : i32
    %c0_i32_0 = arith.constant 0 : i32
    %c0_i32_1 = arith.constant 0 : i32
    return %c0_i32, %c0_i32_0 : i32, i32
  }
  func.func @transform_5(%arg0: i32) -> (i32, i32) {
    %c0_i32 = arith.constant 0 : i32
    %c0_i32_0 = arith.constant 0 : i32
    %c0_i32_1 = arith.constant 0 : i32
    return %c0_i32, %c0_i32_0 : i32, i32
  }
  func.func @transform_6(%arg0: i32) -> (i32, i32) {
    %c0_i32 = arith.constant 0 : i32
    %c0_i32_0 = arith.constant 0 : i32
    %c0_i32_1 = arith.constant 0 : i32
    return %c0_i32, %c0_i32_0 : i32, i32
  }
  func.func @transform_7(%arg0: i32) -> (i32, i32) {
    %c0_i32 = arith.constant 0 : i32
    %c0_i32_0 = arith.constant 0 : i32
    %c0_i32_1 = arith.constant 0 : i32
    return %c0_i32, %c0_i32_0 : i32, i32
  }
  func.func @transform_8(%arg0: i32) -> (i32, i32) {
    %c0_i32 = arith.constant 0 : i32
    %c0_i32_0 = arith.constant 0 : i32
    %c0_i32_1 = arith.constant 0 : i32
    return %c0_i32, %c0_i32_0 : i32, i32
  }
  func.func @transform_9(%arg0: i32) -> (i32, i32) {
    %c0_i32 = arith.constant 0 : i32
    %c0_i32_0 = arith.constant 0 : i32
    %c0_i32_1 = arith.constant 0 : i32
    return %c0_i32, %c0_i32_0 : i32, i32
  }
  func.func @transform_10(%arg0: i32) -> (i32, i32) {
    %c0_i32 = arith.constant 0 : i32
    %c0_i32_0 = arith.constant 0 : i32
    %c0_i32_1 = arith.constant 0 : i32
    return %c0_i32, %c0_i32_0 : i32, i32
  }
  func.func @transform_11(%arg0: i32) -> (i32, i32) {
    %c0_i32 = arith.constant 0 : i32
    %c0_i32_0 = arith.constant 0 : i32
    %c0_i32_1 = arith.constant 0 : i32
    return %c0_i32, %c0_i32_0 : i32, i32
  }
  func.func @transform_12(%arg0: i32) -> (i32, i32) {
    %c0_i32 = arith.constant 0 : i32
    %c0_i32_0 = arith.constant 0 : i32
    %c0_i32_1 = arith.constant 0 : i32
    return %c0_i32, %c0_i32_0 : i32, i32
  }
  func.func @transform_13(%arg0: i32) -> (i32, i32) {
    %c0_i32 = arith.constant 0 : i32
    %c0_i32_0 = arith.constant 0 : i32
    %c0_i32_1 = arith.constant 0 : i32
    return %c0_i32, %c0_i32_0 : i32, i32
  }
  func.func @transform_14(%arg0: i32) -> (i32, i32) {
    %c0_i32 = arith.constant 0 : i32
    %c0_i32_0 = arith.constant 0 : i32
    %c0_i32_1 = arith.constant 0 : i32
    return %c0_i32, %c0_i32_0 : i32, i32
  }
}

</mosaic_0001>

<llo_original>
// kernel: phi_mamba_decoder_layer.1
$region0: #{phi_mamba_decoder_layer.1}
  #allocation0 [shape = 'u32[]', space=smem, size = 0x4, offset = 0x4, fixed_abs, tag = 'smem constant byte address 0x4 - core index']
  #allocation1 [shape = 'u32[144,128]{1,0:T(1,128)}', space=vmem, size = 0x12000, scoped, tag = 'internal scratch']
  #allocation2 [shape = 'f32[16,192]{1,0:T(8,128)}', space=vmem, size = 0x4000, scoped, tag = 'scratch operand']
  #allocation3 [shape = 'f32[16,64]{1,0:T(8,128)}', space=vmem, size = 0x2000, scoped, tag = 'scratch operand']
  #allocation4 [shape = 'f32[16,32]{1,0:T(8,128)}', space=vmem, size = 0x2000, scoped, tag = 'scratch operand']
  %s0 = inlined_call_operand.vmem [shape: f32[16,32], index: 0, kind: input, shape index: {}]
  %s1 = inlined_call_operand.vmem [shape: f32[1,32], index: 1, kind: input, shape index: {}]
  %s2 = inlined_call_operand.vmem [shape: f32[1,32], index: 2, kind: input, shape index: {}]
  %s3 = inlined_call_operand.vmem [shape: f32[32,192], index: 3, kind: input, shape index: {}]
  %s4 = inlined_call_operand.vmem [shape: f32[1,192], index: 4, kind: input, shape index: {}]
  %s5 = inlined_call_operand.vmem [shape: f32[4,64], index: 5, kind: input, shape index: {}]
  %s6 = inlined_call_operand.vmem [shape: f32[1,64], index: 6, kind: input, shape index: {}]
  %s7 = inlined_call_operand.hbm [shape: f32[1,4], index: 7, kind: input, shape index: {}]
  %s8 = inlined_call_operand.hbm [shape: f32[1,4], index: 8, kind: input, shape index: {}]
  %s9 = inlined_call_operand.hbm [shape: f32[1,4], index: 9, kind: input, shape index: {}]
  %s10 = inlined_call_operand.hbm [shape: f32[1,32], index: 10, kind: input, shape index: {}]
  %s11 = inlined_call_operand.vmem [shape: f32[32,32], index: 11, kind: input, shape index: {}]
  %s12 = inlined_call_operand.vmem [shape: f32[64,32], index: 12, kind: input, shape index: {}]
  %s13 = inlined_call_operand.hbm [shape: f32[1,32], index: 13, kind: input, shape index: {}]
  %s14 = inlined_call_operand.hbm [shape: f32[16,32], index: 14, kind: output, shape index: {}]
  %s15 = sld [smem:[#allocation0]]
  $region86: #{phi_mamba_decoder_layer.1} parent=0
    _
  %s17 = ssub.s32 1, %s15
  %s18 = scalar_select 0, %s17, %s15
  $region1: #{phi_mamba_decoder_layer.1} parent=0
    #allocation5 [shape = 'u8[512]{0}', space=vmem, size = 0x400, scoped, tag = 'input window, operand 7, single buffered']
    #allocation6 [shape = 's32[1]{0}', space=sflag, size = 0x4, scoped, tag = 'scoped memory for phi_mamba_decoder_layer.1']
    #allocation7 [shape = 's32[1]{0}', space=sflag, size = 0x4, scoped, tag = 'scoped memory for phi_mamba_decoder_layer.1']
    #allocation8 [shape = 'u8[512]{0}', space=vmem, size = 0x400, scoped, tag = 'input window, operand 8, single buffered']
    #allocation9 [shape = 's32[1]{0}', space=sflag, size = 0x4, scoped, tag = 'scoped memory for phi_mamba_decoder_layer.1']
    #allocation10 [shape = 'u8[512]{0}', space=vmem, size = 0x400, scoped, tag = 'input window, operand 9, single buffered']
    #allocation11 [shape = 'u8[512]{0}', space=vmem, size = 0x400, scoped, tag = 'input window, operand 10, single buffered']
    #allocation12 [shape = 's32[1]{0}', space=sflag, size = 0x4, scoped, tag = 'scoped memory for phi_mamba_decoder_layer.1']
    #allocation13 [shape = 'u8[512]{0}', space=vmem, size = 0x400, scoped, tag = 'input window, operand 13, single buffered']
    #allocation14 [shape = 'u8[8192]{0}', space=vmem, size = 0x2000, scoped, tag = 'output window, operand 0, single buffered']
    %19 = vsyncpa [#allocation6], 0
    %20 = vsyncpa [#allocation9], 0
    %21 = vsyncpa [#allocation12], 0
    %22 = vsyncpa [#allocation7], 0
    // Predicated region
    $region2: #{phi_mamba_decoder_layer.1} parent=1 // pred_check
      _
    $region3: #{phi_mamba_decoder_layer.1} parent=1 // pred_check_branch
      %24 = sbr.rel (0) target = $region5
    $region4: #{phi_mamba_decoder_layer.1} parent=1 // pred_region
      _
    $region5: #{phi_mamba_decoder_layer.1} parent=1 // pred_fallthru
      _
    // Predicated region
    $region6: #{phi_mamba_decoder_layer.1} parent=1 // pred_check
      _
    $region7: #{phi_mamba_decoder_layer.1} parent=1 // pred_check_branch
      %26 = sbr.rel (0) target = $region9
    $region8: #{phi_mamba_decoder_layer.1} parent=1 // pred_region
      _
    $region9: #{phi_mamba_decoder_layer.1} parent=1 // pred_fallthru
      _
    // Predicated region
    $region10: #{phi_mamba_decoder_layer.1} parent=1 // pred_check
      _
    $region11: #{phi_mamba_decoder_layer.1} parent=1 // pred_check_branch
      %28 = sbr.rel (0) target = $region13
    $region12: #{phi_mamba_decoder_layer.1} parent=1 // pred_region
      _
    $region13: #{phi_mamba_decoder_layer.1} parent=1 // pred_fallthru
      _
    // Predicated region
    $region14: #{phi_mamba_decoder_layer.1} parent=1 // pred_check
      _
    $region15: #{phi_mamba_decoder_layer.1} parent=1 // pred_check_branch
      %30 = sbr.rel (0) target = $region17
    $region16: #{phi_mamba_decoder_layer.1} parent=1 // pred_region
      _
    $region17: #{phi_mamba_decoder_layer.1} parent=1 // pred_fallthru
      _
    // Predicated region
    $region18: #{phi_mamba_decoder_layer.1} parent=1 // pred_check
      _
    $region19: #{phi_mamba_decoder_layer.1} parent=1 // pred_check_branch
      %32 = sbr.rel (0) target = $region21
    $region20: #{phi_mamba_decoder_layer.1} parent=1 // pred_region
      _
    $region21: #{phi_mamba_decoder_layer.1} parent=1 // pred_fallthru
      _
    // Predicated region
    $region22: #{phi_mamba_decoder_layer.1} parent=1 // pred_check
      _
    $region23: #{phi_mamba_decoder_layer.1} parent=1 // pred_check_branch
      %34 = sbr.rel (0) target = $region25
    $region24: #{phi_mamba_decoder_layer.1} parent=1 // pred_region
      _
    $region25: #{phi_mamba_decoder_layer.1} parent=1 // pred_fallthru
      _
    // Predicated region
    $region26: #{phi_mamba_decoder_layer.1} parent=1 // pred_check
      _
    $region27: #{phi_mamba_decoder_layer.1} parent=1 // pred_check_branch
      %36 = sbr.rel (0) target = $region29
    $region28: #{phi_mamba_decoder_layer.1} parent=1 // pred_region
      _
    $region29: #{phi_mamba_decoder_layer.1} parent=1 // pred_fallthru
      _
    // Predicated region
    $region30: #{phi_mamba_decoder_layer.1} parent=1 // pred_check
      _
    $region31: #{phi_mamba_decoder_layer.1} parent=1 // pred_check_branch
      %38 = sbr.rel (0) target = $region33
    $region32: #{phi_mamba_decoder_layer.1} parent=1 // pred_region
      %s40 = ssub.s32 16, 16
      %41 = vsyncadd [#allocation6], %s40
      %s43 = sshll.u32 [#allocation5], 4
      %s44 = int_to_ptr.vmem [resolvable:$true] %s43
      %46 = dma.hbm_to_vmem [thread:$0]  %s7, 16, %s44, [#allocation6]
    $region33: #{phi_mamba_decoder_layer.1} parent=1 // pred_fallthru
      _
    // Predicated region
    $region34: #{phi_mamba_decoder_layer.1} parent=1 // pred_check
      _
    $region35: #{phi_mamba_decoder_layer.1} parent=1 // pred_check_branch
      %48 = sbr.rel (0) target = $region37
    $region36: #{phi_mamba_decoder_layer.1} parent=1 // pred_region
      %s50 = ssub.s32 16, 16
      %51 = vsyncadd [#allocation9], %s50
      %s53 = sshll.u32 [#allocation8], 4
      %s54 = int_to_ptr.vmem [resolvable:$true] %s53
      %56 = dma.hbm_to_vmem [thread:$0]  %s8, 16, %s54, [#allocation9]
    $region37: #{phi_mamba_decoder_layer.1} parent=1 // pred_fallthru
      _
    // Predicated region
    $region38: #{phi_mamba_decoder_layer.1} parent=1 // pred_check
      _
    $region39: #{phi_mamba_decoder_layer.1} parent=1 // pred_check_branch
      %58 = sbr.rel (0) target = $region41
    $region40: #{phi_mamba_decoder_layer.1} parent=1 // pred_region
      %s60 = ssub.s32 16, 16
      %61 = vsyncadd [#allocation9], %s60
      %s63 = sshll.u32 [#allocation10], 4
      %s64 = int_to_ptr.vmem [resolvable:$true] %s63
      %66 = dma.hbm_to_vmem [thread:$0]  %s9, 16, %s64, [#allocation9]
    $region41: #{phi_mamba_decoder_layer.1} parent=1 // pred_fallthru
      _
    // Predicated region
    $region42: #{phi_mamba_decoder_layer.1} parent=1 // pred_check
      _
    $region43: #{phi_mamba_decoder_layer.1} parent=1 // pred_check_branch
      %68 = sbr.rel (0) target = $region45
    $region44: #{phi_mamba_decoder_layer.1} parent=1 // pred_region
      %s70 = ssub.s32 16, 16
      %71 = vsyncadd [#allocation12], %s70
      %s73 = sshll.u32 [#allocation11], 4
      %s74 = int_to_ptr.vmem [resolvable:$true] %s73
      %76 = dma.hbm_to_vmem [thread:$0]  %s10, 16, %s74, [#allocation12]
    $region45: #{phi_mamba_decoder_layer.1} parent=1 // pred_fallthru
      _
    // Predicated region
    $region46: #{phi_mamba_decoder_layer.1} parent=1 // pred_check
      _
    $region47: #{phi_mamba_decoder_layer.1} parent=1 // pred_check_branch
      %78 = sbr.rel (0) target = $region49
    $region48: #{phi_mamba_decoder_layer.1} parent=1 // pred_region
      _
    $region49: #{phi_mamba_decoder_layer.1} parent=1 // pred_fallthru
      _
    // Predicated region
    $region50: #{phi_mamba_decoder_layer.1} parent=1 // pred_check
      _
    $region51: #{phi_mamba_decoder_layer.1} parent=1 // pred_check_branch
      %80 = sbr.rel (0) target = $region53
    $region52: #{phi_mamba_decoder_layer.1} parent=1 // pred_region
      _
    $region53: #{phi_mamba_decoder_layer.1} parent=1 // pred_fallthru
      _
    // Predicated region
    $region54: #{phi_mamba_decoder_layer.1} parent=1 // pred_check
      _
    $region55: #{phi_mamba_decoder_layer.1} parent=1 // pred_check_branch
      %82 = sbr.rel (0) target = $region57
    $region56: #{phi_mamba_decoder_layer.1} parent=1 // pred_region
      %s84 = ssub.s32 16, 16
      %85 = vsyncadd [#allocation12], %s84
      %s87 = sshll.u32 [#allocation13], 4
      %s88 = int_to_ptr.vmem [resolvable:$true] %s87
      %90 = dma.hbm_to_vmem [thread:$0]  %s13, 16, %s88, [#allocation12]
    $region57: #{phi_mamba_decoder_layer.1} parent=1 // pred_fallthru
      _
    // Predicated region
    $region58: #{phi_mamba_decoder_layer.1} parent=1 // pred_check
      _
    $region59: #{phi_mamba_decoder_layer.1} parent=1 // pred_check_branch
      %92 = sbr.rel (0) target = $region61
    $region60: #{phi_mamba_decoder_layer.1} parent=1 // pred_region
      %93 = dma.done [#allocation6], 16
    $region61: #{phi_mamba_decoder_layer.1} parent=1 // pred_fallthru
      _
    // Predicated region
    $region62: #{phi_mamba_decoder_layer.1} parent=1 // pred_check
      _
    $region63: #{phi_mamba_decoder_layer.1} parent=1 // pred_check_branch
      %95 = sbr.rel (0) target = $region65
    $region64: #{phi_mamba_decoder_layer.1} parent=1 // pred_region
      %96 = dma.done [#allocation9], 16
    $region65: #{phi_mamba_decoder_layer.1} parent=1 // pred_fallthru
      _
    // Predicated region
    $region66: #{phi_mamba_decoder_layer.1} parent=1 // pred_check
      _
    $region67: #{phi_mamba_decoder_layer.1} parent=1 // pred_check_branch
      %98 = sbr.rel (0) target = $region69
    $region68: #{phi_mamba_decoder_layer.1} parent=1 // pred_region
      %99 = dma.done [#allocation9], 16
    $region69: #{phi_mamba_decoder_layer.1} parent=1 // pred_fallthru
      _
    // Predicated region
    $region70: #{phi_mamba_decoder_layer.1} parent=1 // pred_check
      _
    $region71: #{phi_mamba_decoder_layer.1} parent=1 // pred_check_branch
      %101 = sbr.rel (0) target = $region73
    $region72: #{phi_mamba_decoder_layer.1} parent=1 // pred_region
      %102 = dma.done [#allocation12], 16
    $region73: #{phi_mamba_decoder_layer.1} parent=1 // pred_fallthru
      _
    // Predicated region
    $region74: #{phi_mamba_decoder_layer.1} parent=1 // pred_check
      _
    $region75: #{phi_mamba_decoder_layer.1} parent=1 // pred_check_branch
      %104 = sbr.rel (0) target = $region77
    $region76: #{phi_mamba_decoder_layer.1} parent=1 // pred_region
      %105 = dma.done [#allocation12], 16
    $region77: #{phi_mamba_decoder_layer.1} parent=1 // pred_fallthru
      _
    %v106 = vld [vmem:[%s0] sm:$0xff]
    %v107 = vld [vmem:[%s0 + $0x8] sm:$0xff]
    %vm108 = vcmask 261120
    %v109 = vsel %vm108, %v106, 0.0
    %110 = vadd.xlane.f32.xlu0 %v109
    %v111 = vpop.xlane.xlu0 %110
    %v112 = vsel %vm108, %v107, 0.0
    %113 = vadd.xlane.f32.xlu0 %v112
    %v114 = vpop.xlane.xlu0 %113
    %v115 = vrcp.pop 32.0
    %v116 = vmul.f32 %v111, %v115
    %v117 = vmul.f32 %v114, %v115
    %v118 = vsub.f32 %v106, %v116
    %v119 = vsub.f32 %v107, %v117
    %v120 = vmul.f32 %v118, %v118
    %v121 = vmul.f32 %v119, %v119
    %v122 = vsel %vm108, %v120, 0.0
    %123 = vadd.xlane.f32.xlu0 %v122
    %v124 = vpop.xlane.xlu0 %123
    %v125 = vsel %vm108, %v121, 0.0
    %126 = vadd.xlane.f32.xlu0 %v125
    %v127 = vpop.xlane.xlu0 %126
    %v128 = vmul.f32 %v124, %v115
    %v129 = vmul.f32 %v127, %v115
    %v130 = vadd.f32 %v128, 1e-05
    %v131 = vadd.f32 %v129, 1e-05
    %v132 = vrsqrt.pop %v130
    %v133 = vrsqrt.pop %v131
    %v134 = vmul.f32 %v118, %v132
    %v135 = vmul.f32 %v119, %v133
    %v136 = vld [vmem:[%s1] sm:$0x1]
    %v138 = vlaneseq
    %v139 = vshrl.u32 %v138, 7
    %v140 = vsub.s32 0, %v139
    %v141 = vrot.slane %v136, %v140
    %v143 = vmul.f32 %v134, %v141
    %v144 = vmul.f32 %v135, %v141
    %v145 = vld [vmem:[%s2] sm:$0x1]
    %v147 = vlaneseq
    %v148 = vshrl.u32 %v147, 7
    %v149 = vsub.s32 0, %v148
    %v150 = vrot.slane %v145, %v149
    %v152 = vadd.f32 %v143, %v150
    %v153 = vadd.f32 %v144, %v150
    %v154 = vld [vmem:[%s3] sm:$0xff]
    %v155 = vld [vmem:[%s3 + $0x8] sm:$0xff]
    %v156 = vld [vmem:[%s3 + $0x10] sm:$0xff]
    %v157 = vld [vmem:[%s3 + $0x18] sm:$0xff]
    %v158 = vld [vmem:[%s3 + $0x20] sm:$0xff]
    %v159 = vld [vmem:[%s3 + $0x28] sm:$0xff]
    %v160 = vld [vmem:[%s3 + $0x30] sm:$0xff]
    %v161 = vld [vmem:[%s3 + $0x38] sm:$0xff]
    %v162 = vld [vmem:[%s4] sm:$0x3]
    %v164 = vlaneseq
    %v165 = vshrl.u32 %v164, 7
    %v166 = vsub.s32 0, %v165
    %v167 = vrot.slane %v162, %v166
    %v168 = vlaneseq
    %v169 = vshrl.u32 %v168, 7
    %v170 = vsub.s32 1, %v169
    %v171 = vrot.slane %v162, %v170
    %v175 = vsel %vm108, %v152, 0
    %v178 = vsel %vm108, %v153, 0
    %180 = vmatprep.subr.mxu0 0.0
    %181 = vmatpush1.msra.mxu0 0.0
    %182 = vmatprep.subr.mxu0 0.0
    %183 = vmatpush1.msra.mxu0 0.0
    %184 = vmatprep.subr.mxu0 0.0
    %185 = vmatpush1.msra.mxu0 0.0
    %186 = vmatprep.subr.mxu0 0.0
    %187 = vmatpush1.msra.mxu0 0.0
    %188 = vmatprep.subr.mxu0 0.0
    %189 = vmatpush1.msra.mxu0 0.0
    %190 = vmatprep.subr.mxu0 0.0
    %191 = vmatpush1.msra.mxu0 0.0
    %192 = vmatprep.subr.mxu0 0.0
    %193 = vmatpush1.msra.mxu0 0.0
    %194 = vmatprep.subr.mxu0 0.0
    %195 = vmatpush1.msra.mxu0 0.0
    %196 = vmatprep.subr.mxu0 0.0
    %197 = vmatpush1.msra.mxu0 0.0
    %198 = vmatprep.subr.mxu0 0.0
    %199 = vmatpush1.msra.mxu0 0.0
    %200 = vmatprep.subr.mxu0 0.0
    %201 = vmatpush1.msra.mxu0 0.0
    %202 = vmatprep.subr.mxu0 0.0
    %203 = vmatpush1.msra.mxu0 0.0
    %204 = vmatprep.subr.mxu0 %v161
    %205 = vmatpush1.msra.mxu0 %v160
    %206 = vmatprep.subr.mxu0 %v159
    %207 = vmatpush1.msra.mxu0 %v158
    %208 = vmatprep.subr.mxu0 %v157
    %209 = vmatpush1.msra.mxu0 %v156
    %210 = vmatprep.subr.mxu0 %v155
    %211 = vmatpush1.msra.mxu0 %v154
    %212 = vmatprep.subr.mxu0 0.0
    %213 = vmatpush2.msra.mxu0 0.0
    %214 = vmatprep.subr.mxu0 0.0
    %215 = vmatpush2.msra.mxu0 0.0
    %216 = vmatprep.subr.mxu0 0.0
    %217 = vmatpush2.msra.mxu0 0.0
    %218 = vmatprep.subr.mxu0 0.0
    %219 = vmatpush2.msra.mxu0 0.0
    %220 = vmatprep.subr.mxu0 0.0
    %221 = vmatpush2.msra.mxu0 0.0
    %222 = vmatprep.subr.mxu0 0.0
    %223 = vmatpush2.msra.mxu0 0.0
    %224 = vmatprep.subr.mxu0 0.0
    %225 = vmatpush2.msra.mxu0 0.0
    %226 = vmatprep.subr.mxu0 0.0
    %227 = vmatpush2.msra.mxu0 0.0
    %228 = vmatprep.subr.mxu0 0.0
    %229 = vmatpush2.msra.mxu0 0.0
    %230 = vmatprep.subr.mxu0 0.0
    %231 = vmatpush2.msra.mxu0 0.0
    %232 = vmatprep.subr.mxu0 0.0
    %233 = vmatpush2.msra.mxu0 0.0
    %234 = vmatprep.subr.mxu0 0.0
    %235 = vmatpush2.msra.mxu0 0.0
    %236 = vmatprep.subr.mxu0 0.0
    %237 = vmatpush2.msra.mxu0 0.0
    %238 = vmatprep.subr.mxu0 0.0
    %239 = vmatpush2.msra.mxu0 0.0
    %240 = vmatprep.subr.mxu0 0.0
    %241 = vmatpush2.msra.mxu0 0.0
    %242 = vmatprep.subr.mxu0 0.0
    %243 = vmatpush2.msra.mxu0 0.0
    %244 = vmatprep.mubr.f32.mxu0 0.0
    %245 = vmatmul.mubr.f32.gmra.mxu0 %v175
    %v246 = vpop.f32.mrf.mxu0
    %v247 = vadd.f32 %v167, %v246
    %v248 = vpop.f32.mrf.mxu0
    %v249 = vadd.f32 %v171, %v248
    %250 = vmatprep.mubr.f32.mxu0 0.0
    %251 = vmatmul.mubr.f32.gmra.mxu0 %v178
    %v252 = vpop.f32.mrf.mxu0
    %v253 = vadd.f32 %v167, %v252
    %v254 = vpop.f32.mrf.mxu0
    %v255 = vadd.f32 %v171, %v254
    %256 = vdwg.mxu0
    %257 = vst [vmem:[#allocation2] sm:$0xff] %v247
    %vm258 = vcmask 523264
    %259 = vst.msk [vmem:[#allocation2 + $0x8] sm:$0xff] %vm258, %v249
    %260 = vst [vmem:[#allocation2 + $0x10] sm:$0xff] %v253
    %261 = vst.msk [vmem:[#allocation2 + $0x18] sm:$0xff] %vm258, %v255
    %v262 = vld [vmem:[#allocation2 + $0x8] sm:$0xff]
    %v263 = vld [vmem:[#allocation2 + $0x18] sm:$0xff]
    %v264 = vmul.f32 %v262, 0.5
    %v265 = vmul.f32 %v263, 0.5
    %v266 = vmul.f32 %v262, 0.044715
    %v267 = vmul.f32 %v263, 0.044715
    %v268 = vmul.f32 %v266, %v262
    %v269 = vmul.f32 %v267, %v263
    %v270 = vmul.f32 %v268, %v262
    %v271 = vmul.f32 %v269, %v263
    %v272 = vadd.f32 %v262, %v270
    %v273 = vadd.f32 %v263, %v271
    %v274 = vmul.f32 %v272, 0.7978846
    %v275 = vmul.f32 %v273, 0.7978846
    %v276 = vtanh.pop %v274
    %v277 = vtanh.pop %v275
    %v278 = vadd.f32 %v276, 1.0
    %v279 = vadd.f32 %v277, 1.0
    %v280 = vmul.f32 %v264, %v278
    %v281 = vmul.f32 %v265, %v279
    %v282 = vld [vmem:[%s12] sm:$0xff]
    %v283 = vld [vmem:[%s12 + $0x8] sm:$0xff]
    %v284 = vld [vmem:[%s12 + $0x10] sm:$0xff]
    %v285 = vld [vmem:[%s12 + $0x18] sm:$0xff]
    %v286 = vld [vmem:[%s12 + $0x20] sm:$0xff]
    %v287 = vld [vmem:[%s12 + $0x28] sm:$0xff]
    %v288 = vld [vmem:[%s12 + $0x30] sm:$0xff]
    %v289 = vld [vmem:[%s12 + $0x38] sm:$0xff]
    %v290 = vld [vmem:[#allocation13] sm:$0x1]
    %v292 = vlaneseq
    %v293 = vshrl.u32 %v292, 7
    %v294 = vsub.s32 0, %v293
    %v295 = vrot.slane %v290, %v294
    %v298 = vsel %vm258, %v280, 0
    %v301 = vsel %vm258, %v281, 0
    %303 = vmatprep.subr.mxu0 0.0
    %304 = vmatpush1.msra.mxu0 0.0
    %305 = vmatprep.subr.mxu0 0.0
    %306 = vmatpush1.msra.mxu0 0.0
    %307 = vmatprep.subr.mxu0 0.0
    %308 = vmatpush1.msra.mxu0 0.0
    %309 = vmatprep.subr.mxu0 0.0
    %310 = vmatpush1.msra.mxu0 0.0
    %311 = vmatprep.subr.mxu0 0.0
    %312 = vmatpush1.msra.mxu0 0.0
    %313 = vmatprep.subr.mxu0 0.0
    %314 = vmatpush1.msra.mxu0 0.0
    %315 = vmatprep.subr.mxu0 0.0
    %316 = vmatpush1.msra.mxu0 0.0
    %317 = vmatprep.subr.mxu0 0.0
    %318 = vmatpush1.msra.mxu0 0.0
    %319 = vmatprep.subr.mxu0 0.0
    %320 = vmatpush1.msra.mxu0 %v289
    %321 = vmatprep.subr.mxu0 0.0
    %322 = vmatpush1.msra.mxu0 %v288
    %323 = vmatprep.subr.mxu0 0.0
    %324 = vmatpush1.msra.mxu0 %v287
    %325 = vmatprep.subr.mxu0 0.0
    %326 = vmatpush1.msra.mxu0 %v286
    %327 = vmatprep.subr.mxu0 0.0
    %328 = vmatpush1.msra.mxu0 %v285
    %329 = vmatprep.subr.mxu0 0.0
    %330 = vmatpush1.msra.mxu0 %v284
    %331 = vmatprep.subr.mxu0 0.0
    %332 = vmatpush1.msra.mxu0 %v283
    %333 = vmatprep.subr.mxu0 0.0
    %334 = vmatpush1.msra.mxu0 %v282
    %335 = vmatprep.subr.mxu0 0.0
    %336 = vmatpush2.msra.mxu0 0.0
    %337 = vmatprep.subr.mxu0 0.0
    %338 = vmatpush2.msra.mxu0 0.0
    %339 = vmatprep.subr.mxu0 0.0
    %340 = vmatpush2.msra.mxu0 0.0
    %341 = vmatprep.subr.mxu0 0.0
    %342 = vmatpush2.msra.mxu0 0.0
    %343 = vmatprep.subr.mxu0 0.0
    %344 = vmatpush2.msra.mxu0 0.0
    %345 = vmatprep.subr.mxu0 0.0
    %346 = vmatpush2.msra.mxu0 0.0
    %347 = vmatprep.subr.mxu0 0.0
    %348 = vmatpush2.msra.mxu0 0.0
    %349 = vmatprep.subr.mxu0 0.0
    %350 = vmatpush2.msra.mxu0 0.0
    %351 = vmatprep.subr.mxu0 0.0
    %352 = vmatpush2.msra.mxu0 0.0
    %353 = vmatprep.subr.mxu0 0.0
    %354 = vmatpush2.msra.mxu0 0.0
    %355 = vmatprep.subr.mxu0 0.0
    %356 = vmatpush2.msra.mxu0 0.0
    %357 = vmatprep.subr.mxu0 0.0
    %358 = vmatpush2.msra.mxu0 0.0
    %359 = vmatprep.subr.mxu0 0.0
    %360 = vmatpush2.msra.mxu0 0.0
    %361 = vmatprep.subr.mxu0 0.0
    %362 = vmatpush2.msra.mxu0 0.0
    %363 = vmatprep.subr.mxu0 0.0
    %364 = vmatpush2.msra.mxu0 0.0
    %365 = vmatprep.subr.mxu0 0.0
    %366 = vmatpush2.msra.mxu0 0.0
    %367 = vmatprep.mubr.f32.mxu0 0.0
    %368 = vmatmul.mubr.f32.gmra.mxu0 %v298
    %v369 = vpop.f32.mrf.mxu0
    %v370 = vadd.f32 %v295, %v369
    %v371 = vpop.f32.mrf.mxu0
    %372 = vmatprep.mubr.f32.mxu0 0.0
    %373 = vmatmul.mubr.f32.gmra.mxu0 %v301
    %v374 = vpop.f32.mrf.mxu0
    %v375 = vadd.f32 %v295, %v374
    %v376 = vpop.f32.mrf.mxu0
    %377 = vdwg.mxu0
    %v378 = vlaneseq
    %v379 = vshrl.u32 %v378, 7
    %v380 = vlaneseq
    %v381 = vand.u32 %v380, 127
    %vm382 = vcmp.le.s32.totalorder %v381, %v379
    %v383 = vsel %vm382, 1, 0
    %v384 = vcvt.s32.f32 %v383
    %vm385 = vcmp.eq.s32.totalorder %v381, %v379
    %v386 = vsel %vm385, 1, 0
    %v387 = vcvt.s32.f32 %v386
    %v388 = vld [vmem:[#allocation2] sm:$0xff]
    %v389 = vld [vmem:[%s5 + $0x3] sm:$0x1]
    %v390 = vlaneseq
    %v391 = vshrl.u32 %v390, 7
    %v392 = vsub.s32 0, %v391
    %v393 = vrot.slane %v389, %v392
    %395 = vrot.lane.b32.xlu0 %v393, 32
    %v396 = vpop.permute.xlu0 %395
    %v398 = vmul.f32 %v388, %v396
    %v399 = vsub.s32 %v379, %v381
    %vm400 = vcmp.eq.s32.totalorder %v399, 3
    %v401 = vsel %vm400, 1, 0
    %v402 = vcvt.s32.f32 %v401
    %404 = vrot.lane.b32.xlu0 %v388, 96
    %v405 = vpop.permute.xlu0 %404
    %vm407 = vcmask 64512
    %v409 = vsel %vm407, %v402, 0
    %411 = vmatprep.subr.mxu0 0.0
    %412 = vmatpush1.msra.mxu0 0.0
    %413 = vmatprep.subr.mxu0 0.0
    %414 = vmatpush1.msra.mxu0 0.0
    %415 = vmatprep.subr.mxu0 0.0
    %416 = vmatpush1.msra.mxu0 0.0
    %417 = vmatprep.subr.mxu0 0.0
    %418 = vmatpush1.msra.mxu0 0.0
    %419 = vmatprep.subr.mxu0 0.0
    %420 = vmatpush1.msra.mxu0 0.0
    %421 = vmatprep.subr.mxu0 0.0
    %422 = vmatpush1.msra.mxu0 0.0
    %423 = vmatprep.subr.mxu0 0.0
    %424 = vmatpush1.msra.mxu0 0.0
    %425 = vmatprep.subr.mxu0 0.0
    %426 = vmatpush1.msra.mxu0 0.0
    %427 = vmatprep.subr.mxu0 0.0
    %428 = vmatpush1.msra.mxu0 0.0
    %429 = vmatprep.subr.mxu0 0.0
    %430 = vmatpush1.msra.mxu0 0.0
    %431 = vmatprep.subr.mxu0 0.0
    %432 = vmatpush1.msra.mxu0 0.0
    %433 = vmatprep.subr.mxu0 0.0
    %434 = vmatpush1.msra.mxu0 0.0
    %435 = vmatprep.subr.mxu0 0.0
    %436 = vmatpush1.msra.mxu0 0.0
    %437 = vmatprep.subr.mxu0 0.0
    %438 = vmatpush1.msra.mxu0 0.0
    %439 = vmatprep.subr.mxu0 0.0
    %440 = vmatpush1.msra.mxu0 0.0
    %441 = vmatprep.subr.mxu0 0.0
    %442 = vmatpush1.msra.mxu0 %v405
    %443 = vmatprep.subr.mxu0 0.0
    %444 = vmatpush2.msra.mxu0 0.0
    %445 = vmatprep.subr.mxu0 0.0
    %446 = vmatpush2.msra.mxu0 0.0
    %447 = vmatprep.subr.mxu0 0.0
    %448 = vmatpush2.msra.mxu0 0.0
    %449 = vmatprep.subr.mxu0 0.0
    %450 = vmatpush2.msra.mxu0 0.0
    %451 = vmatprep.subr.mxu0 0.0
    %452 = vmatpush2.msra.mxu0 0.0
    %453 = vmatprep.subr.mxu0 0.0
    %454 = vmatpush2.msra.mxu0 0.0
    %455 = vmatprep.subr.mxu0 0.0
    %456 = vmatpush2.msra.mxu0 0.0
    %457 = vmatprep.subr.mxu0 0.0
    %458 = vmatpush2.msra.mxu0 0.0
    %459 = vmatprep.subr.mxu0 0.0
    %460 = vmatpush2.msra.mxu0 0.0
    %461 = vmatprep.subr.mxu0 0.0
    %462 = vmatpush2.msra.mxu0 0.0
    %463 = vmatprep.subr.mxu0 0.0
    %464 = vmatpush2.msra.mxu0 0.0
    %465 = vmatprep.subr.mxu0 0.0
    %466 = vmatpush2.msra.mxu0 0.0
    %467 = vmatprep.subr.mxu0 0.0
    %468 = vmatpush2.msra.mxu0 0.0
    %469 = vmatprep.subr.mxu0 0.0
    %470 = vmatpush2.msra.mxu0 0.0
    %471 = vmatprep.subr.mxu0 0.0
    %472 = vmatpush2.msra.mxu0 0.0
    %473 = vmatprep.subr.mxu0 0.0
    %474 = vmatpush2.msra.mxu0 0.0
    %475 = vmatprep.mubr.f32.mxu0 0.0
    %476 = vmatmul.mubr.f32.gmra.mxu0 %v409
    %v477 = vpop.f32.mrf.mxu0
    %v478 = vadd.f32 0.0, %v477
    %v479 = vpop.f32.mrf.mxu0
    %480 = vdwg.mxu0
    %v481 = vld [vmem:[%s5] sm:$0x1]
    %v482 = vlaneseq
    %v483 = vshrl.u32 %v482, 7
    %v484 = vsub.s32 0, %v483
    %v485 = vrot.slane %v481, %v484
    %v486 = vmul.f32 %v478, %v485
    %488 = vrot.lane.b32.xlu0 %v486, 32
    %v489 = vpop.permute.xlu0 %488
    %v491 = vadd.f32 %v398, %v489
    %vm492 = vcmp.eq.s32.totalorder %v399, 2
    %v493 = vsel %vm492, 1, 0
    %v494 = vcvt.s32.f32 %v493
    %v496 = vsel %vm407, %v494, 0
    %498 = vmatprep.subr.mxu0 0.0
    %499 = vmatpush1.msra.mxu0 0.0
    %500 = vmatprep.subr.mxu0 0.0
    %501 = vmatpush1.msra.mxu0 0.0
    %502 = vmatprep.subr.mxu0 0.0
    %503 = vmatpush1.msra.mxu0 0.0
    %504 = vmatprep.subr.mxu0 0.0
    %505 = vmatpush1.msra.mxu0 0.0
    %506 = vmatprep.subr.mxu0 0.0
    %507 = vmatpush1.msra.mxu0 0.0
    %508 = vmatprep.subr.mxu0 0.0
    %509 = vmatpush1.msra.mxu0 0.0
    %510 = vmatprep.subr.mxu0 0.0
    %511 = vmatpush1.msra.mxu0 0.0
    %512 = vmatprep.subr.mxu0 0.0
    %513 = vmatpush1.msra.mxu0 0.0
    %514 = vmatprep.subr.mxu0 0.0
    %515 = vmatpush1.msra.mxu0 0.0
    %516 = vmatprep.subr.mxu0 0.0
    %517 = vmatpush1.msra.mxu0 0.0
    %518 = vmatprep.subr.mxu0 0.0
    %519 = vmatpush1.msra.mxu0 0.0
    %520 = vmatprep.subr.mxu0 0.0
    %521 = vmatpush1.msra.mxu0 0.0
    %522 = vmatprep.subr.mxu0 0.0
    %523 = vmatpush1.msra.mxu0 0.0
    %524 = vmatprep.subr.mxu0 0.0
    %525 = vmatpush1.msra.mxu0 0.0
    %526 = vmatprep.subr.mxu0 0.0
    %527 = vmatpush1.msra.mxu0 0.0
    %528 = vmatprep.subr.mxu0 0.0
    %529 = vmatpush1.msra.mxu0 %v405
    %530 = vmatprep.subr.mxu0 0.0
    %531 = vmatpush2.msra.mxu0 0.0
    %532 = vmatprep.subr.mxu0 0.0
    %533 = vmatpush2.msra.mxu0 0.0
    %534 = vmatprep.subr.mxu0 0.0
    %535 = vmatpush2.msra.mxu0 0.0
    %536 = vmatprep.subr.mxu0 0.0
    %537 = vmatpush2.msra.mxu0 0.0
    %538 = vmatprep.subr.mxu0 0.0
    %539 = vmatpush2.msra.mxu0 0.0
    %540 = vmatprep.subr.mxu0 0.0
    %541 = vmatpush2.msra.mxu0 0.0
    %542 = vmatprep.subr.mxu0 0.0
    %543 = vmatpush2.msra.mxu0 0.0
    %544 = vmatprep.subr.mxu0 0.0
    %545 = vmatpush2.msra.mxu0 0.0
    %546 = vmatprep.subr.mxu0 0.0
    %547 = vmatpush2.msra.mxu0 0.0
    %548 = vmatprep.subr.mxu0 0.0
    %549 = vmatpush2.msra.mxu0 0.0
    %550 = vmatprep.subr.mxu0 0.0
    %551 = vmatpush2.msra.mxu0 0.0
    %552 = vmatprep.subr.mxu0 0.0
    %553 = vmatpush2.msra.mxu0 0.0
    %554 = vmatprep.subr.mxu0 0.0
    %555 = vmatpush2.msra.mxu0 0.0
    %556 = vmatprep.subr.mxu0 0.0
    %557 = vmatpush2.msra.mxu0 0.0
    %558 = vmatprep.subr.mxu0 0.0
    %559 = vmatpush2.msra.mxu0 0.0
    %560 = vmatprep.subr.mxu0 0.0
    %561 = vmatpush2.msra.mxu0 0.0
    %562 = vmatprep.mubr.f32.mxu0 0.0
    %563 = vmatmul.mubr.f32.gmra.mxu0 %v496
    %v564 = vpop.f32.mrf.mxu0
    %v565 = vadd.f32 0.0, %v564
    %v566 = vpop.f32.mrf.mxu0
    %567 = vdwg.mxu0
    %v568 = vld [vmem:[%s5 + $0x1] sm:$0x1]
    %v569 = vlaneseq
    %v570 = vshrl.u32 %v569, 7
    %v571 = vsub.s32 0, %v570
    %v572 = vrot.slane %v568, %v571
    %v573 = vmul.f32 %v565, %v572
    %575 = vrot.lane.b32.xlu0 %v573, 32
    %v576 = vpop.permute.xlu0 %575
    %v578 = vadd.f32 %v491, %v576
    %vm579 = vcmp.eq.s32.totalorder %v399, 1
    %v580 = vsel %vm579, 1, 0
    %v581 = vcvt.s32.f32 %v580
    %v583 = vsel %vm407, %v581, 0
    %585 = vmatprep.subr.mxu0 0.0
    %586 = vmatpush1.msra.mxu0 0.0
    %587 = vmatprep.subr.mxu0 0.0
    %588 = vmatpush1.msra.mxu0 0.0
    %589 = vmatprep.subr.mxu0 0.0
    %590 = vmatpush1.msra.mxu0 0.0
    %591 = vmatprep.subr.mxu0 0.0
    %592 = vmatpush1.msra.mxu0 0.0
    %593 = vmatprep.subr.mxu0 0.0
    %594 = vmatpush1.msra.mxu0 0.0
    %595 = vmatprep.subr.mxu0 0.0
    %596 = vmatpush1.msra.mxu0 0.0
    %597 = vmatprep.subr.mxu0 0.0
    %598 = vmatpush1.msra.mxu0 0.0
    %599 = vmatprep.subr.mxu0 0.0
    %600 = vmatpush1.msra.mxu0 0.0
    %601 = vmatprep.subr.mxu0 0.0
    %602 = vmatpush1.msra.mxu0 0.0
    %603 = vmatprep.subr.mxu0 0.0
    %604 = vmatpush1.msra.mxu0 0.0
    %605 = vmatprep.subr.mxu0 0.0
    %606 = vmatpush1.msra.mxu0 0.0
    %607 = vmatprep.subr.mxu0 0.0
    %608 = vmatpush1.msra.mxu0 0.0
    %609 = vmatprep.subr.mxu0 0.0
    %610 = vmatpush1.msra.mxu0 0.0
    %611 = vmatprep.subr.mxu0 0.0
    %612 = vmatpush1.msra.mxu0 0.0
    %613 = vmatprep.subr.mxu0 0.0
    %614 = vmatpush1.msra.mxu0 0.0
    %615 = vmatprep.subr.mxu0 0.0
    %616 = vmatpush1.msra.mxu0 %v405
    %617 = vmatprep.subr.mxu0 0.0
    %618 = vmatpush2.msra.mxu0 0.0
    %619 = vmatprep.subr.mxu0 0.0
    %620 = vmatpush2.msra.mxu0 0.0
    %621 = vmatprep.subr.mxu0 0.0
    %622 = vmatpush2.msra.mxu0 0.0
    %623 = vmatprep.subr.mxu0 0.0
    %624 = vmatpush2.msra.mxu0 0.0
    %625 = vmatprep.subr.mxu0 0.0
    %626 = vmatpush2.msra.mxu0 0.0
    %627 = vmatprep.subr.mxu0 0.0
    %628 = vmatpush2.msra.mxu0 0.0
    %629 = vmatprep.subr.mxu0 0.0
    %630 = vmatpush2.msra.mxu0 0.0
    %631 = vmatprep.subr.mxu0 0.0
    %632 = vmatpush2.msra.mxu0 0.0
    %633 = vmatprep.subr.mxu0 0.0
    %634 = vmatpush2.msra.mxu0 0.0
    %635 = vmatprep.subr.mxu0 0.0
    %636 = vmatpush2.msra.mxu0 0.0
    %637 = vmatprep.subr.mxu0 0.0
    %638 = vmatpush2.msra.mxu0 0.0
    %639 = vmatprep.subr.mxu0 0.0
    %640 = vmatpush2.msra.mxu0 0.0
    %641 = vmatprep.subr.mxu0 0.0
    %642 = vmatpush2.msra.mxu0 0.0
    %643 = vmatprep.subr.mxu0 0.0
    %644 = vmatpush2.msra.mxu0 0.0
    %645 = vmatprep.subr.mxu0 0.0
    %646 = vmatpush2.msra.mxu0 0.0
    %647 = vmatprep.subr.mxu0 0.0
    %648 = vmatpush2.msra.mxu0 0.0
    %649 = vmatprep.mubr.f32.mxu0 0.0
    %650 = vmatmul.mubr.f32.gmra.mxu0 %v583
    %v651 = vpop.f32.mrf.mxu0
    %v652 = vadd.f32 0.0, %v651
    %v653 = vpop.f32.mrf.mxu0
    %654 = vdwg.mxu0
    %v655 = vld [vmem:[%s5 + $0x2] sm:$0x1]
    %v656 = vlaneseq
    %v657 = vshrl.u32 %v656, 7
    %v658 = vsub.s32 0, %v657
    %v659 = vrot.slane %v655, %v658
    %v660 = vmul.f32 %v652, %v659
    %662 = vrot.lane.b32.xlu0 %v660, 32
    %v663 = vpop.permute.xlu0 %662
    %v665 = vadd.f32 %v578, %v663
    %v666 = vld [vmem:[%s6] sm:$0x1]
    %v668 = vlaneseq
    %v669 = vshrl.u32 %v668, 7
    %v670 = vsub.s32 0, %v669
    %v671 = vrot.slane %v666, %v670
    %672 = vrot.lane.b32.xlu0 %v671, 32
    %v673 = vpop.permute.xlu0 %672
    %v675 = vadd.f32 %v665, %v673
    %v676 = vxor.u32 %v675, 2147483648
    %v677 = vmul.f32 %v676, 1.442695
    %v678 = vpow.pop %v677
    %v679 = vadd.f32 %v678, 1.0
    %v680 = vrcp.pop %v679
    %v681 = vmul.f32 1.0, %v680
    %v682 = vmul.f32 %v675, %v681
    %684 = vrot.lane.b32.xlu0 %v682, 96
    %v685 = vpop.permute.xlu0 %684
    %687 = vst.msk [vmem:[#allocation3] sm:$0xff] %vm258, %v685
    %v688 = vld [vmem:[#allocation3] sm:$0xff]
    %v689 = vld [vmem:[#allocation2] sm:$0xff]
    %v690 = vld [vmem:[#allocation10] sm:$0x1]
    %v692 = vlaneseq
    %v693 = vshrl.u32 %v692, 7
    %v694 = vsub.s32 0, %v693
    %v695 = vrot.slane %v690, %v694
    %696 = vrot.lane.b32.xlu0 %v695, 96
    %v697 = vpop.permute.xlu0 %696
    %v699 = vadd.f32 %v689, %v697
    %v700 = vmax.f32 %v699, 0.0
    %vm701 = vcmp.ne.f32.partialorder %v699, %v699
    %v702 = vadd.f32 %v699, 0.0
    %v703 = vand.u32 2147483647, %v699
    %v704 = vsub.f32 0.0, %v703
    %v705 = vmul.f32 %v704, 1.442695
    %v706 = vpow.pop %v705
    %v707 = vadd.f32 %v706, 1.0
    %v708 = vlog2.pop %v707
    %v709 = vmul.f32 %v708, 0.6931472
    %v710 = vmul.f32 -0.5, %v706
    %v711 = vadd.f32 %v710, 1.0
    %v712 = vmul.f32 %v711, %v706
    %v713 = vand.u32 2147483647, %v706
    %vm714 = vcmp.lt.f32.partialorder %v713, 0.0004427343
    %v715 = vsel %vm714, %v712, %v709
    %v716 = vadd.f32 %v700, %v715
    %v717 = vsel %vm701, %v702, %v716
    %v718 = vld [vmem:[#allocation5] sm:$0x1]
    %v719 = vld [vmem:[#allocation8] sm:$0x1]
    %721 = vset.pattern.permute.xlu0 96
    %722 = vperm.xlu0 %721, %v717
    %v723 = vpop.permute.xlu0 %722
    %v725 = vmul.f32 %v387, %v723
    %v726 = vsel %vm407, %v725, 0.0
    %v727 = vrot.slane %v726, 4
    %v728 = vadd.f32 %v726, %v727
    %v729 = vrot.slane %v728, 2
    %v730 = vadd.f32 %v728, %v729
    %v731 = vrot.slane %v730, 1
    %v732 = vadd.f32 %v730, %v731
    %v733 = vmul.f32 %v384, %v732
    %v734 = vsel %vm407, %v733, 0.0
    %735 = vadd.xlane.f32.xlu0 %v734
    %v736 = vpop.xlane.xlu0 %735
    %v737 = vmul.f32 %v387, %v736
    %v738 = vsel %vm407, %v737, 0.0
    %v739 = vrot.slane %v738, 4
    %v740 = vadd.f32 %v738, %v739
    %v741 = vrot.slane %v740, 2
    %v742 = vadd.f32 %v740, %v741
    %v743 = vrot.slane %v742, 1
    %v744 = vadd.f32 %v742, %v743
    %v745 = vsub.f32 %v736, %v744
    %v747 = vlaneseq
    %v748 = vshrl.u32 %v747, 7
    %v749 = vsub.s32 0, %v748
    %v750 = vrot.slane %v718, %v749
    %751 = vset.pattern.permute.xlu0 0
    %752 = vperm.xlu0 %751, %v750
    %v753 = vpop.permute.xlu0 %752
    %v755 = vmul.f32 %v753, %v745
    %v756 = vmul.f32 %v755, 1.442695
    %v757 = vpow.pop %v756
    %v758 = vsel %vm382, %v757, 0.0
    %760 = vrot.lane.b32.xlu0 %v688, 96
    %v761 = vpop.permute.xlu0 %760
    %762 = vrot.lane.b32.xlu0 %v688, 112
    %v763 = vpop.permute.xlu0 %762
    %v764 = vsel %vm407, %v761, 0
    %v766 = vsel %vm407, %v763, 0
    %768 = vmatprep.subr.mxu0 0.0
    %769 = vmatpush1.xpose.msra.mxu0 0.0
    %770 = vmatprep.subr.mxu0 0.0
    %771 = vmatpush1.xpose.msra.mxu0 0.0
    %772 = vmatprep.subr.mxu0 0.0
    %773 = vmatpush1.xpose.msra.mxu0 0.0
    %774 = vmatprep.subr.mxu0 0.0
    %775 = vmatpush1.xpose.msra.mxu0 0.0
    %776 = vmatprep.subr.mxu0 0.0
    %777 = vmatpush1.xpose.msra.mxu0 0.0
    %778 = vmatprep.subr.mxu0 0.0
    %779 = vmatpush1.xpose.msra.mxu0 0.0
    %780 = vmatprep.subr.mxu0 0.0
    %781 = vmatpush1.xpose.msra.mxu0 0.0
    %782 = vmatprep.subr.mxu0 0.0
    %783 = vmatpush1.xpose.msra.mxu0 0.0
    %784 = vmatprep.subr.mxu0 0.0
    %785 = vmatpush1.xpose.msra.mxu0 0.0
    %786 = vmatprep.subr.mxu0 0.0
    %787 = vmatpush1.xpose.msra.mxu0 0.0
    %788 = vmatprep.subr.mxu0 0.0
    %789 = vmatpush1.xpose.msra.mxu0 0.0
    %790 = vmatprep.subr.mxu0 0.0
    %791 = vmatpush1.xpose.msra.mxu0 0.0
    %792 = vmatprep.subr.mxu0 0.0
    %793 = vmatpush1.xpose.msra.mxu0 0.0
    %794 = vmatprep.subr.mxu0 0.0
    %795 = vmatpush1.xpose.msra.mxu0 0.0
    %796 = vmatprep.subr.mxu0 0.0
    %797 = vmatpush1.xpose.msra.mxu0 0.0
    %798 = vmatprep.subr.mxu0 0.0
    %799 = vmatpush1.xpose.msra.mxu0 %v766
    %800 = vmatprep.subr.mxu0 0.0
    %801 = vmatpush2.xpose.msra.mxu0 0.0
    %802 = vmatprep.subr.mxu0 0.0
    %803 = vmatpush2.xpose.msra.mxu0 0.0
    %804 = vmatprep.subr.mxu0 0.0
    %805 = vmatpush2.xpose.msra.mxu0 0.0
    %806 = vmatprep.subr.mxu0 0.0
    %807 = vmatpush2.xpose.msra.mxu0 0.0
    %808 = vmatprep.subr.mxu0 0.0
    %809 = vmatpush2.xpose.msra.mxu0 0.0
    %810 = vmatprep.subr.mxu0 0.0
    %811 = vmatpush2.xpose.msra.mxu0 0.0
    %812 = vmatprep.subr.mxu0 0.0
    %813 = vmatpush2.xpose.msra.mxu0 0.0
    %814 = vmatprep.subr.mxu0 0.0
    %815 = vmatpush2.xpose.msra.mxu0 0.0
    %816 = vmatprep.subr.mxu0 0.0
    %817 = vmatpush2.xpose.msra.mxu0 0.0
    %818 = vmatprep.subr.mxu0 0.0
    %819 = vmatpush2.xpose.msra.mxu0 0.0
    %820 = vmatprep.subr.mxu0 0.0
    %821 = vmatpush2.xpose.msra.mxu0 0.0
    %822 = vmatprep.subr.mxu0 0.0
    %823 = vmatpush2.xpose.msra.mxu0 0.0
    %824 = vmatprep.subr.mxu0 0.0
    %825 = vmatpush2.xpose.msra.mxu0 0.0
    %826 = vmatprep.subr.mxu0 0.0
    %827 = vmatpush2.xpose.msra.mxu0 0.0
    %828 = vmatprep.subr.mxu0 0.0
    %829 = vmatpush2.xpose.msra.mxu0 0.0
    %830 = vmatprep.subr.mxu0 0.0
    %831 = vmatpush2.xpose.msra.mxu0 0.0
    %832 = vmatprep.mubr.f32.mxu0 0.0
    %833 = vmatmul.mubr.f32.gmra.mxu0 %v764
    %v834 = vpop.f32.mrf.mxu0
    %v835 = vadd.f32 0.0, %v834
    %v836 = vpop.f32.mrf.mxu0
    %837 = vdwg.mxu0
    %v838 = vmul.f32 %v835, %v758
    %v839 = vmul.f32 %v838, %v732
    %v841 = vlaneseq
    %v842 = vshrl.u32 %v841, 7
    %v843 = vsub.s32 0, %v842
    %v844 = vrot.slane %v719, %v843
    %845 = vset.pattern.permute.xlu0 0
    %846 = vperm.xlu0 %845, %v844
    %v847 = vpop.permute.xlu0 %846
    %v849 = vmul.f32 %v847, %v688
    %v851 = vsel %vm407, %v839, 0
    %853 = vmatprep.subr.mxu0 0.0
    %854 = vmatpush1.msra.mxu0 0.0
    %855 = vmatprep.subr.mxu0 0.0
    %856 = vmatpush1.msra.mxu0 0.0
    %857 = vmatprep.subr.mxu0 0.0
    %858 = vmatpush1.msra.mxu0 0.0
    %859 = vmatprep.subr.mxu0 0.0
    %860 = vmatpush1.msra.mxu0 0.0
    %861 = vmatprep.subr.mxu0 0.0
    %862 = vmatpush1.msra.mxu0 0.0
    %863 = vmatprep.subr.mxu0 0.0
    %864 = vmatpush1.msra.mxu0 0.0
    %865 = vmatprep.subr.mxu0 0.0
    %866 = vmatpush1.msra.mxu0 0.0
    %867 = vmatprep.subr.mxu0 0.0
    %868 = vmatpush1.msra.mxu0 0.0
    %869 = vmatprep.subr.mxu0 0.0
    %870 = vmatpush1.msra.mxu0 0.0
    %871 = vmatprep.subr.mxu0 0.0
    %872 = vmatpush1.msra.mxu0 0.0
    %873 = vmatprep.subr.mxu0 0.0
    %874 = vmatpush1.msra.mxu0 0.0
    %875 = vmatprep.subr.mxu0 0.0
    %876 = vmatpush1.msra.mxu0 0.0
    %877 = vmatprep.subr.mxu0 0.0
    %878 = vmatpush1.msra.mxu0 0.0
    %879 = vmatprep.subr.mxu0 0.0
    %880 = vmatpush1.msra.mxu0 0.0
    %881 = vmatprep.subr.mxu0 0.0
    %882 = vmatpush1.msra.mxu0 0.0
    %883 = vmatprep.subr.mxu0 0.0
    %884 = vmatpush1.msra.mxu0 %v688
    %885 = vmatprep.subr.mxu0 0.0
    %886 = vmatpush2.msra.mxu0 0.0
    %887 = vmatprep.subr.mxu0 0.0
    %888 = vmatpush2.msra.mxu0 0.0
    %889 = vmatprep.subr.mxu0 0.0
    %890 = vmatpush2.msra.mxu0 0.0
    %891 = vmatprep.subr.mxu0 0.0
    %892 = vmatpush2.msra.mxu0 0.0
    %893 = vmatprep.subr.mxu0 0.0
    %894 = vmatpush2.msra.mxu0 0.0
    %895 = vmatprep.subr.mxu0 0.0
    %896 = vmatpush2.msra.mxu0 0.0
    %897 = vmatprep.subr.mxu0 0.0
    %898 = vmatpush2.msra.mxu0 0.0
    %899 = vmatprep.subr.mxu0 0.0
    %900 = vmatpush2.msra.mxu0 0.0
    %901 = vmatprep.subr.mxu0 0.0
    %902 = vmatpush2.msra.mxu0 0.0
    %903 = vmatprep.subr.mxu0 0.0
    %904 = vmatpush2.msra.mxu0 0.0
    %905 = vmatprep.subr.mxu0 0.0
    %906 = vmatpush2.msra.mxu0 0.0
    %907 = vmatprep.subr.mxu0 0.0
    %908 = vmatpush2.msra.mxu0 0.0
    %909 = vmatprep.subr.mxu0 0.0
    %910 = vmatpush2.msra.mxu0 0.0
    %911 = vmatprep.subr.mxu0 0.0
    %912 = vmatpush2.msra.mxu0 0.0
    %913 = vmatprep.subr.mxu0 0.0
    %914 = vmatpush2.msra.mxu0 0.0
    %915 = vmatprep.subr.mxu0 0.0
    %916 = vmatpush2.msra.mxu0 0.0
    %917 = vmatprep.mubr.f32.mxu0 0.0
    %918 = vmatmul.mubr.f32.gmra.mxu0 %v851
    %v919 = vpop.f32.mrf.mxu0
    %v920 = vadd.f32 %v849, %v919
    %v921 = vpop.f32.mrf.mxu0
    %922 = vdwg.mxu0
    %v923 = vxor.u32 %v689, 2147483648
    %v924 = vmul.f32 %v923, 1.442695
    %v925 = vpow.pop %v924
    %v926 = vadd.f32 %v925, 1.0
    %v927 = vrcp.pop %v926
    %v928 = vmul.f32 1.0, %v927
    %v929 = vmul.f32 %v689, %v928
    %v930 = vmul.f32 %v920, %v929
    %931 = vst.msk [vmem:[#allocation4] sm:$0xff] %vm407, %v930
    %v932 = vld [vmem:[#allocation3] sm:$0xff]
    %v933 = vld [vmem:[#allocation2] sm:$0xff]
    %v934 = vld [vmem:[#allocation10] sm:$0x1]
    %v936 = vlaneseq
    %v937 = vshrl.u32 %v936, 7
    %v938 = vsub.s32 0, %v937
    %v939 = vrot.slane %v934, %v938
    %940 = vrot.lane.b32.xlu0 %v939, 96
    %v941 = vpop.permute.xlu0 %940
    %v943 = vadd.f32 %v933, %v941
    %v944 = vmax.f32 %v943, 0.0
    %vm945 = vcmp.ne.f32.partialorder %v943, %v943
    %v946 = vadd.f32 %v943, 0.0
    %v947 = vand.u32 2147483647, %v943
    %v948 = vsub.f32 0.0, %v947
    %v949 = vmul.f32 %v948, 1.442695
    %v950 = vpow.pop %v949
    %v951 = vadd.f32 %v950, 1.0
    %v952 = vlog2.pop %v951
    %v953 = vmul.f32 %v952, 0.6931472
    %v954 = vmul.f32 -0.5, %v950
    %v955 = vadd.f32 %v954, 1.0
    %v956 = vmul.f32 %v955, %v950
    %v957 = vand.u32 2147483647, %v950
    %vm958 = vcmp.lt.f32.partialorder %v957, 0.0004427343
    %v959 = vsel %vm958, %v956, %v953
    %v960 = vadd.f32 %v944, %v959
    %v961 = vsel %vm945, %v946, %v960
    %v962 = vld [vmem:[#allocation5] sm:$0x1]
    %v963 = vld [vmem:[#allocation8] sm:$0x1]
    %965 = vset.pattern.permute.xlu0 97
    %966 = vperm.xlu0 %965, %v961
    %v967 = vpop.permute.xlu0 %966
    %v969 = vmul.f32 %v387, %v967
    %v970 = vsel %vm407, %v969, 0.0
    %v971 = vrot.slane %v970, 4
    %v972 = vadd.f32 %v970, %v971
    %v973 = vrot.slane %v972, 2
    %v974 = vadd.f32 %v972, %v973
    %v975 = vrot.slane %v974, 1
    %v976 = vadd.f32 %v974, %v975
    %v977 = vmul.f32 %v384, %v976
    %v978 = vsel %vm407, %v977, 0.0
    %979 = vadd.xlane.f32.xlu0 %v978
    %v980 = vpop.xlane.xlu0 %979
    %v981 = vmul.f32 %v387, %v980
    %v982 = vsel %vm407, %v981, 0.0
    %v983 = vrot.slane %v982, 4
    %v984 = vadd.f32 %v982, %v983
    %v985 = vrot.slane %v984, 2
    %v986 = vadd.f32 %v984, %v985
    %v987 = vrot.slane %v986, 1
    %v988 = vadd.f32 %v986, %v987
    %v989 = vsub.f32 %v980, %v988
    %v991 = vlaneseq
    %v992 = vshrl.u32 %v991, 7
    %v993 = vsub.s32 0, %v992
    %v994 = vrot.slane %v962, %v993
    %995 = vset.pattern.permute.xlu0 1
    %996 = vperm.xlu0 %995, %v994
    %v997 = vpop.permute.xlu0 %996
    %v999 = vmul.f32 %v997, %v989
    %v1000 = vmul.f32 %v999, 1.442695
    %v1001 = vpow.pop %v1000
    %v1002 = vsel %vm382, %v1001, 0.0
    %1004 = vrot.lane.b32.xlu0 %v932, 88
    %v1005 = vpop.permute.xlu0 %1004
    %1006 = vrot.lane.b32.xlu0 %v932, 112
    %v1007 = vpop.permute.xlu0 %1006
    %v1008 = vsel %vm407, %v1005, 0
    %v1010 = vsel %vm407, %v1007, 0
    %1012 = vmatprep.subr.mxu0 0.0
    %1013 = vmatpush1.xpose.msra.mxu0 0.0
    %1014 = vmatprep.subr.mxu0 0.0
    %1015 = vmatpush1.xpose.msra.mxu0 0.0
    %1016 = vmatprep.subr.mxu0 0.0
    %1017 = vmatpush1.xpose.msra.mxu0 0.0
    %1018 = vmatprep.subr.mxu0 0.0
    %1019 = vmatpush1.xpose.msra.mxu0 0.0
    %1020 = vmatprep.subr.mxu0 0.0
    %1021 = vmatpush1.xpose.msra.mxu0 0.0
    %1022 = vmatprep.subr.mxu0 0.0
    %1023 = vmatpush1.xpose.msra.mxu0 0.0
    %1024 = vmatprep.subr.mxu0 0.0
    %1025 = vmatpush1.xpose.msra.mxu0 0.0
    %1026 = vmatprep.subr.mxu0 0.0
    %1027 = vmatpush1.xpose.msra.mxu0 0.0
    %1028 = vmatprep.subr.mxu0 0.0
    %1029 = vmatpush1.xpose.msra.mxu0 0.0
    %1030 = vmatprep.subr.mxu0 0.0
    %1031 = vmatpush1.xpose.msra.mxu0 0.0
    %1032 = vmatprep.subr.mxu0 0.0
    %1033 = vmatpush1.xpose.msra.mxu0 0.0
    %1034 = vmatprep.subr.mxu0 0.0
    %1035 = vmatpush1.xpose.msra.mxu0 0.0
    %1036 = vmatprep.subr.mxu0 0.0
    %1037 = vmatpush1.xpose.msra.mxu0 0.0
    %1038 = vmatprep.subr.mxu0 0.0
    %1039 = vmatpush1.xpose.msra.mxu0 0.0
    %1040 = vmatprep.subr.mxu0 0.0
    %1041 = vmatpush1.xpose.msra.mxu0 0.0
    %1042 = vmatprep.subr.mxu0 0.0
    %1043 = vmatpush1.xpose.msra.mxu0 %v1010
    %1044 = vmatprep.subr.mxu0 0.0
    %1045 = vmatpush2.xpose.msra.mxu0 0.0
    %1046 = vmatprep.subr.mxu0 0.0
    %1047 = vmatpush2.xpose.msra.mxu0 0.0
    %1048 = vmatprep.subr.mxu0 0.0
    %1049 = vmatpush2.xpose.msra.mxu0 0.0
    %1050 = vmatprep.subr.mxu0 0.0
    %1051 = vmatpush2.xpose.msra.mxu0 0.0
    %1052 = vmatprep.subr.mxu0 0.0
    %1053 = vmatpush2.xpose.msra.mxu0 0.0
    %1054 = vmatprep.subr.mxu0 0.0
    %1055 = vmatpush2.xpose.msra.mxu0 0.0
    %1056 = vmatprep.subr.mxu0 0.0
    %1057 = vmatpush2.xpose.msra.mxu0 0.0
    %1058 = vmatprep.subr.mxu0 0.0
    %1059 = vmatpush2.xpose.msra.mxu0 0.0
    %1060 = vmatprep.subr.mxu0 0.0
    %1061 = vmatpush2.xpose.msra.mxu0 0.0
    %1062 = vmatprep.subr.mxu0 0.0
    %1063 = vmatpush2.xpose.msra.mxu0 0.0
    %1064 = vmatprep.subr.mxu0 0.0
    %1065 = vmatpush2.xpose.msra.mxu0 0.0
    %1066 = vmatprep.subr.mxu0 0.0
    %1067 = vmatpush2.xpose.msra.mxu0 0.0
    %1068 = vmatprep.subr.mxu0 0.0
    %1069 = vmatpush2.xpose.msra.mxu0 0.0
    %1070 = vmatprep.subr.mxu0 0.0
    %1071 = vmatpush2.xpose.msra.mxu0 0.0
    %1072 = vmatprep.subr.mxu0 0.0
    %1073 = vmatpush2.xpose.msra.mxu0 0.0
    %1074 = vmatprep.subr.mxu0 0.0
    %1075 = vmatpush2.xpose.msra.mxu0 0.0
    %1076 = vmatprep.mubr.f32.mxu0 0.0
    %1077 = vmatmul.mubr.f32.gmra.mxu0 %v1008
    %v1078 = vpop.f32.mrf.mxu0
    %v1079 = vadd.f32 0.0, %v1078
    %v1080 = vpop.f32.mrf.mxu0
    %1081 = vdwg.mxu0
    %v1082 = vmul.f32 %v1079, %v1002
    %v1083 = vmul.f32 %v1082, %v976
    %v1085 = vlaneseq
    %v1086 = vshrl.u32 %v1085, 7
    %v1087 = vsub.s32 0, %v1086
    %v1088 = vrot.slane %v963, %v1087
    %1089 = vset.pattern.permute.xlu0 1
    %1090 = vperm.xlu0 %1089, %v1088
    %v1091 = vpop.permute.xlu0 %1090
    %v1093 = vmul.f32 %v1091, %v932
    %v1095 = vsel %vm407, %v1083, 0
    %1097 = vmatprep.subr.mxu0 0.0
    %1098 = vmatpush1.msra.mxu0 0.0
    %1099 = vmatprep.subr.mxu0 0.0
    %1100 = vmatpush1.msra.mxu0 0.0
    %1101 = vmatprep.subr.mxu0 0.0
    %1102 = vmatpush1.msra.mxu0 0.0
    %1103 = vmatprep.subr.mxu0 0.0
    %1104 = vmatpush1.msra.mxu0 0.0
    %1105 = vmatprep.subr.mxu0 0.0
    %1106 = vmatpush1.msra.mxu0 0.0
    %1107 = vmatprep.subr.mxu0 0.0
    %1108 = vmatpush1.msra.mxu0 0.0
    %1109 = vmatprep.subr.mxu0 0.0
    %1110 = vmatpush1.msra.mxu0 0.0
    %1111 = vmatprep.subr.mxu0 0.0
    %1112 = vmatpush1.msra.mxu0 0.0
    %1113 = vmatprep.subr.mxu0 0.0
    %1114 = vmatpush1.msra.mxu0 0.0
    %1115 = vmatprep.subr.mxu0 0.0
    %1116 = vmatpush1.msra.mxu0 0.0
    %1117 = vmatprep.subr.mxu0 0.0
    %1118 = vmatpush1.msra.mxu0 0.0
    %1119 = vmatprep.subr.mxu0 0.0
    %1120 = vmatpush1.msra.mxu0 0.0
    %1121 = vmatprep.subr.mxu0 0.0
    %1122 = vmatpush1.msra.mxu0 0.0
    %1123 = vmatprep.subr.mxu0 0.0
    %1124 = vmatpush1.msra.mxu0 0.0
    %1125 = vmatprep.subr.mxu0 0.0
    %1126 = vmatpush1.msra.mxu0 0.0
    %1127 = vmatprep.subr.mxu0 0.0
    %1128 = vmatpush1.msra.mxu0 %v932
    %1129 = vmatprep.subr.mxu0 0.0
    %1130 = vmatpush2.msra.mxu0 0.0
    %1131 = vmatprep.subr.mxu0 0.0
    %1132 = vmatpush2.msra.mxu0 0.0
    %1133 = vmatprep.subr.mxu0 0.0
    %1134 = vmatpush2.msra.mxu0 0.0
    %1135 = vmatprep.subr.mxu0 0.0
    %1136 = vmatpush2.msra.mxu0 0.0
    %1137 = vmatprep.subr.mxu0 0.0
    %1138 = vmatpush2.msra.mxu0 0.0
    %1139 = vmatprep.subr.mxu0 0.0
    %1140 = vmatpush2.msra.mxu0 0.0
    %1141 = vmatprep.subr.mxu0 0.0
    %1142 = vmatpush2.msra.mxu0 0.0
    %1143 = vmatprep.subr.mxu0 0.0
    %1144 = vmatpush2.msra.mxu0 0.0
    %1145 = vmatprep.subr.mxu0 0.0
    %1146 = vmatpush2.msra.mxu0 0.0
    %1147 = vmatprep.subr.mxu0 0.0
    %1148 = vmatpush2.msra.mxu0 0.0
    %1149 = vmatprep.subr.mxu0 0.0
    %1150 = vmatpush2.msra.mxu0 0.0
    %1151 = vmatprep.subr.mxu0 0.0
    %1152 = vmatpush2.msra.mxu0 0.0
    %1153 = vmatprep.subr.mxu0 0.0
    %1154 = vmatpush2.msra.mxu0 0.0
    %1155 = vmatprep.subr.mxu0 0.0
    %1156 = vmatpush2.msra.mxu0 0.0
    %1157 = vmatprep.subr.mxu0 0.0
    %1158 = vmatpush2.msra.mxu0 0.0
    %1159 = vmatprep.subr.mxu0 0.0
    %1160 = vmatpush2.msra.mxu0 0.0
    %1161 = vmatprep.mubr.f32.mxu0 0.0
    %1162 = vmatmul.mubr.f32.gmra.mxu0 %v1095
    %v1163 = vpop.f32.mrf.mxu0
    %v1164 = vadd.f32 %v1093, %v1163
    %v1165 = vpop.f32.mrf.mxu0
    %1166 = vdwg.mxu0
    %v1167 = vxor.u32 %v933, 2147483648
    %v1168 = vmul.f32 %v1167, 1.442695
    %v1169 = vpow.pop %v1168
    %v1170 = vadd.f32 %v1169, 1.0
    %v1171 = vrcp.pop %v1170
    %v1172 = vmul.f32 1.0, %v1171
    %v1173 = vmul.f32 %v933, %v1172
    %1175 = vrot.lane.b32.xlu0 %v1173, 120
    %v1176 = vpop.permute.xlu0 %1175
    %v1178 = vmul.f32 %v1164, %v1176
    %1180 = vrot.lane.b32.xlu0 %v1178, 8
    %v1181 = vpop.permute.xlu0 %1180
    %vm1183 = vcmask 130112
    %1184 = vst.msk [vmem:[#allocation4] sm:$0xff] %vm1183, %v1181
    %v1185 = vld [vmem:[#allocation3] sm:$0xff]
    %v1186 = vld [vmem:[#allocation2] sm:$0xff]
    %v1187 = vld [vmem:[#allocation10] sm:$0x1]
    %v1189 = vlaneseq
    %v1190 = vshrl.u32 %v1189, 7
    %v1191 = vsub.s32 0, %v1190
    %v1192 = vrot.slane %v1187, %v1191
    %1193 = vrot.lane.b32.xlu0 %v1192, 96
    %v1194 = vpop.permute.xlu0 %1193
    %v1196 = vadd.f32 %v1186, %v1194
    %v1197 = vmax.f32 %v1196, 0.0
    %vm1198 = vcmp.ne.f32.partialorder %v1196, %v1196
    %v1199 = vadd.f32 %v1196, 0.0
    %v1200 = vand.u32 2147483647, %v1196
    %v1201 = vsub.f32 0.0, %v1200
    %v1202 = vmul.f32 %v1201, 1.442695
    %v1203 = vpow.pop %v1202
    %v1204 = vadd.f32 %v1203, 1.0
    %v1205 = vlog2.pop %v1204
    %v1206 = vmul.f32 %v1205, 0.6931472
    %v1207 = vmul.f32 -0.5, %v1203
    %v1208 = vadd.f32 %v1207, 1.0
    %v1209 = vmul.f32 %v1208, %v1203
    %v1210 = vand.u32 2147483647, %v1203
    %vm1211 = vcmp.lt.f32.partialorder %v1210, 0.0004427343
    %v1212 = vsel %vm1211, %v1209, %v1206
    %v1213 = vadd.f32 %v1197, %v1212
    %v1214 = vsel %vm1198, %v1199, %v1213
    %v1215 = vld [vmem:[#allocation5] sm:$0x1]
    %v1216 = vld [vmem:[#allocation8] sm:$0x1]
    %1218 = vset.pattern.permute.xlu0 98
    %1219 = vperm.xlu0 %1218, %v1214
    %v1220 = vpop.permute.xlu0 %1219
    %v1222 = vmul.f32 %v387, %v1220
    %v1223 = vsel %vm407, %v1222, 0.0
    %v1224 = vrot.slane %v1223, 4
    %v1225 = vadd.f32 %v1223, %v1224
    %v1226 = vrot.slane %v1225, 2
    %v1227 = vadd.f32 %v1225, %v1226
    %v1228 = vrot.slane %v1227, 1
    %v1229 = vadd.f32 %v1227, %v1228
    %v1230 = vmul.f32 %v384, %v1229
    %v1231 = vsel %vm407, %v1230, 0.0
    %1232 = vadd.xlane.f32.xlu0 %v1231
    %v1233 = vpop.xlane.xlu0 %1232
    %v1234 = vmul.f32 %v387, %v1233
    %v1235 = vsel %vm407, %v1234, 0.0
    %v1236 = vrot.slane %v1235, 4
    %v1237 = vadd.f32 %v1235, %v1236
    %v1238 = vrot.slane %v1237, 2
    %v1239 = vadd.f32 %v1237, %v1238
    %v1240 = vrot.slane %v1239, 1
    %v1241 = vadd.f32 %v1239, %v1240
    %v1242 = vsub.f32 %v1233, %v1241
    %v1244 = vlaneseq
    %v1245 = vshrl.u32 %v1244, 7
    %v1246 = vsub.s32 0, %v1245
    %v1247 = vrot.slane %v1215, %v1246
    %1248 = vset.pattern.permute.xlu0 2
    %1249 = vperm.xlu0 %1248, %v1247
    %v1250 = vpop.permute.xlu0 %1249
    %v1252 = vmul.f32 %v1250, %v1242
    %v1253 = vmul.f32 %v1252, 1.442695
    %v1254 = vpow.pop %v1253
    %v1255 = vsel %vm382, %v1254, 0.0
    %1257 = vrot.lane.b32.xlu0 %v1185, 80
    %v1258 = vpop.permute.xlu0 %1257
    %1259 = vrot.lane.b32.xlu0 %v1185, 104
    %v1260 = vpop.permute.xlu0 %1259
    %v1261 = vsel %vm407, %v1258, 0
    %v1263 = vsel %vm407, %v1260, 0
    %1265 = vmatprep.subr.mxu0 0.0
    %1266 = vmatpush1.xpose.msra.mxu0 0.0
    %1267 = vmatprep.subr.mxu0 0.0
    %1268 = vmatpush1.xpose.msra.mxu0 0.0
    %1269 = vmatprep.subr.mxu0 0.0
    %1270 = vmatpush1.xpose.msra.mxu0 0.0
    %1271 = vmatprep.subr.mxu0 0.0
    %1272 = vmatpush1.xpose.msra.mxu0 0.0
    %1273 = vmatprep.subr.mxu0 0.0
    %1274 = vmatpush1.xpose.msra.mxu0 0.0
    %1275 = vmatprep.subr.mxu0 0.0
    %1276 = vmatpush1.xpose.msra.mxu0 0.0
    %1277 = vmatprep.subr.mxu0 0.0
    %1278 = vmatpush1.xpose.msra.mxu0 0.0
    %1279 = vmatprep.subr.mxu0 0.0
    %1280 = vmatpush1.xpose.msra.mxu0 0.0
    %1281 = vmatprep.subr.mxu0 0.0
    %1282 = vmatpush1.xpose.msra.mxu0 0.0
    %1283 = vmatprep.subr.mxu0 0.0
    %1284 = vmatpush1.xpose.msra.mxu0 0.0
    %1285 = vmatprep.subr.mxu0 0.0
    %1286 = vmatpush1.xpose.msra.mxu0 0.0
    %1287 = vmatprep.subr.mxu0 0.0
    %1288 = vmatpush1.xpose.msra.mxu0 0.0
    %1289 = vmatprep.subr.mxu0 0.0
    %1290 = vmatpush1.xpose.msra.mxu0 0.0
    %1291 = vmatprep.subr.mxu0 0.0
    %1292 = vmatpush1.xpose.msra.mxu0 0.0
    %1293 = vmatprep.subr.mxu0 0.0
    %1294 = vmatpush1.xpose.msra.mxu0 0.0
    %1295 = vmatprep.subr.mxu0 0.0
    %1296 = vmatpush1.xpose.msra.mxu0 %v1263
    %1297 = vmatprep.subr.mxu0 0.0
    %1298 = vmatpush2.xpose.msra.mxu0 0.0
    %1299 = vmatprep.subr.mxu0 0.0
    %1300 = vmatpush2.xpose.msra.mxu0 0.0
    %1301 = vmatprep.subr.mxu0 0.0
    %1302 = vmatpush2.xpose.msra.mxu0 0.0
    %1303 = vmatprep.subr.mxu0 0.0
    %1304 = vmatpush2.xpose.msra.mxu0 0.0
    %1305 = vmatprep.subr.mxu0 0.0
    %1306 = vmatpush2.xpose.msra.mxu0 0.0
    %1307 = vmatprep.subr.mxu0 0.0
    %1308 = vmatpush2.xpose.msra.mxu0 0.0
    %1309 = vmatprep.subr.mxu0 0.0
    %1310 = vmatpush2.xpose.msra.mxu0 0.0
    %1311 = vmatprep.subr.mxu0 0.0
    %1312 = vmatpush2.xpose.msra.mxu0 0.0
    %1313 = vmatprep.subr.mxu0 0.0
    %1314 = vmatpush2.xpose.msra.mxu0 0.0
    %1315 = vmatprep.subr.mxu0 0.0
    %1316 = vmatpush2.xpose.msra.mxu0 0.0
    %1317 = vmatprep.subr.mxu0 0.0
    %1318 = vmatpush2.xpose.msra.mxu0 0.0
    %1319 = vmatprep.subr.mxu0 0.0
    %1320 = vmatpush2.xpose.msra.mxu0 0.0
    %1321 = vmatprep.subr.mxu0 0.0
    %1322 = vmatpush2.xpose.msra.mxu0 0.0
    %1323 = vmatprep.subr.mxu0 0.0
    %1324 = vmatpush2.xpose.msra.mxu0 0.0
    %1325 = vmatprep.subr.mxu0 0.0
    %1326 = vmatpush2.xpose.msra.mxu0 0.0
    %1327 = vmatprep.subr.mxu0 0.0
    %1328 = vmatpush2.xpose.msra.mxu0 0.0
    %1329 = vmatprep.mubr.f32.mxu0 0.0
    %1330 = vmatmul.mubr.f32.gmra.mxu0 %v1261
    %v1331 = vpop.f32.mrf.mxu0
    %v1332 = vadd.f32 0.0, %v1331
    %v1333 = vpop.f32.mrf.mxu0
    %1334 = vdwg.mxu0
    %v1335 = vmul.f32 %v1332, %v1255
    %v1336 = vmul.f32 %v1335, %v1229
    %v1338 = vlaneseq
    %v1339 = vshrl.u32 %v1338, 7
    %v1340 = vsub.s32 0, %v1339
    %v1341 = vrot.slane %v1216, %v1340
    %1342 = vset.pattern.permute.xlu0 2
    %1343 = vperm.xlu0 %1342, %v1341
    %v1344 = vpop.permute.xlu0 %1343
    %v1346 = vmul.f32 %v1344, %v1185
    %1347 = vrot.lane.b32.xlu0 %v1185, 120
    %v1348 = vpop.permute.xlu0 %1347
    %1351 = vrot.lane.b32.xlu0 %v1346, 120
    %v1352 = vpop.permute.xlu0 %1351
    %v1355 = vsel %vm407, %v1336, 0
    %1357 = vmatprep.subr.mxu0 0.0
    %1358 = vmatpush1.msra.mxu0 0.0
    %1359 = vmatprep.subr.mxu0 0.0
    %1360 = vmatpush1.msra.mxu0 0.0
    %1361 = vmatprep.subr.mxu0 0.0
    %1362 = vmatpush1.msra.mxu0 0.0
    %1363 = vmatprep.subr.mxu0 0.0
    %1364 = vmatpush1.msra.mxu0 0.0
    %1365 = vmatprep.subr.mxu0 0.0
    %1366 = vmatpush1.msra.mxu0 0.0
    %1367 = vmatprep.subr.mxu0 0.0
    %1368 = vmatpush1.msra.mxu0 0.0
    %1369 = vmatprep.subr.mxu0 0.0
    %1370 = vmatpush1.msra.mxu0 0.0
    %1371 = vmatprep.subr.mxu0 0.0
    %1372 = vmatpush1.msra.mxu0 0.0
    %1373 = vmatprep.subr.mxu0 0.0
    %1374 = vmatpush1.msra.mxu0 0.0
    %1375 = vmatprep.subr.mxu0 0.0
    %1376 = vmatpush1.msra.mxu0 0.0
    %1377 = vmatprep.subr.mxu0 0.0
    %1378 = vmatpush1.msra.mxu0 0.0
    %1379 = vmatprep.subr.mxu0 0.0
    %1380 = vmatpush1.msra.mxu0 0.0
    %1381 = vmatprep.subr.mxu0 0.0
    %1382 = vmatpush1.msra.mxu0 0.0
    %1383 = vmatprep.subr.mxu0 0.0
    %1384 = vmatpush1.msra.mxu0 0.0
    %1385 = vmatprep.subr.mxu0 0.0
    %1386 = vmatpush1.msra.mxu0 0.0
    %1387 = vmatprep.subr.mxu0 0.0
    %1388 = vmatpush1.msra.mxu0 %v1348
    %1389 = vmatprep.subr.mxu0 0.0
    %1390 = vmatpush2.msra.mxu0 0.0
    %1391 = vmatprep.subr.mxu0 0.0
    %1392 = vmatpush2.msra.mxu0 0.0
    %1393 = vmatprep.subr.mxu0 0.0
    %1394 = vmatpush2.msra.mxu0 0.0
    %1395 = vmatprep.subr.mxu0 0.0
    %1396 = vmatpush2.msra.mxu0 0.0
    %1397 = vmatprep.subr.mxu0 0.0
    %1398 = vmatpush2.msra.mxu0 0.0
    %1399 = vmatprep.subr.mxu0 0.0
    %1400 = vmatpush2.msra.mxu0 0.0
    %1401 = vmatprep.subr.mxu0 0.0
    %1402 = vmatpush2.msra.mxu0 0.0
    %1403 = vmatprep.subr.mxu0 0.0
    %1404 = vmatpush2.msra.mxu0 0.0
    %1405 = vmatprep.subr.mxu0 0.0
    %1406 = vmatpush2.msra.mxu0 0.0
    %1407 = vmatprep.subr.mxu0 0.0
    %1408 = vmatpush2.msra.mxu0 0.0
    %1409 = vmatprep.subr.mxu0 0.0
    %1410 = vmatpush2.msra.mxu0 0.0
    %1411 = vmatprep.subr.mxu0 0.0
    %1412 = vmatpush2.msra.mxu0 0.0
    %1413 = vmatprep.subr.mxu0 0.0
    %1414 = vmatpush2.msra.mxu0 0.0
    %1415 = vmatprep.subr.mxu0 0.0
    %1416 = vmatpush2.msra.mxu0 0.0
    %1417 = vmatprep.subr.mxu0 0.0
    %1418 = vmatpush2.msra.mxu0 0.0
    %1419 = vmatprep.subr.mxu0 0.0
    %1420 = vmatpush2.msra.mxu0 0.0
    %1421 = vmatprep.mubr.f32.mxu0 0.0
    %1422 = vmatmul.mubr.f32.gmra.mxu0 %v1355
    %v1423 = vpop.f32.mrf.mxu0
    %v1424 = vadd.f32 %v1352, %v1423
    %v1425 = vpop.f32.mrf.mxu0
    %1426 = vdwg.mxu0
    %v1427 = vxor.u32 %v1186, 2147483648
    %v1428 = vmul.f32 %v1427, 1.442695
    %v1429 = vpow.pop %v1428
    %v1430 = vadd.f32 %v1429, 1.0
    %v1431 = vrcp.pop %v1430
    %v1432 = vmul.f32 1.0, %v1431
    %v1433 = vmul.f32 %v1186, %v1432
    %1435 = vrot.lane.b32.xlu0 %v1433, 112
    %v1436 = vpop.permute.xlu0 %1435
    %v1438 = vmul.f32 %v1424, %v1436
    %1440 = vrot.lane.b32.xlu0 %v1438, 16
    %v1441 = vpop.permute.xlu0 %1440
    %vm1443 = vcmask 195712
    %1444 = vst.msk [vmem:[#allocation4] sm:$0xff] %vm1443, %v1441
    %v1445 = vld [vmem:[#allocation3] sm:$0xff]
    %v1446 = vld [vmem:[#allocation2] sm:$0xff]
    %v1447 = vld [vmem:[#allocation10] sm:$0x1]
    %v1449 = vlaneseq
    %v1450 = vshrl.u32 %v1449, 7
    %v1451 = vsub.s32 0, %v1450
    %v1452 = vrot.slane %v1447, %v1451
    %1453 = vrot.lane.b32.xlu0 %v1452, 96
    %v1454 = vpop.permute.xlu0 %1453
    %v1456 = vadd.f32 %v1446, %v1454
    %v1457 = vmax.f32 %v1456, 0.0
    %vm1458 = vcmp.ne.f32.partialorder %v1456, %v1456
    %v1459 = vadd.f32 %v1456, 0.0
    %v1460 = vand.u32 2147483647, %v1456
    %v1461 = vsub.f32 0.0, %v1460
    %v1462 = vmul.f32 %v1461, 1.442695
    %v1463 = vpow.pop %v1462
    %v1464 = vadd.f32 %v1463, 1.0
    %v1465 = vlog2.pop %v1464
    %v1466 = vmul.f32 %v1465, 0.6931472
    %v1467 = vmul.f32 -0.5, %v1463
    %v1468 = vadd.f32 %v1467, 1.0
    %v1469 = vmul.f32 %v1468, %v1463
    %v1470 = vand.u32 2147483647, %v1463
    %vm1471 = vcmp.lt.f32.partialorder %v1470, 0.0004427343
    %v1472 = vsel %vm1471, %v1469, %v1466
    %v1473 = vadd.f32 %v1457, %v1472
    %v1474 = vsel %vm1458, %v1459, %v1473
    %v1475 = vld [vmem:[#allocation5] sm:$0x1]
    %v1476 = vld [vmem:[#allocation8] sm:$0x1]
    %1478 = vset.pattern.permute.xlu0 99
    %1479 = vperm.xlu0 %1478, %v1474
    %v1480 = vpop.permute.xlu0 %1479
    %v1482 = vmul.f32 %v387, %v1480
    %v1483 = vsel %vm407, %v1482, 0.0
    %v1484 = vrot.slane %v1483, 4
    %v1485 = vadd.f32 %v1483, %v1484
    %v1486 = vrot.slane %v1485, 2
    %v1487 = vadd.f32 %v1485, %v1486
    %v1488 = vrot.slane %v1487, 1
    %v1489 = vadd.f32 %v1487, %v1488
    %v1490 = vmul.f32 %v384, %v1489
    %v1491 = vsel %vm407, %v1490, 0.0
    %1492 = vadd.xlane.f32.xlu0 %v1491
    %v1493 = vpop.xlane.xlu0 %1492
    %v1494 = vmul.f32 %v387, %v1493
    %v1495 = vsel %vm407, %v1494, 0.0
    %v1496 = vrot.slane %v1495, 4
    %v1497 = vadd.f32 %v1495, %v1496
    %v1498 = vrot.slane %v1497, 2
    %v1499 = vadd.f32 %v1497, %v1498
    %v1500 = vrot.slane %v1499, 1
    %v1501 = vadd.f32 %v1499, %v1500
    %v1502 = vsub.f32 %v1493, %v1501
    %v1504 = vlaneseq
    %v1505 = vshrl.u32 %v1504, 7
    %v1506 = vsub.s32 0, %v1505
    %v1507 = vrot.slane %v1475, %v1506
    %1508 = vset.pattern.permute.xlu0 3
    %1509 = vperm.xlu0 %1508, %v1507
    %v1510 = vpop.permute.xlu0 %1509
    %v1512 = vmul.f32 %v1510, %v1502
    %v1513 = vmul.f32 %v1512, 1.442695
    %v1514 = vpow.pop %v1513
    %v1515 = vsel %vm382, %v1514, 0.0
    %1517 = vrot.lane.b32.xlu0 %v1445, 72
    %v1518 = vpop.permute.xlu0 %1517
    %1519 = vrot.lane.b32.xlu0 %v1445, 104
    %v1520 = vpop.permute.xlu0 %1519
    %v1521 = vsel %vm407, %v1518, 0
    %v1523 = vsel %vm407, %v1520, 0
    %1525 = vmatprep.subr.mxu0 0.0
    %1526 = vmatpush1.xpose.msra.mxu0 0.0
    %1527 = vmatprep.subr.mxu0 0.0
    %1528 = vmatpush1.xpose.msra.mxu0 0.0
    %1529 = vmatprep.subr.mxu0 0.0
    %1530 = vmatpush1.xpose.msra.mxu0 0.0
    %1531 = vmatprep.subr.mxu0 0.0
    %1532 = vmatpush1.xpose.msra.mxu0 0.0
    %1533 = vmatprep.subr.mxu0 0.0
    %1534 = vmatpush1.xpose.msra.mxu0 0.0
    %1535 = vmatprep.subr.mxu0 0.0
    %1536 = vmatpush1.xpose.msra.mxu0 0.0
    %1537 = vmatprep.subr.mxu0 0.0
    %1538 = vmatpush1.xpose.msra.mxu0 0.0
    %1539 = vmatprep.subr.mxu0 0.0
    %1540 = vmatpush1.xpose.msra.mxu0 0.0
    %1541 = vmatprep.subr.mxu0 0.0
    %1542 = vmatpush1.xpose.msra.mxu0 0.0
    %1543 = vmatprep.subr.mxu0 0.0
    %1544 = vmatpush1.xpose.msra.mxu0 0.0
    %1545 = vmatprep.subr.mxu0 0.0
    %1546 = vmatpush1.xpose.msra.mxu0 0.0
    %1547 = vmatprep.subr.mxu0 0.0
    %1548 = vmatpush1.xpose.msra.mxu0 0.0
    %1549 = vmatprep.subr.mxu0 0.0
    %1550 = vmatpush1.xpose.msra.mxu0 0.0
    %1551 = vmatprep.subr.mxu0 0.0
    %1552 = vmatpush1.xpose.msra.mxu0 0.0
    %1553 = vmatprep.subr.mxu0 0.0
    %1554 = vmatpush1.xpose.msra.mxu0 0.0
    %1555 = vmatprep.subr.mxu0 0.0
    %1556 = vmatpush1.xpose.msra.mxu0 %v1523
    %1557 = vmatprep.subr.mxu0 0.0
    %1558 = vmatpush2.xpose.msra.mxu0 0.0
    %1559 = vmatprep.subr.mxu0 0.0
    %1560 = vmatpush2.xpose.msra.mxu0 0.0
    %1561 = vmatprep.subr.mxu0 0.0
    %1562 = vmatpush2.xpose.msra.mxu0 0.0
    %1563 = vmatprep.subr.mxu0 0.0
    %1564 = vmatpush2.xpose.msra.mxu0 0.0
    %1565 = vmatprep.subr.mxu0 0.0
    %1566 = vmatpush2.xpose.msra.mxu0 0.0
    %1567 = vmatprep.subr.mxu0 0.0
    %1568 = vmatpush2.xpose.msra.mxu0 0.0
    %1569 = vmatprep.subr.mxu0 0.0
    %1570 = vmatpush2.xpose.msra.mxu0 0.0
    %1571 = vmatprep.subr.mxu0 0.0
    %1572 = vmatpush2.xpose.msra.mxu0 0.0
    %1573 = vmatprep.subr.mxu0 0.0
    %1574 = vmatpush2.xpose.msra.mxu0 0.0
    %1575 = vmatprep.subr.mxu0 0.0
    %1576 = vmatpush2.xpose.msra.mxu0 0.0
    %1577 = vmatprep.subr.mxu0 0.0
    %1578 = vmatpush2.xpose.msra.mxu0 0.0
    %1579 = vmatprep.subr.mxu0 0.0
    %1580 = vmatpush2.xpose.msra.mxu0 0.0
    %1581 = vmatprep.subr.mxu0 0.0
    %1582 = vmatpush2.xpose.msra.mxu0 0.0
    %1583 = vmatprep.subr.mxu0 0.0
    %1584 = vmatpush2.xpose.msra.mxu0 0.0
    %1585 = vmatprep.subr.mxu0 0.0
    %1586 = vmatpush2.xpose.msra.mxu0 0.0
    %1587 = vmatprep.subr.mxu0 0.0
    %1588 = vmatpush2.xpose.msra.mxu0 0.0
    %1589 = vmatprep.mubr.f32.mxu0 0.0
    %1590 = vmatmul.mubr.f32.gmra.mxu0 %v1521
    %v1591 = vpop.f32.mrf.mxu0
    %v1592 = vadd.f32 0.0, %v1591
    %v1593 = vpop.f32.mrf.mxu0
    %1594 = vdwg.mxu0
    %v1595 = vmul.f32 %v1592, %v1515
    %v1596 = vmul.f32 %v1595, %v1489
    %v1598 = vlaneseq
    %v1599 = vshrl.u32 %v1598, 7
    %v1600 = vsub.s32 0, %v1599
    %v1601 = vrot.slane %v1476, %v1600
    %1602 = vset.pattern.permute.xlu0 3
    %1603 = vperm.xlu0 %1602, %v1601
    %v1604 = vpop.permute.xlu0 %1603
    %v1606 = vmul.f32 %v1604, %v1445
    %1607 = vrot.lane.b32.xlu0 %v1445, 120
    %v1608 = vpop.permute.xlu0 %1607
    %1611 = vrot.lane.b32.xlu0 %v1606, 120
    %v1612 = vpop.permute.xlu0 %1611
    %v1615 = vsel %vm407, %v1596, 0
    %1617 = vmatprep.subr.mxu0 0.0
    %1618 = vmatpush1.msra.mxu0 0.0
    %1619 = vmatprep.subr.mxu0 0.0
    %1620 = vmatpush1.msra.mxu0 0.0
    %1621 = vmatprep.subr.mxu0 0.0
    %1622 = vmatpush1.msra.mxu0 0.0
    %1623 = vmatprep.subr.mxu0 0.0
    %1624 = vmatpush1.msra.mxu0 0.0
    %1625 = vmatprep.subr.mxu0 0.0
    %1626 = vmatpush1.msra.mxu0 0.0
    %1627 = vmatprep.subr.mxu0 0.0
    %1628 = vmatpush1.msra.mxu0 0.0
    %1629 = vmatprep.subr.mxu0 0.0
    %1630 = vmatpush1.msra.mxu0 0.0
    %1631 = vmatprep.subr.mxu0 0.0
    %1632 = vmatpush1.msra.mxu0 0.0
    %1633 = vmatprep.subr.mxu0 0.0
    %1634 = vmatpush1.msra.mxu0 0.0
    %1635 = vmatprep.subr.mxu0 0.0
    %1636 = vmatpush1.msra.mxu0 0.0
    %1637 = vmatprep.subr.mxu0 0.0
    %1638 = vmatpush1.msra.mxu0 0.0
    %1639 = vmatprep.subr.mxu0 0.0
    %1640 = vmatpush1.msra.mxu0 0.0
    %1641 = vmatprep.subr.mxu0 0.0
    %1642 = vmatpush1.msra.mxu0 0.0
    %1643 = vmatprep.subr.mxu0 0.0
    %1644 = vmatpush1.msra.mxu0 0.0
    %1645 = vmatprep.subr.mxu0 0.0
    %1646 = vmatpush1.msra.mxu0 0.0
    %1647 = vmatprep.subr.mxu0 0.0
    %1648 = vmatpush1.msra.mxu0 %v1608
    %1649 = vmatprep.subr.mxu0 0.0
    %1650 = vmatpush2.msra.mxu0 0.0
    %1651 = vmatprep.subr.mxu0 0.0
    %1652 = vmatpush2.msra.mxu0 0.0
    %1653 = vmatprep.subr.mxu0 0.0
    %1654 = vmatpush2.msra.mxu0 0.0
    %1655 = vmatprep.subr.mxu0 0.0
    %1656 = vmatpush2.msra.mxu0 0.0
    %1657 = vmatprep.subr.mxu0 0.0
    %1658 = vmatpush2.msra.mxu0 0.0
    %1659 = vmatprep.subr.mxu0 0.0
    %1660 = vmatpush2.msra.mxu0 0.0
    %1661 = vmatprep.subr.mxu0 0.0
    %1662 = vmatpush2.msra.mxu0 0.0
    %1663 = vmatprep.subr.mxu0 0.0
    %1664 = vmatpush2.msra.mxu0 0.0
    %1665 = vmatprep.subr.mxu0 0.0
    %1666 = vmatpush2.msra.mxu0 0.0
    %1667 = vmatprep.subr.mxu0 0.0
    %1668 = vmatpush2.msra.mxu0 0.0
    %1669 = vmatprep.subr.mxu0 0.0
    %1670 = vmatpush2.msra.mxu0 0.0
    %1671 = vmatprep.subr.mxu0 0.0
    %1672 = vmatpush2.msra.mxu0 0.0
    %1673 = vmatprep.subr.mxu0 0.0
    %1674 = vmatpush2.msra.mxu0 0.0
    %1675 = vmatprep.subr.mxu0 0.0
    %1676 = vmatpush2.msra.mxu0 0.0
    %1677 = vmatprep.subr.mxu0 0.0
    %1678 = vmatpush2.msra.mxu0 0.0
    %1679 = vmatprep.subr.mxu0 0.0
    %1680 = vmatpush2.msra.mxu0 0.0
    %1681 = vmatprep.mubr.f32.mxu0 0.0
    %1682 = vmatmul.mubr.f32.gmra.mxu0 %v1615
    %v1683 = vpop.f32.mrf.mxu0
    %v1684 = vadd.f32 %v1612, %v1683
    %v1685 = vpop.f32.mrf.mxu0
    %1686 = vdwg.mxu0
    %v1687 = vxor.u32 %v1446, 2147483648
    %v1688 = vmul.f32 %v1687, 1.442695
    %v1689 = vpow.pop %v1688
    %v1690 = vadd.f32 %v1689, 1.0
    %v1691 = vrcp.pop %v1690
    %v1692 = vmul.f32 1.0, %v1691
    %v1693 = vmul.f32 %v1446, %v1692
    %1695 = vrot.lane.b32.xlu0 %v1693, 104
    %v1696 = vpop.permute.xlu0 %1695
    %v1698 = vmul.f32 %v1684, %v1696
    %1700 = vrot.lane.b32.xlu0 %v1698, 24
    %v1701 = vpop.permute.xlu0 %1700
    %vm1703 = vcmask 261312
    %1704 = vst.msk [vmem:[#allocation4] sm:$0xff] %vm1703, %v1701
    %v1705 = vld [vmem:[#allocation4] sm:$0xff]
    %v1706 = vmul.f32 %v1705, %v1705
    %v1707 = vsel %vm108, %v1706, 0.0
    %1708 = vadd.xlane.f32.xlu0 %v1707
    %v1709 = vpop.xlane.xlu0 %1708
    %v1710 = vmul.f32 %v1709, %v115
    %v1711 = vadd.f32 %v1710, 1e-05
    %v1712 = vrsqrt.pop %v1711
    %v1713 = vmul.f32 %v1705, %v1712
    %v1714 = vld [vmem:[#allocation11] sm:$0x1]
    %v1716 = vlaneseq
    %v1717 = vshrl.u32 %v1716, 7
    %v1718 = vsub.s32 0, %v1717
    %v1719 = vrot.slane %v1714, %v1718
    %v1721 = vmul.f32 %v1713, %v1719
    %v1722 = vld [vmem:[%s11] sm:$0xff]
    %v1723 = vld [vmem:[%s11 + $0x8] sm:$0xff]
    %v1724 = vld [vmem:[%s11 + $0x10] sm:$0xff]
    %v1725 = vld [vmem:[%s11 + $0x18] sm:$0xff]
    %v1727 = vsel %vm108, %v1721, 0
    %1729 = vmatprep.subr.mxu0 0.0
    %1730 = vmatpush1.msra.mxu0 0.0
    %1731 = vmatprep.subr.mxu0 0.0
    %1732 = vmatpush1.msra.mxu0 0.0
    %1733 = vmatprep.subr.mxu0 0.0
    %1734 = vmatpush1.msra.mxu0 0.0
    %1735 = vmatprep.subr.mxu0 0.0
    %1736 = vmatpush1.msra.mxu0 0.0
    %1737 = vmatprep.subr.mxu0 0.0
    %1738 = vmatpush1.msra.mxu0 0.0
    %1739 = vmatprep.subr.mxu0 0.0
    %1740 = vmatpush1.msra.mxu0 0.0
    %1741 = vmatprep.subr.mxu0 0.0
    %1742 = vmatpush1.msra.mxu0 0.0
    %1743 = vmatprep.subr.mxu0 0.0
    %1744 = vmatpush1.msra.mxu0 0.0
    %1745 = vmatprep.subr.mxu0 0.0
    %1746 = vmatpush1.msra.mxu0 0.0
    %1747 = vmatprep.subr.mxu0 0.0
    %1748 = vmatpush1.msra.mxu0 0.0
    %1749 = vmatprep.subr.mxu0 0.0
    %1750 = vmatpush1.msra.mxu0 0.0
    %1751 = vmatprep.subr.mxu0 0.0
    %1752 = vmatpush1.msra.mxu0 0.0
    %1753 = vmatprep.subr.mxu0 0.0
    %1754 = vmatpush1.msra.mxu0 %v1725
    %1755 = vmatprep.subr.mxu0 0.0
    %1756 = vmatpush1.msra.mxu0 %v1724
    %1757 = vmatprep.subr.mxu0 0.0
    %1758 = vmatpush1.msra.mxu0 %v1723
    %1759 = vmatprep.subr.mxu0 0.0
    %1760 = vmatpush1.msra.mxu0 %v1722
    %1761 = vmatprep.subr.mxu0 0.0
    %1762 = vmatpush2.msra.mxu0 0.0
    %1763 = vmatprep.subr.mxu0 0.0
    %1764 = vmatpush2.msra.mxu0 0.0
    %1765 = vmatprep.subr.mxu0 0.0
    %1766 = vmatpush2.msra.mxu0 0.0
    %1767 = vmatprep.subr.mxu0 0.0
    %1768 = vmatpush2.msra.mxu0 0.0
    %1769 = vmatprep.subr.mxu0 0.0
    %1770 = vmatpush2.msra.mxu0 0.0
    %1771 = vmatprep.subr.mxu0 0.0
    %1772 = vmatpush2.msra.mxu0 0.0
    %1773 = vmatprep.subr.mxu0 0.0
    %1774 = vmatpush2.msra.mxu0 0.0
    %1775 = vmatprep.subr.mxu0 0.0
    %1776 = vmatpush2.msra.mxu0 0.0
    %1777 = vmatprep.subr.mxu0 0.0
    %1778 = vmatpush2.msra.mxu0 0.0
    %1779 = vmatprep.subr.mxu0 0.0
    %1780 = vmatpush2.msra.mxu0 0.0
    %1781 = vmatprep.subr.mxu0 0.0
    %1782 = vmatpush2.msra.mxu0 0.0
    %1783 = vmatprep.subr.mxu0 0.0
    %1784 = vmatpush2.msra.mxu0 0.0
    %1785 = vmatprep.subr.mxu0 0.0
    %1786 = vmatpush2.msra.mxu0 0.0
    %1787 = vmatprep.subr.mxu0 0.0
    %1788 = vmatpush2.msra.mxu0 0.0
    %1789 = vmatprep.subr.mxu0 0.0
    %1790 = vmatpush2.msra.mxu0 0.0
    %1791 = vmatprep.subr.mxu0 0.0
    %1792 = vmatpush2.msra.mxu0 0.0
    %1793 = vmatprep.mubr.f32.mxu0 0.0
    %1794 = vmatmul.mubr.f32.gmra.mxu0 %v1727
    %v1795 = vpop.f32.mrf.mxu0
    %v1796 = vadd.f32 %v370, %v1795
    %v1797 = vpop.f32.mrf.mxu0
    %1798 = vdwg.mxu0
    %v1799 = vadd.f32 %v1796, %v106
    %1800 = vst.msk [vmem:[#allocation14] sm:$0xff] %vm108, %v1799
    %v1801 = vld [vmem:[#allocation2 + $0x10] sm:$0xff]
    %v1802 = vld [vmem:[%s5 + $0x3] sm:$0x1]
    %v1803 = vlaneseq
    %v1804 = vshrl.u32 %v1803, 7
    %v1805 = vsub.s32 0, %v1804
    %v1806 = vrot.slane %v1802, %v1805
    %1808 = vrot.lane.b32.xlu0 %v1806, 32
    %v1809 = vpop.permute.xlu0 %1808
    %v1811 = vmul.f32 %v1801, %v1809
    %1813 = vrot.lane.b32.xlu0 %v1801, 96
    %v1814 = vpop.permute.xlu0 %1813
    %1816 = vmatprep.subr.mxu0 0.0
    %1817 = vmatpush1.msra.mxu0 0.0
    %1818 = vmatprep.subr.mxu0 0.0
    %1819 = vmatpush1.msra.mxu0 0.0
    %1820 = vmatprep.subr.mxu0 0.0
    %1821 = vmatpush1.msra.mxu0 0.0
    %1822 = vmatprep.subr.mxu0 0.0
    %1823 = vmatpush1.msra.mxu0 0.0
    %1824 = vmatprep.subr.mxu0 0.0
    %1825 = vmatpush1.msra.mxu0 0.0
    %1826 = vmatprep.subr.mxu0 0.0
    %1827 = vmatpush1.msra.mxu0 0.0
    %1828 = vmatprep.subr.mxu0 0.0
    %1829 = vmatpush1.msra.mxu0 0.0
    %1830 = vmatprep.subr.mxu0 0.0
    %1831 = vmatpush1.msra.mxu0 0.0
    %1832 = vmatprep.subr.mxu0 0.0
    %1833 = vmatpush1.msra.mxu0 0.0
    %1834 = vmatprep.subr.mxu0 0.0
    %1835 = vmatpush1.msra.mxu0 0.0
    %1836 = vmatprep.subr.mxu0 0.0
    %1837 = vmatpush1.msra.mxu0 0.0
    %1838 = vmatprep.subr.mxu0 0.0
    %1839 = vmatpush1.msra.mxu0 0.0
    %1840 = vmatprep.subr.mxu0 0.0
    %1841 = vmatpush1.msra.mxu0 0.0
    %1842 = vmatprep.subr.mxu0 0.0
    %1843 = vmatpush1.msra.mxu0 0.0
    %1844 = vmatprep.subr.mxu0 0.0
    %1845 = vmatpush1.msra.mxu0 0.0
    %1846 = vmatprep.subr.mxu0 0.0
    %1847 = vmatpush1.msra.mxu0 %v1814
    %1848 = vmatprep.subr.mxu0 0.0
    %1849 = vmatpush2.msra.mxu0 0.0
    %1850 = vmatprep.subr.mxu0 0.0
    %1851 = vmatpush2.msra.mxu0 0.0
    %1852 = vmatprep.subr.mxu0 0.0
    %1853 = vmatpush2.msra.mxu0 0.0
    %1854 = vmatprep.subr.mxu0 0.0
    %1855 = vmatpush2.msra.mxu0 0.0
    %1856 = vmatprep.subr.mxu0 0.0
    %1857 = vmatpush2.msra.mxu0 0.0
    %1858 = vmatprep.subr.mxu0 0.0
    %1859 = vmatpush2.msra.mxu0 0.0
    %1860 = vmatprep.subr.mxu0 0.0
    %1861 = vmatpush2.msra.mxu0 0.0
    %1862 = vmatprep.subr.mxu0 0.0
    %1863 = vmatpush2.msra.mxu0 0.0
    %1864 = vmatprep.subr.mxu0 0.0
    %1865 = vmatpush2.msra.mxu0 0.0
    %1866 = vmatprep.subr.mxu0 0.0
    %1867 = vmatpush2.msra.mxu0 0.0
    %1868 = vmatprep.subr.mxu0 0.0
    %1869 = vmatpush2.msra.mxu0 0.0
    %1870 = vmatprep.subr.mxu0 0.0
    %1871 = vmatpush2.msra.mxu0 0.0
    %1872 = vmatprep.subr.mxu0 0.0
    %1873 = vmatpush2.msra.mxu0 0.0
    %1874 = vmatprep.subr.mxu0 0.0
    %1875 = vmatpush2.msra.mxu0 0.0
    %1876 = vmatprep.subr.mxu0 0.0
    %1877 = vmatpush2.msra.mxu0 0.0
    %1878 = vmatprep.subr.mxu0 0.0
    %1879 = vmatpush2.msra.mxu0 0.0
    %1880 = vmatprep.mubr.f32.mxu0 0.0
    %1881 = vmatmul.mubr.f32.gmra.mxu0 %v409
    %v1882 = vpop.f32.mrf.mxu0
    %v1883 = vadd.f32 0.0, %v1882
    %v1884 = vpop.f32.mrf.mxu0
    %1885 = vdwg.mxu0
    %v1886 = vld [vmem:[%s5] sm:$0x1]
    %v1887 = vlaneseq
    %v1888 = vshrl.u32 %v1887, 7
    %v1889 = vsub.s32 0, %v1888
    %v1890 = vrot.slane %v1886, %v1889
    %v1891 = vmul.f32 %v1883, %v1890
    %1893 = vrot.lane.b32.xlu0 %v1891, 32
    %v1894 = vpop.permute.xlu0 %1893
    %v1896 = vadd.f32 %v1811, %v1894
    %1897 = vmatprep.subr.mxu0 0.0
    %1898 = vmatpush1.msra.mxu0 0.0
    %1899 = vmatprep.subr.mxu0 0.0
    %1900 = vmatpush1.msra.mxu0 0.0
    %1901 = vmatprep.subr.mxu0 0.0
    %1902 = vmatpush1.msra.mxu0 0.0
    %1903 = vmatprep.subr.mxu0 0.0
    %1904 = vmatpush1.msra.mxu0 0.0
    %1905 = vmatprep.subr.mxu0 0.0
    %1906 = vmatpush1.msra.mxu0 0.0
    %1907 = vmatprep.subr.mxu0 0.0
    %1908 = vmatpush1.msra.mxu0 0.0
    %1909 = vmatprep.subr.mxu0 0.0
    %1910 = vmatpush1.msra.mxu0 0.0
    %1911 = vmatprep.subr.mxu0 0.0
    %1912 = vmatpush1.msra.mxu0 0.0
    %1913 = vmatprep.subr.mxu0 0.0
    %1914 = vmatpush1.msra.mxu0 0.0
    %1915 = vmatprep.subr.mxu0 0.0
    %1916 = vmatpush1.msra.mxu0 0.0
    %1917 = vmatprep.subr.mxu0 0.0
    %1918 = vmatpush1.msra.mxu0 0.0
    %1919 = vmatprep.subr.mxu0 0.0
    %1920 = vmatpush1.msra.mxu0 0.0
    %1921 = vmatprep.subr.mxu0 0.0
    %1922 = vmatpush1.msra.mxu0 0.0
    %1923 = vmatprep.subr.mxu0 0.0
    %1924 = vmatpush1.msra.mxu0 0.0
    %1925 = vmatprep.subr.mxu0 0.0
    %1926 = vmatpush1.msra.mxu0 0.0
    %1927 = vmatprep.subr.mxu0 0.0
    %1928 = vmatpush1.msra.mxu0 %v1814
    %1929 = vmatprep.subr.mxu0 0.0
    %1930 = vmatpush2.msra.mxu0 0.0
    %1931 = vmatprep.subr.mxu0 0.0
    %1932 = vmatpush2.msra.mxu0 0.0
    %1933 = vmatprep.subr.mxu0 0.0
    %1934 = vmatpush2.msra.mxu0 0.0
    %1935 = vmatprep.subr.mxu0 0.0
    %1936 = vmatpush2.msra.mxu0 0.0
    %1937 = vmatprep.subr.mxu0 0.0
    %1938 = vmatpush2.msra.mxu0 0.0
    %1939 = vmatprep.subr.mxu0 0.0
    %1940 = vmatpush2.msra.mxu0 0.0
    %1941 = vmatprep.subr.mxu0 0.0
    %1942 = vmatpush2.msra.mxu0 0.0
    %1943 = vmatprep.subr.mxu0 0.0
    %1944 = vmatpush2.msra.mxu0 0.0
    %1945 = vmatprep.subr.mxu0 0.0
    %1946 = vmatpush2.msra.mxu0 0.0
    %1947 = vmatprep.subr.mxu0 0.0
    %1948 = vmatpush2.msra.mxu0 0.0
    %1949 = vmatprep.subr.mxu0 0.0
    %1950 = vmatpush2.msra.mxu0 0.0
    %1951 = vmatprep.subr.mxu0 0.0
    %1952 = vmatpush2.msra.mxu0 0.0
    %1953 = vmatprep.subr.mxu0 0.0
    %1954 = vmatpush2.msra.mxu0 0.0
    %1955 = vmatprep.subr.mxu0 0.0
    %1956 = vmatpush2.msra.mxu0 0.0
    %1957 = vmatprep.subr.mxu0 0.0
    %1958 = vmatpush2.msra.mxu0 0.0
    %1959 = vmatprep.subr.mxu0 0.0
    %1960 = vmatpush2.msra.mxu0 0.0
    %1961 = vmatprep.mubr.f32.mxu0 0.0
    %1962 = vmatmul.mubr.f32.gmra.mxu0 %v496
    %v1963 = vpop.f32.mrf.mxu0
    %v1964 = vadd.f32 0.0, %v1963
    %v1965 = vpop.f32.mrf.mxu0
    %1966 = vdwg.mxu0
    %v1967 = vld [vmem:[%s5 + $0x1] sm:$0x1]
    %v1968 = vlaneseq
    %v1969 = vshrl.u32 %v1968, 7
    %v1970 = vsub.s32 0, %v1969
    %v1971 = vrot.slane %v1967, %v1970
    %v1972 = vmul.f32 %v1964, %v1971
    %1974 = vrot.lane.b32.xlu0 %v1972, 32
    %v1975 = vpop.permute.xlu0 %1974
    %v1977 = vadd.f32 %v1896, %v1975
    %1978 = vmatprep.subr.mxu0 0.0
    %1979 = vmatpush1.msra.mxu0 0.0
    %1980 = vmatprep.subr.mxu0 0.0
    %1981 = vmatpush1.msra.mxu0 0.0
    %1982 = vmatprep.subr.mxu0 0.0
    %1983 = vmatpush1.msra.mxu0 0.0
    %1984 = vmatprep.subr.mxu0 0.0
    %1985 = vmatpush1.msra.mxu0 0.0
    %1986 = vmatprep.subr.mxu0 0.0
    %1987 = vmatpush1.msra.mxu0 0.0
    %1988 = vmatprep.subr.mxu0 0.0
    %1989 = vmatpush1.msra.mxu0 0.0
    %1990 = vmatprep.subr.mxu0 0.0
    %1991 = vmatpush1.msra.mxu0 0.0
    %1992 = vmatprep.subr.mxu0 0.0
    %1993 = vmatpush1.msra.mxu0 0.0
    %1994 = vmatprep.subr.mxu0 0.0
    %1995 = vmatpush1.msra.mxu0 0.0
    %1996 = vmatprep.subr.mxu0 0.0
    %1997 = vmatpush1.msra.mxu0 0.0
    %1998 = vmatprep.subr.mxu0 0.0
    %1999 = vmatpush1.msra.mxu0 0.0
    %2000 = vmatprep.subr.mxu0 0.0
    %2001 = vmatpush1.msra.mxu0 0.0
    %2002 = vmatprep.subr.mxu0 0.0
    %2003 = vmatpush1.msra.mxu0 0.0
    %2004 = vmatprep.subr.mxu0 0.0
    %2005 = vmatpush1.msra.mxu0 0.0
    %2006 = vmatprep.subr.mxu0 0.0
    %2007 = vmatpush1.msra.mxu0 0.0
    %2008 = vmatprep.subr.mxu0 0.0
    %2009 = vmatpush1.msra.mxu0 %v1814
    %2010 = vmatprep.subr.mxu0 0.0
    %2011 = vmatpush2.msra.mxu0 0.0
    %2012 = vmatprep.subr.mxu0 0.0
    %2013 = vmatpush2.msra.mxu0 0.0
    %2014 = vmatprep.subr.mxu0 0.0
    %2015 = vmatpush2.msra.mxu0 0.0
    %2016 = vmatprep.subr.mxu0 0.0
    %2017 = vmatpush2.msra.mxu0 0.0
    %2018 = vmatprep.subr.mxu0 0.0
    %2019 = vmatpush2.msra.mxu0 0.0
    %2020 = vmatprep.subr.mxu0 0.0
    %2021 = vmatpush2.msra.mxu0 0.0
    %2022 = vmatprep.subr.mxu0 0.0
    %2023 = vmatpush2.msra.mxu0 0.0
    %2024 = vmatprep.subr.mxu0 0.0
    %2025 = vmatpush2.msra.mxu0 0.0
    %2026 = vmatprep.subr.mxu0 0.0
    %2027 = vmatpush2.msra.mxu0 0.0
    %2028 = vmatprep.subr.mxu0 0.0
    %2029 = vmatpush2.msra.mxu0 0.0
    %2030 = vmatprep.subr.mxu0 0.0
    %2031 = vmatpush2.msra.mxu0 0.0
    %2032 = vmatprep.subr.mxu0 0.0
    %2033 = vmatpush2.msra.mxu0 0.0
    %2034 = vmatprep.subr.mxu0 0.0
    %2035 = vmatpush2.msra.mxu0 0.0
    %2036 = vmatprep.subr.mxu0 0.0
    %2037 = vmatpush2.msra.mxu0 0.0
    %2038 = vmatprep.subr.mxu0 0.0
    %2039 = vmatpush2.msra.mxu0 0.0
    %2040 = vmatprep.subr.mxu0 0.0
    %2041 = vmatpush2.msra.mxu0 0.0
    %2042 = vmatprep.mubr.f32.mxu0 0.0
    %2043 = vmatmul.mubr.f32.gmra.mxu0 %v583
    %v2044 = vpop.f32.mrf.mxu0
    %v2045 = vadd.f32 0.0, %v2044
    %v2046 = vpop.f32.mrf.mxu0
    %2047 = vdwg.mxu0
    %v2048 = vld [vmem:[%s5 + $0x2] sm:$0x1]
    %v2049 = vlaneseq
    %v2050 = vshrl.u32 %v2049, 7
    %v2051 = vsub.s32 0, %v2050
    %v2052 = vrot.slane %v2048, %v2051
    %v2053 = vmul.f32 %v2045, %v2052
    %2055 = vrot.lane.b32.xlu0 %v2053, 32
    %v2056 = vpop.permute.xlu0 %2055
    %v2058 = vadd.f32 %v1977, %v2056
    %v2059 = vld [vmem:[%s6] sm:$0x1]
    %v2061 = vlaneseq
    %v2062 = vshrl.u32 %v2061, 7
    %v2063 = vsub.s32 0, %v2062
    %v2064 = vrot.slane %v2059, %v2063
    %2065 = vrot.lane.b32.xlu0 %v2064, 32
    %v2066 = vpop.permute.xlu0 %2065
    %v2068 = vadd.f32 %v2058, %v2066
    %v2069 = vxor.u32 %v2068, 2147483648
    %v2070 = vmul.f32 %v2069, 1.442695
    %v2071 = vpow.pop %v2070
    %v2072 = vadd.f32 %v2071, 1.0
    %v2073 = vrcp.pop %v2072
    %v2074 = vmul.f32 1.0, %v2073
    %v2075 = vmul.f32 %v2068, %v2074
    %2077 = vrot.lane.b32.xlu0 %v2075, 96
    %v2078 = vpop.permute.xlu0 %2077
    %2080 = vst.msk [vmem:[#allocation3 + $0x8] sm:$0xff] %vm258, %v2078
    %v2081 = vld [vmem:[#allocation3 + $0x8] sm:$0xff]
    %v2082 = vld [vmem:[#allocation2 + $0x10] sm:$0xff]
    %v2083 = vld [vmem:[#allocation10] sm:$0x1]
    %v2085 = vlaneseq
    %v2086 = vshrl.u32 %v2085, 7
    %v2087 = vsub.s32 0, %v2086
    %v2088 = vrot.slane %v2083, %v2087
    %2089 = vrot.lane.b32.xlu0 %v2088, 96
    %v2090 = vpop.permute.xlu0 %2089
    %v2092 = vadd.f32 %v2082, %v2090
    %v2093 = vmax.f32 %v2092, 0.0
    %vm2094 = vcmp.ne.f32.partialorder %v2092, %v2092
    %v2095 = vadd.f32 %v2092, 0.0
    %v2096 = vand.u32 2147483647, %v2092
    %v2097 = vsub.f32 0.0, %v2096
    %v2098 = vmul.f32 %v2097, 1.442695
    %v2099 = vpow.pop %v2098
    %v2100 = vadd.f32 %v2099, 1.0
    %v2101 = vlog2.pop %v2100
    %v2102 = vmul.f32 %v2101, 0.6931472
    %v2103 = vmul.f32 -0.5, %v2099
    %v2104 = vadd.f32 %v2103, 1.0
    %v2105 = vmul.f32 %v2104, %v2099
    %v2106 = vand.u32 2147483647, %v2099
    %vm2107 = vcmp.lt.f32.partialorder %v2106, 0.0004427343
    %v2108 = vsel %vm2107, %v2105, %v2102
    %v2109 = vadd.f32 %v2093, %v2108
    %v2110 = vsel %vm2094, %v2095, %v2109
    %v2111 = vld [vmem:[#allocation5] sm:$0x1]
    %v2112 = vld [vmem:[#allocation8] sm:$0x1]
    %2114 = vset.pattern.permute.xlu0 96
    %2115 = vperm.xlu0 %2114, %v2110
    %v2116 = vpop.permute.xlu0 %2115
    %v2118 = vmul.f32 %v387, %v2116
    %v2119 = vsel %vm407, %v2118, 0.0
    %v2120 = vrot.slane %v2119, 4
    %v2121 = vadd.f32 %v2119, %v2120
    %v2122 = vrot.slane %v2121, 2
    %v2123 = vadd.f32 %v2121, %v2122
    %v2124 = vrot.slane %v2123, 1
    %v2125 = vadd.f32 %v2123, %v2124
    %v2126 = vmul.f32 %v384, %v2125
    %v2127 = vsel %vm407, %v2126, 0.0
    %2128 = vadd.xlane.f32.xlu0 %v2127
    %v2129 = vpop.xlane.xlu0 %2128
    %v2130 = vmul.f32 %v387, %v2129
    %v2131 = vsel %vm407, %v2130, 0.0
    %v2132 = vrot.slane %v2131, 4
    %v2133 = vadd.f32 %v2131, %v2132
    %v2134 = vrot.slane %v2133, 2
    %v2135 = vadd.f32 %v2133, %v2134
    %v2136 = vrot.slane %v2135, 1
    %v2137 = vadd.f32 %v2135, %v2136
    %v2138 = vsub.f32 %v2129, %v2137
    %v2140 = vlaneseq
    %v2141 = vshrl.u32 %v2140, 7
    %v2142 = vsub.s32 0, %v2141
    %v2143 = vrot.slane %v2111, %v2142
    %2144 = vset.pattern.permute.xlu0 0
    %2145 = vperm.xlu0 %2144, %v2143
    %v2146 = vpop.permute.xlu0 %2145
    %v2148 = vmul.f32 %v2146, %v2138
    %v2149 = vmul.f32 %v2148, 1.442695
    %v2150 = vpow.pop %v2149
    %v2151 = vsel %vm382, %v2150, 0.0
    %2153 = vrot.lane.b32.xlu0 %v2081, 96
    %v2154 = vpop.permute.xlu0 %2153
    %2155 = vrot.lane.b32.xlu0 %v2081, 112
    %v2156 = vpop.permute.xlu0 %2155
    %v2157 = vsel %vm407, %v2154, 0
    %v2159 = vsel %vm407, %v2156, 0
    %2161 = vmatprep.subr.mxu0 0.0
    %2162 = vmatpush1.xpose.msra.mxu0 0.0
    %2163 = vmatprep.subr.mxu0 0.0
    %2164 = vmatpush1.xpose.msra.mxu0 0.0
    %2165 = vmatprep.subr.mxu0 0.0
    %2166 = vmatpush1.xpose.msra.mxu0 0.0
    %2167 = vmatprep.subr.mxu0 0.0
    %2168 = vmatpush1.xpose.msra.mxu0 0.0
    %2169 = vmatprep.subr.mxu0 0.0
    %2170 = vmatpush1.xpose.msra.mxu0 0.0
    %2171 = vmatprep.subr.mxu0 0.0
    %2172 = vmatpush1.xpose.msra.mxu0 0.0
    %2173 = vmatprep.subr.mxu0 0.0
    %2174 = vmatpush1.xpose.msra.mxu0 0.0
    %2175 = vmatprep.subr.mxu0 0.0
    %2176 = vmatpush1.xpose.msra.mxu0 0.0
    %2177 = vmatprep.subr.mxu0 0.0
    %2178 = vmatpush1.xpose.msra.mxu0 0.0
    %2179 = vmatprep.subr.mxu0 0.0
    %2180 = vmatpush1.xpose.msra.mxu0 0.0
    %2181 = vmatprep.subr.mxu0 0.0
    %2182 = vmatpush1.xpose.msra.mxu0 0.0
    %2183 = vmatprep.subr.mxu0 0.0
    %2184 = vmatpush1.xpose.msra.mxu0 0.0
    %2185 = vmatprep.subr.mxu0 0.0
    %2186 = vmatpush1.xpose.msra.mxu0 0.0
    %2187 = vmatprep.subr.mxu0 0.0
    %2188 = vmatpush1.xpose.msra.mxu0 0.0
    %2189 = vmatprep.subr.mxu0 0.0
    %2190 = vmatpush1.xpose.msra.mxu0 0.0
    %2191 = vmatprep.subr.mxu0 0.0
    %2192 = vmatpush1.xpose.msra.mxu0 %v2159
    %2193 = vmatprep.subr.mxu0 0.0
    %2194 = vmatpush2.xpose.msra.mxu0 0.0
    %2195 = vmatprep.subr.mxu0 0.0
    %2196 = vmatpush2.xpose.msra.mxu0 0.0
    %2197 = vmatprep.subr.mxu0 0.0
    %2198 = vmatpush2.xpose.msra.mxu0 0.0
    %2199 = vmatprep.subr.mxu0 0.0
    %2200 = vmatpush2.xpose.msra.mxu0 0.0
    %2201 = vmatprep.subr.mxu0 0.0
    %2202 = vmatpush2.xpose.msra.mxu0 0.0
    %2203 = vmatprep.subr.mxu0 0.0
    %2204 = vmatpush2.xpose.msra.mxu0 0.0
    %2205 = vmatprep.subr.mxu0 0.0
    %2206 = vmatpush2.xpose.msra.mxu0 0.0
    %2207 = vmatprep.subr.mxu0 0.0
    %2208 = vmatpush2.xpose.msra.mxu0 0.0
    %2209 = vmatprep.subr.mxu0 0.0
    %2210 = vmatpush2.xpose.msra.mxu0 0.0
    %2211 = vmatprep.subr.mxu0 0.0
    %2212 = vmatpush2.xpose.msra.mxu0 0.0
    %2213 = vmatprep.subr.mxu0 0.0
    %2214 = vmatpush2.xpose.msra.mxu0 0.0
    %2215 = vmatprep.subr.mxu0 0.0
    %2216 = vmatpush2.xpose.msra.mxu0 0.0
    %2217 = vmatprep.subr.mxu0 0.0
    %2218 = vmatpush2.xpose.msra.mxu0 0.0
    %2219 = vmatprep.subr.mxu0 0.0
    %2220 = vmatpush2.xpose.msra.mxu0 0.0
    %2221 = vmatprep.subr.mxu0 0.0
    %2222 = vmatpush2.xpose.msra.mxu0 0.0
    %2223 = vmatprep.subr.mxu0 0.0
    %2224 = vmatpush2.xpose.msra.mxu0 0.0
    %2225 = vmatprep.mubr.f32.mxu0 0.0
    %2226 = vmatmul.mubr.f32.gmra.mxu0 %v2157
    %v2227 = vpop.f32.mrf.mxu0
    %v2228 = vadd.f32 0.0, %v2227
    %v2229 = vpop.f32.mrf.mxu0
    %2230 = vdwg.mxu0
    %v2231 = vmul.f32 %v2228, %v2151
    %v2232 = vmul.f32 %v2231, %v2125
    %v2234 = vlaneseq
    %v2235 = vshrl.u32 %v2234, 7
    %v2236 = vsub.s32 0, %v2235
    %v2237 = vrot.slane %v2112, %v2236
    %2238 = vset.pattern.permute.xlu0 0
    %2239 = vperm.xlu0 %2238, %v2237
    %v2240 = vpop.permute.xlu0 %2239
    %v2242 = vmul.f32 %v2240, %v2081
    %v2244 = vsel %vm407, %v2232, 0
    %2246 = vmatprep.subr.mxu0 0.0
    %2247 = vmatpush1.msra.mxu0 0.0
    %2248 = vmatprep.subr.mxu0 0.0
    %2249 = vmatpush1.msra.mxu0 0.0
    %2250 = vmatprep.subr.mxu0 0.0
    %2251 = vmatpush1.msra.mxu0 0.0
    %2252 = vmatprep.subr.mxu0 0.0
    %2253 = vmatpush1.msra.mxu0 0.0
    %2254 = vmatprep.subr.mxu0 0.0
    %2255 = vmatpush1.msra.mxu0 0.0
    %2256 = vmatprep.subr.mxu0 0.0
    %2257 = vmatpush1.msra.mxu0 0.0
    %2258 = vmatprep.subr.mxu0 0.0
    %2259 = vmatpush1.msra.mxu0 0.0
    %2260 = vmatprep.subr.mxu0 0.0
    %2261 = vmatpush1.msra.mxu0 0.0
    %2262 = vmatprep.subr.mxu0 0.0
    %2263 = vmatpush1.msra.mxu0 0.0
    %2264 = vmatprep.subr.mxu0 0.0
    %2265 = vmatpush1.msra.mxu0 0.0
    %2266 = vmatprep.subr.mxu0 0.0
    %2267 = vmatpush1.msra.mxu0 0.0
    %2268 = vmatprep.subr.mxu0 0.0
    %2269 = vmatpush1.msra.mxu0 0.0
    %2270 = vmatprep.subr.mxu0 0.0
    %2271 = vmatpush1.msra.mxu0 0.0
    %2272 = vmatprep.subr.mxu0 0.0
    %2273 = vmatpush1.msra.mxu0 0.0
    %2274 = vmatprep.subr.mxu0 0.0
    %2275 = vmatpush1.msra.mxu0 0.0
    %2276 = vmatprep.subr.mxu0 0.0
    %2277 = vmatpush1.msra.mxu0 %v2081
    %2278 = vmatprep.subr.mxu0 0.0
    %2279 = vmatpush2.msra.mxu0 0.0
    %2280 = vmatprep.subr.mxu0 0.0
    %2281 = vmatpush2.msra.mxu0 0.0
    %2282 = vmatprep.subr.mxu0 0.0
    %2283 = vmatpush2.msra.mxu0 0.0
    %2284 = vmatprep.subr.mxu0 0.0
    %2285 = vmatpush2.msra.mxu0 0.0
    %2286 = vmatprep.subr.mxu0 0.0
    %2287 = vmatpush2.msra.mxu0 0.0
    %2288 = vmatprep.subr.mxu0 0.0
    %2289 = vmatpush2.msra.mxu0 0.0
    %2290 = vmatprep.subr.mxu0 0.0
    %2291 = vmatpush2.msra.mxu0 0.0
    %2292 = vmatprep.subr.mxu0 0.0
    %2293 = vmatpush2.msra.mxu0 0.0
    %2294 = vmatprep.subr.mxu0 0.0
    %2295 = vmatpush2.msra.mxu0 0.0
    %2296 = vmatprep.subr.mxu0 0.0
    %2297 = vmatpush2.msra.mxu0 0.0
    %2298 = vmatprep.subr.mxu0 0.0
    %2299 = vmatpush2.msra.mxu0 0.0
    %2300 = vmatprep.subr.mxu0 0.0
    %2301 = vmatpush2.msra.mxu0 0.0
    %2302 = vmatprep.subr.mxu0 0.0
    %2303 = vmatpush2.msra.mxu0 0.0
    %2304 = vmatprep.subr.mxu0 0.0
    %2305 = vmatpush2.msra.mxu0 0.0
    %2306 = vmatprep.subr.mxu0 0.0
    %2307 = vmatpush2.msra.mxu0 0.0
    %2308 = vmatprep.subr.mxu0 0.0
    %2309 = vmatpush2.msra.mxu0 0.0
    %2310 = vmatprep.mubr.f32.mxu0 0.0
    %2311 = vmatmul.mubr.f32.gmra.mxu0 %v2244
    %v2312 = vpop.f32.mrf.mxu0
    %v2313 = vadd.f32 %v2242, %v2312
    %v2314 = vpop.f32.mrf.mxu0
    %2315 = vdwg.mxu0
    %v2316 = vxor.u32 %v2082, 2147483648
    %v2317 = vmul.f32 %v2316, 1.442695
    %v2318 = vpow.pop %v2317
    %v2319 = vadd.f32 %v2318, 1.0
    %v2320 = vrcp.pop %v2319
    %v2321 = vmul.f32 1.0, %v2320
    %v2322 = vmul.f32 %v2082, %v2321
    %v2323 = vmul.f32 %v2313, %v2322
    %2324 = vst.msk [vmem:[#allocation4 + $0x8] sm:$0xff] %vm407, %v2323
    %v2325 = vld [vmem:[#allocation3 + $0x8] sm:$0xff]
    %v2326 = vld [vmem:[#allocation2 + $0x10] sm:$0xff]
    %v2327 = vld [vmem:[#allocation10] sm:$0x1]
    %v2329 = vlaneseq
    %v2330 = vshrl.u32 %v2329, 7
    %v2331 = vsub.s32 0, %v2330
    %v2332 = vrot.slane %v2327, %v2331
    %2333 = vrot.lane.b32.xlu0 %v2332, 96
    %v2334 = vpop.permute.xlu0 %2333
    %v2336 = vadd.f32 %v2326, %v2334
    %v2337 = vmax.f32 %v2336, 0.0
    %vm2338 = vcmp.ne.f32.partialorder %v2336, %v2336
    %v2339 = vadd.f32 %v2336, 0.0
    %v2340 = vand.u32 2147483647, %v2336
    %v2341 = vsub.f32 0.0, %v2340
    %v2342 = vmul.f32 %v2341, 1.442695
    %v2343 = vpow.pop %v2342
    %v2344 = vadd.f32 %v2343, 1.0
    %v2345 = vlog2.pop %v2344
    %v2346 = vmul.f32 %v2345, 0.6931472
    %v2347 = vmul.f32 -0.5, %v2343
    %v2348 = vadd.f32 %v2347, 1.0
    %v2349 = vmul.f32 %v2348, %v2343
    %v2350 = vand.u32 2147483647, %v2343
    %vm2351 = vcmp.lt.f32.partialorder %v2350, 0.0004427343
    %v2352 = vsel %vm2351, %v2349, %v2346
    %v2353 = vadd.f32 %v2337, %v2352
    %v2354 = vsel %vm2338, %v2339, %v2353
    %v2355 = vld [vmem:[#allocation5] sm:$0x1]
    %v2356 = vld [vmem:[#allocation8] sm:$0x1]
    %2358 = vset.pattern.permute.xlu0 97
    %2359 = vperm.xlu0 %2358, %v2354
    %v2360 = vpop.permute.xlu0 %2359
    %v2362 = vmul.f32 %v387, %v2360
    %v2363 = vsel %vm407, %v2362, 0.0
    %v2364 = vrot.slane %v2363, 4
    %v2365 = vadd.f32 %v2363, %v2364
    %v2366 = vrot.slane %v2365, 2
    %v2367 = vadd.f32 %v2365, %v2366
    %v2368 = vrot.slane %v2367, 1
    %v2369 = vadd.f32 %v2367, %v2368
    %v2370 = vmul.f32 %v384, %v2369
    %v2371 = vsel %vm407, %v2370, 0.0
    %2372 = vadd.xlane.f32.xlu0 %v2371
    %v2373 = vpop.xlane.xlu0 %2372
    %v2374 = vmul.f32 %v387, %v2373
    %v2375 = vsel %vm407, %v2374, 0.0
    %v2376 = vrot.slane %v2375, 4
    %v2377 = vadd.f32 %v2375, %v2376
    %v2378 = vrot.slane %v2377, 2
    %v2379 = vadd.f32 %v2377, %v2378
    %v2380 = vrot.slane %v2379, 1
    %v2381 = vadd.f32 %v2379, %v2380
    %v2382 = vsub.f32 %v2373, %v2381
    %v2384 = vlaneseq
    %v2385 = vshrl.u32 %v2384, 7
    %v2386 = vsub.s32 0, %v2385
    %v2387 = vrot.slane %v2355, %v2386
    %2388 = vset.pattern.permute.xlu0 1
    %2389 = vperm.xlu0 %2388, %v2387
    %v2390 = vpop.permute.xlu0 %2389
    %v2392 = vmul.f32 %v2390, %v2382
    %v2393 = vmul.f32 %v2392, 1.442695
    %v2394 = vpow.pop %v2393
    %v2395 = vsel %vm382, %v2394, 0.0
    %2397 = vrot.lane.b32.xlu0 %v2325, 88
    %v2398 = vpop.permute.xlu0 %2397
    %2399 = vrot.lane.b32.xlu0 %v2325, 112
    %v2400 = vpop.permute.xlu0 %2399
    %v2401 = vsel %vm407, %v2398, 0
    %v2403 = vsel %vm407, %v2400, 0
    %2405 = vmatprep.subr.mxu0 0.0
    %2406 = vmatpush1.xpose.msra.mxu0 0.0
    %2407 = vmatprep.subr.mxu0 0.0
    %2408 = vmatpush1.xpose.msra.mxu0 0.0
    %2409 = vmatprep.subr.mxu0 0.0
    %2410 = vmatpush1.xpose.msra.mxu0 0.0
    %2411 = vmatprep.subr.mxu0 0.0
    %2412 = vmatpush1.xpose.msra.mxu0 0.0
    %2413 = vmatprep.subr.mxu0 0.0
    %2414 = vmatpush1.xpose.msra.mxu0 0.0
    %2415 = vmatprep.subr.mxu0 0.0
    %2416 = vmatpush1.xpose.msra.mxu0 0.0
    %2417 = vmatprep.subr.mxu0 0.0
    %2418 = vmatpush1.xpose.msra.mxu0 0.0
    %2419 = vmatprep.subr.mxu0 0.0
    %2420 = vmatpush1.xpose.msra.mxu0 0.0
    %2421 = vmatprep.subr.mxu0 0.0
    %2422 = vmatpush1.xpose.msra.mxu0 0.0
    %2423 = vmatprep.subr.mxu0 0.0
    %2424 = vmatpush1.xpose.msra.mxu0 0.0
    %2425 = vmatprep.subr.mxu0 0.0
    %2426 = vmatpush1.xpose.msra.mxu0 0.0
    %2427 = vmatprep.subr.mxu0 0.0
    %2428 = vmatpush1.xpose.msra.mxu0 0.0
    %2429 = vmatprep.subr.mxu0 0.0
    %2430 = vmatpush1.xpose.msra.mxu0 0.0
    %2431 = vmatprep.subr.mxu0 0.0
    %2432 = vmatpush1.xpose.msra.mxu0 0.0
    %2433 = vmatprep.subr.mxu0 0.0
    %2434 = vmatpush1.xpose.msra.mxu0 0.0
    %2435 = vmatprep.subr.mxu0 0.0
    %2436 = vmatpush1.xpose.msra.mxu0 %v2403
    %2437 = vmatprep.subr.mxu0 0.0
    %2438 = vmatpush2.xpose.msra.mxu0 0.0
    %2439 = vmatprep.subr.mxu0 0.0
    %2440 = vmatpush2.xpose.msra.mxu0 0.0
    %2441 = vmatprep.subr.mxu0 0.0
    %2442 = vmatpush2.xpose.msra.mxu0 0.0
    %2443 = vmatprep.subr.mxu0 0.0
    %2444 = vmatpush2.xpose.msra.mxu0 0.0
    %2445 = vmatprep.subr.mxu0 0.0
    %2446 = vmatpush2.xpose.msra.mxu0 0.0
    %2447 = vmatprep.subr.mxu0 0.0
    %2448 = vmatpush2.xpose.msra.mxu0 0.0
    %2449 = vmatprep.subr.mxu0 0.0
    %2450 = vmatpush2.xpose.msra.mxu0 0.0
    %2451 = vmatprep.subr.mxu0 0.0
    %2452 = vmatpush2.xpose.msra.mxu0 0.0
    %2453 = vmatprep.subr.mxu0 0.0
    %2454 = vmatpush2.xpose.msra.mxu0 0.0
    %2455 = vmatprep.subr.mxu0 0.0
    %2456 = vmatpush2.xpose.msra.mxu0 0.0
    %2457 = vmatprep.subr.mxu0 0.0
    %2458 = vmatpush2.xpose.msra.mxu0 0.0
    %2459 = vmatprep.subr.mxu0 0.0
    %2460 = vmatpush2.xpose.msra.mxu0 0.0
    %2461 = vmatprep.subr.mxu0 0.0
    %2462 = vmatpush2.xpose.msra.mxu0 0.0
    %2463 = vmatprep.subr.mxu0 0.0
    %2464 = vmatpush2.xpose.msra.mxu0 0.0
    %2465 = vmatprep.subr.mxu0 0.0
    %2466 = vmatpush2.xpose.msra.mxu0 0.0
    %2467 = vmatprep.subr.mxu0 0.0
    %2468 = vmatpush2.xpose.msra.mxu0 0.0
    %2469 = vmatprep.mubr.f32.mxu0 0.0
    %2470 = vmatmul.mubr.f32.gmra.mxu0 %v2401
    %v2471 = vpop.f32.mrf.mxu0
    %v2472 = vadd.f32 0.0, %v2471
    %v2473 = vpop.f32.mrf.mxu0
    %2474 = vdwg.mxu0
    %v2475 = vmul.f32 %v2472, %v2395
    %v2476 = vmul.f32 %v2475, %v2369
    %v2478 = vlaneseq
    %v2479 = vshrl.u32 %v2478, 7
    %v2480 = vsub.s32 0, %v2479
    %v2481 = vrot.slane %v2356, %v2480
    %2482 = vset.pattern.permute.xlu0 1
    %2483 = vperm.xlu0 %2482, %v2481
    %v2484 = vpop.permute.xlu0 %2483
    %v2486 = vmul.f32 %v2484, %v2325
    %v2488 = vsel %vm407, %v2476, 0
    %2490 = vmatprep.subr.mxu0 0.0
    %2491 = vmatpush1.msra.mxu0 0.0
    %2492 = vmatprep.subr.mxu0 0.0
    %2493 = vmatpush1.msra.mxu0 0.0
    %2494 = vmatprep.subr.mxu0 0.0
    %2495 = vmatpush1.msra.mxu0 0.0
    %2496 = vmatprep.subr.mxu0 0.0
    %2497 = vmatpush1.msra.mxu0 0.0
    %2498 = vmatprep.subr.mxu0 0.0
    %2499 = vmatpush1.msra.mxu0 0.0
    %2500 = vmatprep.subr.mxu0 0.0
    %2501 = vmatpush1.msra.mxu0 0.0
    %2502 = vmatprep.subr.mxu0 0.0
    %2503 = vmatpush1.msra.mxu0 0.0
    %2504 = vmatprep.subr.mxu0 0.0
    %2505 = vmatpush1.msra.mxu0 0.0
    %2506 = vmatprep.subr.mxu0 0.0
    %2507 = vmatpush1.msra.mxu0 0.0
    %2508 = vmatprep.subr.mxu0 0.0
    %2509 = vmatpush1.msra.mxu0 0.0
    %2510 = vmatprep.subr.mxu0 0.0
    %2511 = vmatpush1.msra.mxu0 0.0
    %2512 = vmatprep.subr.mxu0 0.0
    %2513 = vmatpush1.msra.mxu0 0.0
    %2514 = vmatprep.subr.mxu0 0.0
    %2515 = vmatpush1.msra.mxu0 0.0
    %2516 = vmatprep.subr.mxu0 0.0
    %2517 = vmatpush1.msra.mxu0 0.0
    %2518 = vmatprep.subr.mxu0 0.0
    %2519 = vmatpush1.msra.mxu0 0.0
    %2520 = vmatprep.subr.mxu0 0.0
    %2521 = vmatpush1.msra.mxu0 %v2325
    %2522 = vmatprep.subr.mxu0 0.0
    %2523 = vmatpush2.msra.mxu0 0.0
    %2524 = vmatprep.subr.mxu0 0.0
    %2525 = vmatpush2.msra.mxu0 0.0
    %2526 = vmatprep.subr.mxu0 0.0
    %2527 = vmatpush2.msra.mxu0 0.0
    %2528 = vmatprep.subr.mxu0 0.0
    %2529 = vmatpush2.msra.mxu0 0.0
    %2530 = vmatprep.subr.mxu0 0.0
    %2531 = vmatpush2.msra.mxu0 0.0
    %2532 = vmatprep.subr.mxu0 0.0
    %2533 = vmatpush2.msra.mxu0 0.0
    %2534 = vmatprep.subr.mxu0 0.0
    %2535 = vmatpush2.msra.mxu0 0.0
    %2536 = vmatprep.subr.mxu0 0.0
    %2537 = vmatpush2.msra.mxu0 0.0
    %2538 = vmatprep.subr.mxu0 0.0
    %2539 = vmatpush2.msra.mxu0 0.0
    %2540 = vmatprep.subr.mxu0 0.0
    %2541 = vmatpush2.msra.mxu0 0.0
    %2542 = vmatprep.subr.mxu0 0.0
    %2543 = vmatpush2.msra.mxu0 0.0
    %2544 = vmatprep.subr.mxu0 0.0
    %2545 = vmatpush2.msra.mxu0 0.0
    %2546 = vmatprep.subr.mxu0 0.0
    %2547 = vmatpush2.msra.mxu0 0.0
    %2548 = vmatprep.subr.mxu0 0.0
    %2549 = vmatpush2.msra.mxu0 0.0
    %2550 = vmatprep.subr.mxu0 0.0
    %2551 = vmatpush2.msra.mxu0 0.0
    %2552 = vmatprep.subr.mxu0 0.0
    %2553 = vmatpush2.msra.mxu0 0.0
    %2554 = vmatprep.mubr.f32.mxu0 0.0
    %2555 = vmatmul.mubr.f32.gmra.mxu0 %v2488
    %v2556 = vpop.f32.mrf.mxu0
    %v2557 = vadd.f32 %v2486, %v2556
    %v2558 = vpop.f32.mrf.mxu0
    %2559 = vdwg.mxu0
    %v2560 = vxor.u32 %v2326, 2147483648
    %v2561 = vmul.f32 %v2560, 1.442695
    %v2562 = vpow.pop %v2561
    %v2563 = vadd.f32 %v2562, 1.0
    %v2564 = vrcp.pop %v2563
    %v2565 = vmul.f32 1.0, %v2564
    %v2566 = vmul.f32 %v2326, %v2565
    %2568 = vrot.lane.b32.xlu0 %v2566, 120
    %v2569 = vpop.permute.xlu0 %2568
    %v2571 = vmul.f32 %v2557, %v2569
    %2573 = vrot.lane.b32.xlu0 %v2571, 8
    %v2574 = vpop.permute.xlu0 %2573
    %2576 = vst.msk [vmem:[#allocation4 + $0x8] sm:$0xff] %vm1183, %v2574
    %v2577 = vld [vmem:[#allocation3 + $0x8] sm:$0xff]
    %v2578 = vld [vmem:[#allocation2 + $0x10] sm:$0xff]
    %v2579 = vld [vmem:[#allocation10] sm:$0x1]
    %v2581 = vlaneseq
    %v2582 = vshrl.u32 %v2581, 7
    %v2583 = vsub.s32 0, %v2582
    %v2584 = vrot.slane %v2579, %v2583
    %2585 = vrot.lane.b32.xlu0 %v2584, 96
    %v2586 = vpop.permute.xlu0 %2585
    %v2588 = vadd.f32 %v2578, %v2586
    %v2589 = vmax.f32 %v2588, 0.0
    %vm2590 = vcmp.ne.f32.partialorder %v2588, %v2588
    %v2591 = vadd.f32 %v2588, 0.0
    %v2592 = vand.u32 2147483647, %v2588
    %v2593 = vsub.f32 0.0, %v2592
    %v2594 = vmul.f32 %v2593, 1.442695
    %v2595 = vpow.pop %v2594
    %v2596 = vadd.f32 %v2595, 1.0
    %v2597 = vlog2.pop %v2596
    %v2598 = vmul.f32 %v2597, 0.6931472
    %v2599 = vmul.f32 -0.5, %v2595
    %v2600 = vadd.f32 %v2599, 1.0
    %v2601 = vmul.f32 %v2600, %v2595
    %v2602 = vand.u32 2147483647, %v2595
    %vm2603 = vcmp.lt.f32.partialorder %v2602, 0.0004427343
    %v2604 = vsel %vm2603, %v2601, %v2598
    %v2605 = vadd.f32 %v2589, %v2604
    %v2606 = vsel %vm2590, %v2591, %v2605
    %v2607 = vld [vmem:[#allocation5] sm:$0x1]
    %v2608 = vld [vmem:[#allocation8] sm:$0x1]
    %2610 = vset.pattern.permute.xlu0 98
    %2611 = vperm.xlu0 %2610, %v2606
    %v2612 = vpop.permute.xlu0 %2611
    %v2614 = vmul.f32 %v387, %v2612
    %v2615 = vsel %vm407, %v2614, 0.0
    %v2616 = vrot.slane %v2615, 4
    %v2617 = vadd.f32 %v2615, %v2616
    %v2618 = vrot.slane %v2617, 2
    %v2619 = vadd.f32 %v2617, %v2618
    %v2620 = vrot.slane %v2619, 1
    %v2621 = vadd.f32 %v2619, %v2620
    %v2622 = vmul.f32 %v384, %v2621
    %v2623 = vsel %vm407, %v2622, 0.0
    %2624 = vadd.xlane.f32.xlu0 %v2623
    %v2625 = vpop.xlane.xlu0 %2624
    %v2626 = vmul.f32 %v387, %v2625
    %v2627 = vsel %vm407, %v2626, 0.0
    %v2628 = vrot.slane %v2627, 4
    %v2629 = vadd.f32 %v2627, %v2628
    %v2630 = vrot.slane %v2629, 2
    %v2631 = vadd.f32 %v2629, %v2630
    %v2632 = vrot.slane %v2631, 1
    %v2633 = vadd.f32 %v2631, %v2632
    %v2634 = vsub.f32 %v2625, %v2633
    %v2636 = vlaneseq
    %v2637 = vshrl.u32 %v2636, 7
    %v2638 = vsub.s32 0, %v2637
    %v2639 = vrot.slane %v2607, %v2638
    %2640 = vset.pattern.permute.xlu0 2
    %2641 = vperm.xlu0 %2640, %v2639
    %v2642 = vpop.permute.xlu0 %2641
    %v2644 = vmul.f32 %v2642, %v2634
    %v2645 = vmul.f32 %v2644, 1.442695
    %v2646 = vpow.pop %v2645
    %v2647 = vsel %vm382, %v2646, 0.0
    %2649 = vrot.lane.b32.xlu0 %v2577, 80
    %v2650 = vpop.permute.xlu0 %2649
    %2651 = vrot.lane.b32.xlu0 %v2577, 104
    %v2652 = vpop.permute.xlu0 %2651
    %v2653 = vsel %vm407, %v2650, 0
    %v2655 = vsel %vm407, %v2652, 0
    %2657 = vmatprep.subr.mxu0 0.0
    %2658 = vmatpush1.xpose.msra.mxu0 0.0
    %2659 = vmatprep.subr.mxu0 0.0
    %2660 = vmatpush1.xpose.msra.mxu0 0.0
    %2661 = vmatprep.subr.mxu0 0.0
    %2662 = vmatpush1.xpose.msra.mxu0 0.0
    %2663 = vmatprep.subr.mxu0 0.0
    %2664 = vmatpush1.xpose.msra.mxu0 0.0
    %2665 = vmatprep.subr.mxu0 0.0
    %2666 = vmatpush1.xpose.msra.mxu0 0.0
    %2667 = vmatprep.subr.mxu0 0.0
    %2668 = vmatpush1.xpose.msra.mxu0 0.0
    %2669 = vmatprep.subr.mxu0 0.0
    %2670 = vmatpush1.xpose.msra.mxu0 0.0
    %2671 = vmatprep.subr.mxu0 0.0
    %2672 = vmatpush1.xpose.msra.mxu0 0.0
    %2673 = vmatprep.subr.mxu0 0.0
    %2674 = vmatpush1.xpose.msra.mxu0 0.0
    %2675 = vmatprep.subr.mxu0 0.0
    %2676 = vmatpush1.xpose.msra.mxu0 0.0
    %2677 = vmatprep.subr.mxu0 0.0
    %2678 = vmatpush1.xpose.msra.mxu0 0.0
    %2679 = vmatprep.subr.mxu0 0.0
    %2680 = vmatpush1.xpose.msra.mxu0 0.0
    %2681 = vmatprep.subr.mxu0 0.0
    %2682 = vmatpush1.xpose.msra.mxu0 0.0
    %2683 = vmatprep.subr.mxu0 0.0
    %2684 = vmatpush1.xpose.msra.mxu0 0.0
    %2685 = vmatprep.subr.mxu0 0.0
    %2686 = vmatpush1.xpose.msra.mxu0 0.0
    %2687 = vmatprep.subr.mxu0 0.0
    %2688 = vmatpush1.xpose.msra.mxu0 %v2655
    %2689 = vmatprep.subr.mxu0 0.0
    %2690 = vmatpush2.xpose.msra.mxu0 0.0
    %2691 = vmatprep.subr.mxu0 0.0
    %2692 = vmatpush2.xpose.msra.mxu0 0.0
    %2693 = vmatprep.subr.mxu0 0.0
    %2694 = vmatpush2.xpose.msra.mxu0 0.0
    %2695 = vmatprep.subr.mxu0 0.0
    %2696 = vmatpush2.xpose.msra.mxu0 0.0
    %2697 = vmatprep.subr.mxu0 0.0
    %2698 = vmatpush2.xpose.msra.mxu0 0.0
    %2699 = vmatprep.subr.mxu0 0.0
    %2700 = vmatpush2.xpose.msra.mxu0 0.0
    %2701 = vmatprep.subr.mxu0 0.0
    %2702 = vmatpush2.xpose.msra.mxu0 0.0
    %2703 = vmatprep.subr.mxu0 0.0
    %2704 = vmatpush2.xpose.msra.mxu0 0.0
    %2705 = vmatprep.subr.mxu0 0.0
    %2706 = vmatpush2.xpose.msra.mxu0 0.0
    %2707 = vmatprep.subr.mxu0 0.0
    %2708 = vmatpush2.xpose.msra.mxu0 0.0
    %2709 = vmatprep.subr.mxu0 0.0
    %2710 = vmatpush2.xpose.msra.mxu0 0.0
    %2711 = vmatprep.subr.mxu0 0.0
    %2712 = vmatpush2.xpose.msra.mxu0 0.0
    %2713 = vmatprep.subr.mxu0 0.0
    %2714 = vmatpush2.xpose.msra.mxu0 0.0
    %2715 = vmatprep.subr.mxu0 0.0
    %2716 = vmatpush2.xpose.msra.mxu0 0.0
    %2717 = vmatprep.subr.mxu0 0.0
    %2718 = vmatpush2.xpose.msra.mxu0 0.0
    %2719 = vmatprep.subr.mxu0 0.0
    %2720 = vmatpush2.xpose.msra.mxu0 0.0
    %2721 = vmatprep.mubr.f32.mxu0 0.0
    %2722 = vmatmul.mubr.f32.gmra.mxu0 %v2653
    %v2723 = vpop.f32.mrf.mxu0
    %v2724 = vadd.f32 0.0, %v2723
    %v2725 = vpop.f32.mrf.mxu0
    %2726 = vdwg.mxu0
    %v2727 = vmul.f32 %v2724, %v2647
    %v2728 = vmul.f32 %v2727, %v2621
    %v2730 = vlaneseq
    %v2731 = vshrl.u32 %v2730, 7
    %v2732 = vsub.s32 0, %v2731
    %v2733 = vrot.slane %v2608, %v2732
    %2734 = vset.pattern.permute.xlu0 2
    %2735 = vperm.xlu0 %2734, %v2733
    %v2736 = vpop.permute.xlu0 %2735
    %v2738 = vmul.f32 %v2736, %v2577
    %2739 = vrot.lane.b32.xlu0 %v2577, 120
    %v2740 = vpop.permute.xlu0 %2739
    %2743 = vrot.lane.b32.xlu0 %v2738, 120
    %v2744 = vpop.permute.xlu0 %2743
    %v2747 = vsel %vm407, %v2728, 0
    %2749 = vmatprep.subr.mxu0 0.0
    %2750 = vmatpush1.msra.mxu0 0.0
    %2751 = vmatprep.subr.mxu0 0.0
    %2752 = vmatpush1.msra.mxu0 0.0
    %2753 = vmatprep.subr.mxu0 0.0
    %2754 = vmatpush1.msra.mxu0 0.0
    %2755 = vmatprep.subr.mxu0 0.0
    %2756 = vmatpush1.msra.mxu0 0.0
    %2757 = vmatprep.subr.mxu0 0.0
    %2758 = vmatpush1.msra.mxu0 0.0
    %2759 = vmatprep.subr.mxu0 0.0
    %2760 = vmatpush1.msra.mxu0 0.0
    %2761 = vmatprep.subr.mxu0 0.0
    %2762 = vmatpush1.msra.mxu0 0.0
    %2763 = vmatprep.subr.mxu0 0.0
    %2764 = vmatpush1.msra.mxu0 0.0
    %2765 = vmatprep.subr.mxu0 0.0
    %2766 = vmatpush1.msra.mxu0 0.0
    %2767 = vmatprep.subr.mxu0 0.0
    %2768 = vmatpush1.msra.mxu0 0.0
    %2769 = vmatprep.subr.mxu0 0.0
    %2770 = vmatpush1.msra.mxu0 0.0
    %2771 = vmatprep.subr.mxu0 0.0
    %2772 = vmatpush1.msra.mxu0 0.0
    %2773 = vmatprep.subr.mxu0 0.0
    %2774 = vmatpush1.msra.mxu0 0.0
    %2775 = vmatprep.subr.mxu0 0.0
    %2776 = vmatpush1.msra.mxu0 0.0
    %2777 = vmatprep.subr.mxu0 0.0
    %2778 = vmatpush1.msra.mxu0 0.0
    %2779 = vmatprep.subr.mxu0 0.0
    %2780 = vmatpush1.msra.mxu0 %v2740
    %2781 = vmatprep.subr.mxu0 0.0
    %2782 = vmatpush2.msra.mxu0 0.0
    %2783 = vmatprep.subr.mxu0 0.0
    %2784 = vmatpush2.msra.mxu0 0.0
    %2785 = vmatprep.subr.mxu0 0.0
    %2786 = vmatpush2.msra.mxu0 0.0
    %2787 = vmatprep.subr.mxu0 0.0
    %2788 = vmatpush2.msra.mxu0 0.0
    %2789 = vmatprep.subr.mxu0 0.0
    %2790 = vmatpush2.msra.mxu0 0.0
    %2791 = vmatprep.subr.mxu0 0.0
    %2792 = vmatpush2.msra.mxu0 0.0
    %2793 = vmatprep.subr.mxu0 0.0
    %2794 = vmatpush2.msra.mxu0 0.0
    %2795 = vmatprep.subr.mxu0 0.0
    %2796 = vmatpush2.msra.mxu0 0.0
    %2797 = vmatprep.subr.mxu0 0.0
    %2798 = vmatpush2.msra.mxu0 0.0
    %2799 = vmatprep.subr.mxu0 0.0
    %2800 = vmatpush2.msra.mxu0 0.0
    %2801 = vmatprep.subr.mxu0 0.0
    %2802 = vmatpush2.msra.mxu0 0.0
    %2803 = vmatprep.subr.mxu0 0.0
    %2804 = vmatpush2.msra.mxu0 0.0
    %2805 = vmatprep.subr.mxu0 0.0
    %2806 = vmatpush2.msra.mxu0 0.0
    %2807 = vmatprep.subr.mxu0 0.0
    %2808 = vmatpush2.msra.mxu0 0.0
    %2809 = vmatprep.subr.mxu0 0.0
    %2810 = vmatpush2.msra.mxu0 0.0
    %2811 = vmatprep.subr.mxu0 0.0
    %2812 = vmatpush2.msra.mxu0 0.0
    %2813 = vmatprep.mubr.f32.mxu0 0.0
    %2814 = vmatmul.mubr.f32.gmra.mxu0 %v2747
    %v2815 = vpop.f32.mrf.mxu0
    %v2816 = vadd.f32 %v2744, %v2815
    %v2817 = vpop.f32.mrf.mxu0
    %2818 = vdwg.mxu0
    %v2819 = vxor.u32 %v2578, 2147483648
    %v2820 = vmul.f32 %v2819, 1.442695
    %v2821 = vpow.pop %v2820
    %v2822 = vadd.f32 %v2821, 1.0
    %v2823 = vrcp.pop %v2822
    %v2824 = vmul.f32 1.0, %v2823
    %v2825 = vmul.f32 %v2578, %v2824
    %2827 = vrot.lane.b32.xlu0 %v2825, 112
    %v2828 = vpop.permute.xlu0 %2827
    %v2830 = vmul.f32 %v2816, %v2828
    %2832 = vrot.lane.b32.xlu0 %v2830, 16
    %v2833 = vpop.permute.xlu0 %2832
    %2835 = vst.msk [vmem:[#allocation4 + $0x8] sm:$0xff] %vm1443, %v2833
    %v2836 = vld [vmem:[#allocation3 + $0x8] sm:$0xff]
    %v2837 = vld [vmem:[#allocation2 + $0x10] sm:$0xff]
    %v2838 = vld [vmem:[#allocation10] sm:$0x1]
    %v2840 = vlaneseq
    %v2841 = vshrl.u32 %v2840, 7
    %v2842 = vsub.s32 0, %v2841
    %v2843 = vrot.slane %v2838, %v2842
    %2844 = vrot.lane.b32.xlu0 %v2843, 96
    %v2845 = vpop.permute.xlu0 %2844
    %v2847 = vadd.f32 %v2837, %v2845
    %v2848 = vmax.f32 %v2847, 0.0
    %vm2849 = vcmp.ne.f32.partialorder %v2847, %v2847
    %v2850 = vadd.f32 %v2847, 0.0
    %v2851 = vand.u32 2147483647, %v2847
    %v2852 = vsub.f32 0.0, %v2851
    %v2853 = vmul.f32 %v2852, 1.442695
    %v2854 = vpow.pop %v2853
    %v2855 = vadd.f32 %v2854, 1.0
    %v2856 = vlog2.pop %v2855
    %v2857 = vmul.f32 %v2856, 0.6931472
    %v2858 = vmul.f32 -0.5, %v2854
    %v2859 = vadd.f32 %v2858, 1.0
    %v2860 = vmul.f32 %v2859, %v2854
    %v2861 = vand.u32 2147483647, %v2854
    %vm2862 = vcmp.lt.f32.partialorder %v2861, 0.0004427343
    %v2863 = vsel %vm2862, %v2860, %v2857
    %v2864 = vadd.f32 %v2848, %v2863
    %v2865 = vsel %vm2849, %v2850, %v2864
    %v2866 = vld [vmem:[#allocation5] sm:$0x1]
    %v2867 = vld [vmem:[#allocation8] sm:$0x1]
    %2869 = vset.pattern.permute.xlu0 99
    %2870 = vperm.xlu0 %2869, %v2865
    %v2871 = vpop.permute.xlu0 %2870
    %v2873 = vmul.f32 %v387, %v2871
    %v2874 = vsel %vm407, %v2873, 0.0
    %v2875 = vrot.slane %v2874, 4
    %v2876 = vadd.f32 %v2874, %v2875
    %v2877 = vrot.slane %v2876, 2
    %v2878 = vadd.f32 %v2876, %v2877
    %v2879 = vrot.slane %v2878, 1
    %v2880 = vadd.f32 %v2878, %v2879
    %v2881 = vmul.f32 %v384, %v2880
    %v2882 = vsel %vm407, %v2881, 0.0
    %2883 = vadd.xlane.f32.xlu0 %v2882
    %v2884 = vpop.xlane.xlu0 %2883
    %v2885 = vmul.f32 %v387, %v2884
    %v2886 = vsel %vm407, %v2885, 0.0
    %v2887 = vrot.slane %v2886, 4
    %v2888 = vadd.f32 %v2886, %v2887
    %v2889 = vrot.slane %v2888, 2
    %v2890 = vadd.f32 %v2888, %v2889
    %v2891 = vrot.slane %v2890, 1
    %v2892 = vadd.f32 %v2890, %v2891
    %v2893 = vsub.f32 %v2884, %v2892
    %v2895 = vlaneseq
    %v2896 = vshrl.u32 %v2895, 7
    %v2897 = vsub.s32 0, %v2896
    %v2898 = vrot.slane %v2866, %v2897
    %2899 = vset.pattern.permute.xlu0 3
    %2900 = vperm.xlu0 %2899, %v2898
    %v2901 = vpop.permute.xlu0 %2900
    %v2903 = vmul.f32 %v2901, %v2893
    %v2904 = vmul.f32 %v2903, 1.442695
    %v2905 = vpow.pop %v2904
    %v2906 = vsel %vm382, %v2905, 0.0
    %2908 = vrot.lane.b32.xlu0 %v2836, 72
    %v2909 = vpop.permute.xlu0 %2908
    %2910 = vrot.lane.b32.xlu0 %v2836, 104
    %v2911 = vpop.permute.xlu0 %2910
    %v2912 = vsel %vm407, %v2909, 0
    %v2914 = vsel %vm407, %v2911, 0
    %2916 = vmatprep.subr.mxu0 0.0
    %2917 = vmatpush1.xpose.msra.mxu0 0.0
    %2918 = vmatprep.subr.mxu0 0.0
    %2919 = vmatpush1.xpose.msra.mxu0 0.0
    %2920 = vmatprep.subr.mxu0 0.0
    %2921 = vmatpush1.xpose.msra.mxu0 0.0
    %2922 = vmatprep.subr.mxu0 0.0
    %2923 = vmatpush1.xpose.msra.mxu0 0.0
    %2924 = vmatprep.subr.mxu0 0.0
    %2925 = vmatpush1.xpose.msra.mxu0 0.0
    %2926 = vmatprep.subr.mxu0 0.0
    %2927 = vmatpush1.xpose.msra.mxu0 0.0
    %2928 = vmatprep.subr.mxu0 0.0
    %2929 = vmatpush1.xpose.msra.mxu0 0.0
    %2930 = vmatprep.subr.mxu0 0.0
    %2931 = vmatpush1.xpose.msra.mxu0 0.0
    %2932 = vmatprep.subr.mxu0 0.0
    %2933 = vmatpush1.xpose.msra.mxu0 0.0
    %2934 = vmatprep.subr.mxu0 0.0
    %2935 = vmatpush1.xpose.msra.mxu0 0.0
    %2936 = vmatprep.subr.mxu0 0.0
    %2937 = vmatpush1.xpose.msra.mxu0 0.0
    %2938 = vmatprep.subr.mxu0 0.0
    %2939 = vmatpush1.xpose.msra.mxu0 0.0
    %2940 = vmatprep.subr.mxu0 0.0
    %2941 = vmatpush1.xpose.msra.mxu0 0.0
    %2942 = vmatprep.subr.mxu0 0.0
    %2943 = vmatpush1.xpose.msra.mxu0 0.0
    %2944 = vmatprep.subr.mxu0 0.0
    %2945 = vmatpush1.xpose.msra.mxu0 0.0
    %2946 = vmatprep.subr.mxu0 0.0
    %2947 = vmatpush1.xpose.msra.mxu0 %v2914
    %2948 = vmatprep.subr.mxu0 0.0
    %2949 = vmatpush2.xpose.msra.mxu0 0.0
    %2950 = vmatprep.subr.mxu0 0.0
    %2951 = vmatpush2.xpose.msra.mxu0 0.0
    %2952 = vmatprep.subr.mxu0 0.0
    %2953 = vmatpush2.xpose.msra.mxu0 0.0
    %2954 = vmatprep.subr.mxu0 0.0
    %2955 = vmatpush2.xpose.msra.mxu0 0.0
    %2956 = vmatprep.subr.mxu0 0.0
    %2957 = vmatpush2.xpose.msra.mxu0 0.0
    %2958 = vmatprep.subr.mxu0 0.0
    %2959 = vmatpush2.xpose.msra.mxu0 0.0
    %2960 = vmatprep.subr.mxu0 0.0
    %2961 = vmatpush2.xpose.msra.mxu0 0.0
    %2962 = vmatprep.subr.mxu0 0.0
    %2963 = vmatpush2.xpose.msra.mxu0 0.0
    %2964 = vmatprep.subr.mxu0 0.0
    %2965 = vmatpush2.xpose.msra.mxu0 0.0
    %2966 = vmatprep.subr.mxu0 0.0
    %2967 = vmatpush2.xpose.msra.mxu0 0.0
    %2968 = vmatprep.subr.mxu0 0.0
    %2969 = vmatpush2.xpose.msra.mxu0 0.0
    %2970 = vmatprep.subr.mxu0 0.0
    %2971 = vmatpush2.xpose.msra.mxu0 0.0
    %2972 = vmatprep.subr.mxu0 0.0
    %2973 = vmatpush2.xpose.msra.mxu0 0.0
    %2974 = vmatprep.subr.mxu0 0.0
    %2975 = vmatpush2.xpose.msra.mxu0 0.0
    %2976 = vmatprep.subr.mxu0 0.0
    %2977 = vmatpush2.xpose.msra.mxu0 0.0
    %2978 = vmatprep.subr.mxu0 0.0
    %2979 = vmatpush2.xpose.msra.mxu0 0.0
    %2980 = vmatprep.mubr.f32.mxu0 0.0
    %2981 = vmatmul.mubr.f32.gmra.mxu0 %v2912
    %v2982 = vpop.f32.mrf.mxu0
    %v2983 = vadd.f32 0.0, %v2982
    %v2984 = vpop.f32.mrf.mxu0
    %2985 = vdwg.mxu0
    %v2986 = vmul.f32 %v2983, %v2906
    %v2987 = vmul.f32 %v2986, %v2880
    %v2989 = vlaneseq
    %v2990 = vshrl.u32 %v2989, 7
    %v2991 = vsub.s32 0, %v2990
    %v2992 = vrot.slane %v2867, %v2991
    %2993 = vset.pattern.permute.xlu0 3
    %2994 = vperm.xlu0 %2993, %v2992
    %v2995 = vpop.permute.xlu0 %2994
    %v2997 = vmul.f32 %v2995, %v2836
    %2998 = vrot.lane.b32.xlu0 %v2836, 120
    %v2999 = vpop.permute.xlu0 %2998
    %3002 = vrot.lane.b32.xlu0 %v2997, 120
    %v3003 = vpop.permute.xlu0 %3002
    %v3006 = vsel %vm407, %v2987, 0
    %3008 = vmatprep.subr.mxu0 0.0
    %3009 = vmatpush1.msra.mxu0 0.0
    %3010 = vmatprep.subr.mxu0 0.0
    %3011 = vmatpush1.msra.mxu0 0.0
    %3012 = vmatprep.subr.mxu0 0.0
    %3013 = vmatpush1.msra.mxu0 0.0
    %3014 = vmatprep.subr.mxu0 0.0
    %3015 = vmatpush1.msra.mxu0 0.0
    %3016 = vmatprep.subr.mxu0 0.0
    %3017 = vmatpush1.msra.mxu0 0.0
    %3018 = vmatprep.subr.mxu0 0.0
    %3019 = vmatpush1.msra.mxu0 0.0
    %3020 = vmatprep.subr.mxu0 0.0
    %3021 = vmatpush1.msra.mxu0 0.0
    %3022 = vmatprep.subr.mxu0 0.0
    %3023 = vmatpush1.msra.mxu0 0.0
    %3024 = vmatprep.subr.mxu0 0.0
    %3025 = vmatpush1.msra.mxu0 0.0
    %3026 = vmatprep.subr.mxu0 0.0
    %3027 = vmatpush1.msra.mxu0 0.0
    %3028 = vmatprep.subr.mxu0 0.0
    %3029 = vmatpush1.msra.mxu0 0.0
    %3030 = vmatprep.subr.mxu0 0.0
    %3031 = vmatpush1.msra.mxu0 0.0
    %3032 = vmatprep.subr.mxu0 0.0
    %3033 = vmatpush1.msra.mxu0 0.0
    %3034 = vmatprep.subr.mxu0 0.0
    %3035 = vmatpush1.msra.mxu0 0.0
    %3036 = vmatprep.subr.mxu0 0.0
    %3037 = vmatpush1.msra.mxu0 0.0
    %3038 = vmatprep.subr.mxu0 0.0
    %3039 = vmatpush1.msra.mxu0 %v2999
    %3040 = vmatprep.subr.mxu0 0.0
    %3041 = vmatpush2.msra.mxu0 0.0
    %3042 = vmatprep.subr.mxu0 0.0
    %3043 = vmatpush2.msra.mxu0 0.0
    %3044 = vmatprep.subr.mxu0 0.0
    %3045 = vmatpush2.msra.mxu0 0.0
    %3046 = vmatprep.subr.mxu0 0.0
    %3047 = vmatpush2.msra.mxu0 0.0
    %3048 = vmatprep.subr.mxu0 0.0
    %3049 = vmatpush2.msra.mxu0 0.0
    %3050 = vmatprep.subr.mxu0 0.0
    %3051 = vmatpush2.msra.mxu0 0.0
    %3052 = vmatprep.subr.mxu0 0.0
    %3053 = vmatpush2.msra.mxu0 0.0
    %3054 = vmatprep.subr.mxu0 0.0
    %3055 = vmatpush2.msra.mxu0 0.0
    %3056 = vmatprep.subr.mxu0 0.0
    %3057 = vmatpush2.msra.mxu0 0.0
    %3058 = vmatprep.subr.mxu0 0.0
    %3059 = vmatpush2.msra.mxu0 0.0
    %3060 = vmatprep.subr.mxu0 0.0
    %3061 = vmatpush2.msra.mxu0 0.0
    %3062 = vmatprep.subr.mxu0 0.0
    %3063 = vmatpush2.msra.mxu0 0.0
    %3064 = vmatprep.subr.mxu0 0.0
    %3065 = vmatpush2.msra.mxu0 0.0
    %3066 = vmatprep.subr.mxu0 0.0
    %3067 = vmatpush2.msra.mxu0 0.0
    %3068 = vmatprep.subr.mxu0 0.0
    %3069 = vmatpush2.msra.mxu0 0.0
    %3070 = vmatprep.subr.mxu0 0.0
    %3071 = vmatpush2.msra.mxu0 0.0
    %3072 = vmatprep.mubr.f32.mxu0 0.0
    %3073 = vmatmul.mubr.f32.gmra.mxu0 %v3006
    %v3074 = vpop.f32.mrf.mxu0
    %v3075 = vadd.f32 %v3003, %v3074
    %v3076 = vpop.f32.mrf.mxu0
    %3077 = vdwg.mxu0
    %v3078 = vxor.u32 %v2837, 2147483648
    %v3079 = vmul.f32 %v3078, 1.442695
    %v3080 = vpow.pop %v3079
    %v3081 = vadd.f32 %v3080, 1.0
    %v3082 = vrcp.pop %v3081
    %v3083 = vmul.f32 1.0, %v3082
    %v3084 = vmul.f32 %v2837, %v3083
    %3086 = vrot.lane.b32.xlu0 %v3084, 104
    %v3087 = vpop.permute.xlu0 %3086
    %v3089 = vmul.f32 %v3075, %v3087
    %3091 = vrot.lane.b32.xlu0 %v3089, 24
    %v3092 = vpop.permute.xlu0 %3091
    %3094 = vst.msk [vmem:[#allocation4 + $0x8] sm:$0xff] %vm1703, %v3092
    %v3095 = vld [vmem:[#allocation4 + $0x8] sm:$0xff]
    %v3096 = vmul.f32 %v3095, %v3095
    %v3097 = vsel %vm108, %v3096, 0.0
    %3098 = vadd.xlane.f32.xlu0 %v3097
    %v3099 = vpop.xlane.xlu0 %3098
    %v3100 = vmul.f32 %v3099, %v115
    %v3101 = vadd.f32 %v3100, 1e-05
    %v3102 = vrsqrt.pop %v3101
    %v3103 = vmul.f32 %v3095, %v3102
    %v3104 = vld [vmem:[#allocation11] sm:$0x1]
    %v3106 = vlaneseq
    %v3107 = vshrl.u32 %v3106, 7
    %v3108 = vsub.s32 0, %v3107
    %v3109 = vrot.slane %v3104, %v3108
    %v3111 = vmul.f32 %v3103, %v3109
    %v3112 = vld [vmem:[%s11] sm:$0xff]
    %v3113 = vld [vmem:[%s11 + $0x8] sm:$0xff]
    %v3114 = vld [vmem:[%s11 + $0x10] sm:$0xff]
    %v3115 = vld [vmem:[%s11 + $0x18] sm:$0xff]
    %v3117 = vsel %vm108, %v3111, 0
    %3119 = vmatprep.subr.mxu0 0.0
    %3120 = vmatpush1.msra.mxu0 0.0
    %3121 = vmatprep.subr.mxu0 0.0
    %3122 = vmatpush1.msra.mxu0 0.0
    %3123 = vmatprep.subr.mxu0 0.0
    %3124 = vmatpush1.msra.mxu0 0.0
    %3125 = vmatprep.subr.mxu0 0.0
    %3126 = vmatpush1.msra.mxu0 0.0
    %3127 = vmatprep.subr.mxu0 0.0
    %3128 = vmatpush1.msra.mxu0 0.0
    %3129 = vmatprep.subr.mxu0 0.0
    %3130 = vmatpush1.msra.mxu0 0.0
    %3131 = vmatprep.subr.mxu0 0.0
    %3132 = vmatpush1.msra.mxu0 0.0
    %3133 = vmatprep.subr.mxu0 0.0
    %3134 = vmatpush1.msra.mxu0 0.0
    %3135 = vmatprep.subr.mxu0 0.0
    %3136 = vmatpush1.msra.mxu0 0.0
    %3137 = vmatprep.subr.mxu0 0.0
    %3138 = vmatpush1.msra.mxu0 0.0
    %3139 = vmatprep.subr.mxu0 0.0
    %3140 = vmatpush1.msra.mxu0 0.0
    %3141 = vmatprep.subr.mxu0 0.0
    %3142 = vmatpush1.msra.mxu0 0.0
    %3143 = vmatprep.subr.mxu0 0.0
    %3144 = vmatpush1.msra.mxu0 %v3115
    %3145 = vmatprep.subr.mxu0 0.0
    %3146 = vmatpush1.msra.mxu0 %v3114
    %3147 = vmatprep.subr.mxu0 0.0
    %3148 = vmatpush1.msra.mxu0 %v3113
    %3149 = vmatprep.subr.mxu0 0.0
    %3150 = vmatpush1.msra.mxu0 %v3112
    %3151 = vmatprep.subr.mxu0 0.0
    %3152 = vmatpush2.msra.mxu0 0.0
    %3153 = vmatprep.subr.mxu0 0.0
    %3154 = vmatpush2.msra.mxu0 0.0
    %3155 = vmatprep.subr.mxu0 0.0
    %3156 = vmatpush2.msra.mxu0 0.0
    %3157 = vmatprep.subr.mxu0 0.0
    %3158 = vmatpush2.msra.mxu0 0.0
    %3159 = vmatprep.subr.mxu0 0.0
    %3160 = vmatpush2.msra.mxu0 0.0
    %3161 = vmatprep.subr.mxu0 0.0
    %3162 = vmatpush2.msra.mxu0 0.0
    %3163 = vmatprep.subr.mxu0 0.0
    %3164 = vmatpush2.msra.mxu0 0.0
    %3165 = vmatprep.subr.mxu0 0.0
    %3166 = vmatpush2.msra.mxu0 0.0
    %3167 = vmatprep.subr.mxu0 0.0
    %3168 = vmatpush2.msra.mxu0 0.0
    %3169 = vmatprep.subr.mxu0 0.0
    %3170 = vmatpush2.msra.mxu0 0.0
    %3171 = vmatprep.subr.mxu0 0.0
    %3172 = vmatpush2.msra.mxu0 0.0
    %3173 = vmatprep.subr.mxu0 0.0
    %3174 = vmatpush2.msra.mxu0 0.0
    %3175 = vmatprep.subr.mxu0 0.0
    %3176 = vmatpush2.msra.mxu0 0.0
    %3177 = vmatprep.subr.mxu0 0.0
    %3178 = vmatpush2.msra.mxu0 0.0
    %3179 = vmatprep.subr.mxu0 0.0
    %3180 = vmatpush2.msra.mxu0 0.0
    %3181 = vmatprep.subr.mxu0 0.0
    %3182 = vmatpush2.msra.mxu0 0.0
    %3183 = vmatprep.mubr.f32.mxu0 0.0
    %3184 = vmatmul.mubr.f32.gmra.mxu0 %v3117
    %v3185 = vpop.f32.mrf.mxu0
    %v3186 = vadd.f32 %v375, %v3185
    %v3187 = vpop.f32.mrf.mxu0
    %3188 = vdwg.mxu0
    %v3189 = vadd.f32 %v3186, %v107
    %3190 = vst.msk [vmem:[#allocation14 + $0x8] sm:$0xff] %vm108, %v3189
    // Predicated region
    $region78: #{phi_mamba_decoder_layer.1} parent=1 // pred_check
      _
    $region79: #{phi_mamba_decoder_layer.1} parent=1 // pred_check_branch
      %3192 = sbr.rel (0) target = $region81
    $region80: #{phi_mamba_decoder_layer.1} parent=1 // pred_region
      %s3194 = ssub.s32 256, 256
      %3195 = vsyncadd [#allocation7], %s3194
      %s3196 = sshll.u32 [#allocation14], 4
      %s3197 = int_to_ptr.vmem [resolvable:$true] %s3196
      %3202 = dma.vmem_to_hbm [thread:$0]  %s3197, 256, %s14, [#allocation7], 128, 128, 8
    $region81: #{phi_mamba_decoder_layer.1} parent=1 // pred_fallthru
      _
    // Predicated region
    $region82: #{phi_mamba_decoder_layer.1} parent=1 // pred_check
      _
    $region83: #{phi_mamba_decoder_layer.1} parent=1 // pred_check_branch
      %3204 = sbr.rel (0) target = $region85
    $region84: #{phi_mamba_decoder_layer.1} parent=1 // pred_region
      %3205 = dma.done [#allocation7], 256
    $region85: #{phi_mamba_decoder_layer.1} parent=1 // pred_fallthru
      _
    %3206 = vsyncpa [#allocation6], 1
    %3207 = vsyncpa [#allocation9], 1
    %3208 = vsyncpa [#allocation12], 1
    %3209 = vsyncpa [#allocation7], 1

</llo_original>
